<compile_context>
chip_gen: v7x
topology: tpu7x:2x2x1
jax: 0.10.0
libtpu: 0.0.40
codegen_flags: <defaults>
</compile_context>

<pallas_src>
import jax
import jax.numpy as jnp
from jax import lax
from jax.experimental import pallas as pl
from jax.experimental.pallas import tpu as pltpu

# Module hyper-parameters (fixed, deterministic).
CODEBOOK_SIZE = 64
EMBEDDING_DIM = 32
COMMITMENT_COST = 0.25
DECAY = 0.99
TEMPERATURE = 1.0
TAU = 1.0  # tau>0 only rescales pre-argmax logits; hard one-hot output is invariant.

K_PAD = 128            # codebook axis padded to a full lane (lane-dense vregs/stores)
N_CORES = 2            # leading "parallel" grid axis -> dual-TensorCore split on v7x
MAX_TILE_N = 2048      # rows per grid step per core (fits easily in 48 MiB VMEM budget)
INV_TEMPERATURE = 1.0 / TEMPERATURE   # divides folded into multiplies (no EUP divide)


def _round_up(x, m):
    return ((x + m - 1) // m) * m


def _make_kernel(tile_n, steps_per_core, n_valid, need_row_mask):
    def kernel(seed_ref, x_ref, cb_ref, codes_ref, loss_part_ref, cb_part_ref,
               c2_ref, cb_acc_ref, loss_acc_ref):
        c = pl.program_id(0)                 # parallel core axis
        i = pl.program_id(1)                 # sequential reduction axis
        cb = cb_ref[...]                     # (K_PAD, D) f32, resident across grid

        @pl.when(i == 0)
        def _init():
            # ||c||^2 as a (1, K_PAD) row, computed on the MXU (no lane reduce or
            # 1-D reshape). Padded codebook columns get +1e30 baked in so the hot
            # loop needs no per-element column mask.
            ones8 = jnp.ones((8, EMBEDDING_DIM), jnp.float32)
            c2 = lax.dot_general(ones8, cb * cb, (((1,), (1,)), ((), ())),
                                 preferred_element_type=jnp.float32,
                                 precision=lax.Precision.HIGHEST)      # (8, K_PAD)
            kcol = lax.broadcasted_iota(jnp.int32, (8, K_PAD), 1)
            c2 = jnp.where(kcol < CODEBOOK_SIZE, c2, jnp.float32(1e30))
            c2_ref[...] = c2[0:1, :]
            cb_acc_ref[...] = jnp.zeros_like(cb_acc_ref)
            loss_acc_ref[...] = jnp.zeros_like(loss_acc_ref)

        x = x_ref[...]                                       # (tile_n, D) f32

        # --- squared distances: ||x||^2 + ||c||^2 - 2 x.c^T (all-f32 MXU) ---
        xx = x * x
        ones_dk = jnp.ones((EMBEDDING_DIM, K_PAD), jnp.float32)
        x2 = lax.dot_general(xx, ones_dk, (((1,), (0,)), ((), ())),
                             preferred_element_type=jnp.float32,
                             precision=lax.Precision.HIGHEST)          # (tile_n, K_PAD)
        xc = lax.dot_general(x, cb, (((1,), (1,)), ((), ())),
                             preferred_element_type=jnp.float32,
                             precision=lax.Precision.HIGHEST)          # (tile_n, K_PAD)
        sq = jnp.maximum(x2 + c2_ref[...] - 2.0 * xc, 0.0)
        dist = jnp.sqrt(sq)                                  # torch.cdist(p=2) semantics

        # --- Gumbel(0,1) noise from an in-kernel counter hash (VPU-only; no HBM
        #     noise stream; works both under Mosaic and interpret mode) ---
        gstep = c * steps_per_core + i
        row = lax.broadcasted_iota(jnp.int32, (tile_n, K_PAD), 0) + gstep * tile_n
        col = lax.broadcasted_iota(jnp.int32, (tile_n, K_PAD), 1)
        h = row.astype(jnp.uint32) * jnp.uint32(K_PAD) + col.astype(jnp.uint32)
        h = h * jnp.uint32(0x9E3779B9) + seed_ref[0].astype(jnp.uint32)
        h = h ^ (h >> 16)
        h = h * jnp.uint32(0x7FEB352D)
        h = h ^ (h >> 15)
        h = h * jnp.uint32(0x846CA68B)
        h = h ^ (h >> 16)
        mant = (h >> 9) | jnp.uint32(0x3F800000)
        u = lax.bitcast_convert_type(mant, jnp.float32) - 1.0          # [0, 1)
        u = jnp.maximum(u, jnp.float32(1e-7))
        g = -jnp.log(-jnp.log(u))

        # --- hard gumbel-softmax: fused argmax + first-occurrence tie-break via a
        #     single lane reduce over a sortable int32 key (halves XLU work) ---
        logits = g - dist * jnp.float32(INV_TEMPERATURE)
        lb = lax.bitcast_convert_type(logits, jnp.int32)
        key = jnp.where(lb < 0, lb ^ jnp.int32(0x7FFFFFFF), lb)        # order-preserving
        key = (key & jnp.int32(-128)) | (jnp.int32(K_PAD - 1) - col)   # low 7 bits: 127-col
        kmax = jnp.max(key, axis=-1, keepdims=True)
        amax = jnp.int32(K_PAD - 1) - (kmax & jnp.int32(K_PAD - 1))
        onehot = col == amax
        if need_row_mask:
            onehot = jnp.logical_and(onehot, row < n_valid)            # zero padded rows
        codes = onehot.astype(jnp.float32)

        codes_ref[...] = codes.astype(jnp.bfloat16)          # lane-dense bf16 store

        # --- loss numerator: ||codes@cb - x||^2 == selected squared distance.
        #     Column-wise accumulation (cross-vreg VPU adds); the single 128-lane
        #     reduce happens once, in the wrapper epilogue. ---
        loss_acc_ref[...] += jnp.sum(codes * sq, axis=0, keepdims=True)

        # --- codebook EMA numerator: codes^T @ x (f32 MXU, no transpose) ---
        cb_acc_ref[...] += lax.dot_general(codes, x, (((0,), (0,)), ((), ())),
                                           preferred_element_type=jnp.float32,
                                           precision=lax.Precision.HIGHEST)

        @pl.when(i == steps_per_core - 1)
        def _finalize():
            loss_part_ref[0] = loss_acc_ref[...]             # (1, K_PAD) per-core partial
            cb_part_ref[0] = cb_acc_ref[...]                 # (K_PAD, D) per-core partial

    return kernel


@jax.jit
def distance_gumbel_softmax_vq(x_flat, codebook, seed):
    n, d = x_flat.shape
    k = codebook.shape[0]

    per_core = -(-n // N_CORES)
    tile_n = min(MAX_TILE_N, _round_up(per_core, 16))        # 16: bf16 sublane tile
    steps_per_core = -(-per_core // tile_n)
    n_pad = N_CORES * steps_per_core * tile_n
    need_row_mask = n_pad != n

    x_p = jnp.pad(x_flat.astype(jnp.float32), ((0, n_pad - n), (0, 0)))
    cb_p = jnp.pad(codebook.astype(jnp.float32), ((0, K_PAD - k), (0, 0)))
    seed_arr = jnp.asarray(seed, dtype=jnp.int32).reshape(1)

    kernel = _make_kernel(tile_n, steps_per_core, n, need_row_mask)

    grid_spec = pltpu.PrefetchScalarGridSpec(
        num_scalar_prefetch=1,
        grid=(N_CORES, steps_per_core),
        in_specs=[
            pl.BlockSpec((tile_n, d), lambda c, i, s: (c * steps_per_core + i, 0)),  # x
            pl.BlockSpec((K_PAD, d), lambda c, i, s: (0, 0)),                        # codebook
        ],
        out_specs=(
            pl.BlockSpec((tile_n, K_PAD), lambda c, i, s: (c * steps_per_core + i, 0)),
            pl.BlockSpec((1, 1, K_PAD), lambda c, i, s: (c, 0, 0)),   # per-core loss partial
            pl.BlockSpec((1, K_PAD, d), lambda c, i, s: (c, 0, 0)),   # per-core codes^T@x
        ),
        scratch_shapes=[
            pltpu.VMEM((1, K_PAD), jnp.float32),     # hoisted ||c||^2 (+pad-column bias)
            pltpu.VMEM((K_PAD, d), jnp.float32),     # codes^T @ x accumulator
            pltpu.VMEM((1, K_PAD), jnp.float32),     # column-wise loss accumulator
        ],
    )

    cost = pl.CostEstimate(
        flops=3 * 2 * n_pad * K_PAD * d,                      # three f32 MXU matmuls/step
        transcendentals=3 * n_pad * K_PAD,                    # sqrt + 2x log per (n, k)
        bytes_accessed=(4 * n_pad * d + 2 * n_pad * K_PAD + 4 * K_PAD * d
                        + 4 * N_CORES * K_PAD * (d + 1)),
    )

    codes_p, loss_parts, cb_parts = pl.pallas_call(
        kernel,
        out_shape=(
            jax.ShapeDtypeStruct((n_pad, K_PAD), jnp.bfloat16),
            jax.ShapeDtypeStruct((N_CORES, 1, K_PAD), jnp.float32),
            jax.ShapeDtypeStruct((N_CORES, K_PAD, d), jnp.float32),
        ),
        grid_spec=grid_spec,
        compiler_params=pltpu.CompilerParams(
            dimension_semantics=("parallel", "arbitrary"),    # core split x accumulation
            vmem_limit_bytes=48 * 1024 * 1024,                # safe on v7x (64 MiB phys)
        ),
        cost_estimate=cost,
    )(seed_arr, x_p, cb_p)

    # Tiny epilogue outside the kernel: combine per-core partials.
    # quantization_loss + commitment_loss == (1 + commitment_cost) * mse
    loss = jnp.sum(loss_parts) * ((1.0 + COMMITMENT_COST) / (n * d))
    cb_update = jnp.sum(cb_parts, axis=0)[:k, :]
    new_codebook = DECAY * codebook.astype(jnp.float32) + (1.0 - DECAY) * cb_update

    # codes returned in the padded lane-dense (n_pad, 128) bf16 layout; consumers
    # should use it directly — slice to (n, codebook_size) only at the boundary.
    return codes_p, loss, new_codebook


if __name__ == "__main__":
    key = jax.random.PRNGKey(0)
    k_x, k_cb = jax.random.split(key, 2)

    # Small shapes consistent with the module (features with C == embedding_dim).
    B, H, W = 2, 8, 8
    x = jax.random.normal(k_x, (B, H, W, EMBEDDING_DIM), dtype=jnp.float32)
    # "codebook = torch.randn(codebook_size, embedding_dim)" init, deterministic.
    codebook = jax.random.normal(k_cb, (CODEBOOK_SIZE, EMBEDDING_DIM), dtype=jnp.float32)

    # inputs.view(-1, embedding_dim)
    x_flat = x.reshape(-1, EMBEDDING_DIM)                    # (128, 32)

    codes_padded, total_loss, new_codebook = distance_gumbel_softmax_vq(x_flat, codebook, 0)
    jax.block_until_ready((codes_padded, total_loss, new_codebook))

    # Boundary slice for the module-shaped view (outside the jitted hot path).
    n = x_flat.shape[0]
    codes = codes_padded[:n, :CODEBOOK_SIZE].astype(jnp.float32)

    # sanity: codes are one-hot rows, outputs well-formed
    assert codes.shape == (n, CODEBOOK_SIZE)
    assert new_codebook.shape == (CODEBOOK_SIZE, EMBEDDING_DIM)
    assert jnp.allclose(jnp.sum(codes, axis=-1), 1.0)
    assert bool(jnp.isfinite(total_loss))
    print("KERNEL_OK")
</pallas_src>

<mosaic_0001>
module attributes {stable_mosaic.version = 11 : i64} {
  func.func @kernel(%arg0: i32, %arg1: i32, %arg2: memref<1xi32, #tpu.memory_space<smem>>, %arg3: memref<64x32xf32, #tpu.memory_space<vmem>>, %arg4: memref<128x32xf32, #tpu.memory_space<vmem>>, %arg5: memref<64x128xbf16, #tpu.memory_space<vmem>>, %arg6: memref<1x1x128xf32, #tpu.memory_space<vmem>>, %arg7: memref<1x128x32xf32, #tpu.memory_space<vmem>>, %arg8: memref<1x128xf32, #tpu.memory_space<vmem>>, %arg9: memref<128x32xf32, #tpu.memory_space<vmem>>, %arg10: memref<1x128xf32, #tpu.memory_space<vmem>>) attributes {dimension_semantics = [#tpu.dimension_semantics<parallel>, #tpu.dimension_semantics<arbitrary>], iteration_bounds = array<i64: 2, 1>, scalar_prefetch = 1 : i64, scratch_operands = 3 : i64, tpu.core_type = #tpu.core_type<tc>, window_params = [{transform_indices = @transform_0, window_bounds = array<i64: 64, 32>}, {pipeline_mode = #tpu.pipeline_mode<synchronous>, transform_indices = @transform_1, window_bounds = array<i64: 128, 32>}, {transform_indices = @transform_2, window_bounds = array<i64: 64, 128>}, {transform_indices = @transform_3, window_bounds = array<i64: 1, 1, 128>}, {transform_indices = @transform_4, window_bounds = array<i64: 1, 128, 32>}]} {
    %c0 = arith.constant 0 : index
    %c0_0 = arith.constant 0 : index
    %0 = vector.load %arg4[%c0, %c0_0] : memref<128x32xf32, #tpu.memory_space<vmem>>, vector<128x32xf32>
    %c0_i32 = arith.constant 0 : i32
    %1 = arith.cmpi eq, %arg1, %c0_i32 : i32
    %2 = arith.extui %1 : i1 to i32
    %c0_i32_1 = arith.constant 0 : i32
    %3 = arith.cmpi ne, %2, %c0_i32_1 : i32
    scf.if %3 {
      %cst_35 = arith.constant 1.000000e+00 : f32
      %100 = vector.broadcast %cst_35 : f32 to vector<8x32xf32>
      %101 = arith.mulf %0, %0 : vector<128x32xf32>
      %cst_36 = arith.constant dense<0.000000e+00> : vector<8x128xf32>
      %102 = tpu.matmul %100, %101, %cst_36 {dimension_numbers = #tpu.dot_dimension_numbers<[1], [1], [0], [0], [0, 0, 1, 0], [], []>, precision = #tpu.contract_precision<fp32>} : vector<8x32xf32>, vector<128x32xf32>, vector<8x128xf32> -> vector<8x128xf32>
      %103 = tpu.iota {dimensions = array<i32: 1>} : vector<8x128xi32>
      %c64_i32_37 = arith.constant 64 : i32
      %104 = vector.broadcast %c64_i32_37 : i32 to vector<8x128xi32>
      %105 = arith.cmpi slt, %103, %104 : vector<8x128xi32>
      %cst_38 = arith.constant 1.000000e+30 : f32
      %106 = vector.broadcast %cst_38 : f32 to vector<8x128xf32>
      %107 = arith.select %105, %102, %106 : vector<8x128xi1>, vector<8x128xf32>
      %108 = vector.extract_strided_slice %107 {offsets = [0, 0], sizes = [1, 128], strides = [1, 1]} : vector<8x128xf32> to vector<1x128xf32>
      %c0_39 = arith.constant 0 : index
      %c0_40 = arith.constant 0 : index
      %109 = vector.load %arg8[%c0_39, %c0_40] : memref<1x128xf32, #tpu.memory_space<vmem>>, vector<1x128xf32>
      tpu.vector_store %arg8[%c0_39, %c0_40], %108 {strides = array<i32>} : memref<1x128xf32, #tpu.memory_space<vmem>>, vector<1x128xf32>,
      %cst_41 = arith.constant 0.000000e+00 : f32
      %110 = vector.broadcast %cst_41 : f32 to vector<128x32xf32>
      %c0_42 = arith.constant 0 : index
      %c0_43 = arith.constant 0 : index
      %111 = vector.load %arg9[%c0_42, %c0_43] : memref<128x32xf32, #tpu.memory_space<vmem>>, vector<128x32xf32>
      tpu.vector_store %arg9[%c0_42, %c0_43], %110 {strides = array<i32>} : memref<128x32xf32, #tpu.memory_space<vmem>>, vector<128x32xf32>,
      %cst_44 = arith.constant 0.000000e+00 : f32
      %112 = vector.broadcast %cst_44 : f32 to vector<1x128xf32>
      %c0_45 = arith.constant 0 : index
      %c0_46 = arith.constant 0 : index
      %113 = vector.load %arg10[%c0_45, %c0_46] : memref<1x128xf32, #tpu.memory_space<vmem>>, vector<1x128xf32>
      tpu.vector_store %arg10[%c0_45, %c0_46], %112 {strides = array<i32>} : memref<1x128xf32, #tpu.memory_space<vmem>>, vector<1x128xf32>,
    } else {
    }
    %c0_2 = arith.constant 0 : index
    %c0_3 = arith.constant 0 : index
    %4 = vector.load %arg3[%c0_2, %c0_3] : memref<64x32xf32, #tpu.memory_space<vmem>>, vector<64x32xf32>
    %5 = arith.mulf %4, %4 : vector<64x32xf32>
    %cst = arith.constant 1.000000e+00 : f32
    %6 = vector.broadcast %cst : f32 to vector<32x128xf32>
    %cst_4 = arith.constant dense<0.000000e+00> : vector<64x128xf32>
    %7 = tpu.matmul %5, %6, %cst_4 {dimension_numbers = #tpu.dot_dimension_numbers<[1], [0], [0], [1], [0, 0, 1, 1], [], []>, precision = #tpu.contract_precision<fp32>} : vector<64x32xf32>, vector<32x128xf32>, vector<64x128xf32> -> vector<64x128xf32>
    %cst_5 = arith.constant dense<0.000000e+00> : vector<64x128xf32>
    %8 = tpu.matmul %4, %0, %cst_5 {dimension_numbers = #tpu.dot_dimension_numbers<[1], [1], [0], [0], [0, 0, 1, 0], [], []>, precision = #tpu.contract_precision<fp32>} : vector<64x32xf32>, vector<128x32xf32>, vector<64x128xf32> -> vector<64x128xf32>
    %c0_6 = arith.constant 0 : index
    %c0_7 = arith.constant 0 : index
    %9 = vector.load %arg8[%c0_6, %c0_7] : memref<1x128xf32, #tpu.memory_space<vmem>>, vector<1x128xf32>
    %10 = vector.broadcast %9 : vector<1x128xf32> to vector<64x128xf32>
    %11 = arith.addf %7, %10 : vector<64x128xf32>
    %cst_8 = arith.constant 2.000000e+00 : f32
    %12 = vector.broadcast %cst_8 : f32 to vector<64x128xf32>
    %13 = arith.mulf %12, %8 : vector<64x128xf32>
    %14 = arith.subf %11, %13 : vector<64x128xf32>
    %cst_9 = arith.constant 0.000000e+00 : f32
    %15 = vector.broadcast %cst_9 : f32 to vector<64x128xf32>
    %16 = arith.maximumf %14, %15 : vector<64x128xf32>
    %17 = math.sqrt %16 : vector<64x128xf32>
    %c1_i32 = arith.constant 1 : i32
    %18 = arith.muli %arg0, %c1_i32 : i32
    %19 = arith.addi %18, %arg1 : i32
    %20 = tpu.iota {dimensions = array<i32: 0>} : vector<64x128xi32>
    %c64_i32 = arith.constant 64 : i32
    %21 = arith.muli %19, %c64_i32 : i32
    %22 = vector.broadcast %21 : i32 to vector<64x128xi32>
    %23 = arith.addi %20, %22 : vector<64x128xi32>
    %24 = tpu.iota {dimensions = array<i32: 1>} : vector<64x128xi32>
    %c128_i32 = arith.constant 128 : i32
    %25 = vector.broadcast %c128_i32 : i32 to vector<64x128xi32>
    %26 = arith.muli %23, %25 : vector<64x128xi32>
    %27 = arith.addi %26, %24 : vector<64x128xi32>
    %c-1640531527_i32 = arith.constant -1640531527 : i32
    %28 = vector.broadcast %c-1640531527_i32 : i32 to vector<64x128xi32>
    %29 = arith.muli %27, %28 : vector<64x128xi32>
    %c0_10 = arith.constant 0 : index
    %30 = memref.load %arg2[%c0_10] : memref<1xi32, #tpu.memory_space<smem>>
    %31 = vector.broadcast %30 : i32 to vector<64x128xi32>
    %32 = arith.addi %29, %31 : vector<64x128xi32>
    %c16_i32 = arith.constant 16 : i32
    %33 = vector.broadcast %c16_i32 : i32 to vector<64x128xi32>
    %34 = arith.shrui %32, %33 : vector<64x128xi32>
    %35 = arith.xori %32, %34 : vector<64x128xi32>
    %c2146121005_i32 = arith.constant 2146121005 : i32
    %36 = vector.broadcast %c2146121005_i32 : i32 to vector<64x128xi32>
    %37 = arith.muli %35, %36 : vector<64x128xi32>
    %c15_i32 = arith.constant 15 : i32
    %38 = vector.broadcast %c15_i32 : i32 to vector<64x128xi32>
    %39 = arith.shrui %37, %38 : vector<64x128xi32>
    %40 = arith.xori %37, %39 : vector<64x128xi32>
    %c-2073254261_i32 = arith.constant -2073254261 : i32
    %41 = vector.broadcast %c-2073254261_i32 : i32 to vector<64x128xi32>
    %42 = arith.muli %40, %41 : vector<64x128xi32>
    %c16_i32_11 = arith.constant 16 : i32
    %43 = vector.broadcast %c16_i32_11 : i32 to vector<64x128xi32>
    %44 = arith.shrui %42, %43 : vector<64x128xi32>
    %45 = arith.xori %42, %44 : vector<64x128xi32>
    %c9_i32 = arith.constant 9 : i32
    %46 = vector.broadcast %c9_i32 : i32 to vector<64x128xi32>
    %47 = arith.shrui %45, %46 : vector<64x128xi32>
    %c1065353216_i32 = arith.constant 1065353216 : i32
    %48 = vector.broadcast %c1065353216_i32 : i32 to vector<64x128xi32>
    %49 = arith.ori %47, %48 : vector<64x128xi32>
    %50 = tpu.bitcast %49 : vector<64x128xi32> -> vector<64x128xf32>
    %cst_12 = arith.constant 1.000000e+00 : f32
    %51 = vector.broadcast %cst_12 : f32 to vector<64x128xf32>
    %52 = arith.subf %50, %51 : vector<64x128xf32>
    %cst_13 = arith.constant 1.000000e-07 : f32
    %53 = vector.broadcast %cst_13 : f32 to vector<64x128xf32>
    %54 = arith.maximumf %52, %53 : vector<64x128xf32>
    %55 = math.log %54 : vector<64x128xf32>
    %cst_14 = arith.constant 0.000000e+00 : f32
    %56 = vector.broadcast %cst_14 : f32 to vector<64x128xf32>
    %57 = arith.subf %56, %55 : vector<64x128xf32>
    %58 = math.log %57 : vector<64x128xf32>
    %cst_15 = arith.constant 0.000000e+00 : f32
    %59 = vector.broadcast %cst_15 : f32 to vector<64x128xf32>
    %60 = arith.subf %59, %58 : vector<64x128xf32>
    %cst_16 = arith.constant 1.000000e+00 : f32
    %61 = vector.broadcast %cst_16 : f32 to vector<64x128xf32>
    %62 = arith.mulf %17, %61 : vector<64x128xf32>
    %63 = arith.subf %60, %62 : vector<64x128xf32>
    %64 = tpu.bitcast %63 : vector<64x128xf32> -> vector<64x128xi32>
    %c0_i32_17 = arith.constant 0 : i32
    %65 = vector.broadcast %c0_i32_17 : i32 to vector<64x128xi32>
    %66 = arith.cmpi slt, %64, %65 : vector<64x128xi32>
    %c2147483647_i32 = arith.constant 2147483647 : i32
    %67 = vector.broadcast %c2147483647_i32 : i32 to vector<64x128xi32>
    %68 = arith.xori %64, %67 : vector<64x128xi32>
    %69 = arith.select %66, %68, %64 : vector<64x128xi1>, vector<64x128xi32>
    %c-128_i32 = arith.constant -128 : i32
    %70 = vector.broadcast %c-128_i32 : i32 to vector<64x128xi32>
    %71 = arith.andi %69, %70 : vector<64x128xi32>
    %c127_i32 = arith.constant 127 : i32
    %72 = vector.broadcast %c127_i32 : i32 to vector<64x128xi32>
    %73 = arith.subi %72, %24 : vector<64x128xi32>
    %74 = arith.ori %71, %73 : vector<64x128xi32>
    %cst_18 = arith.constant dense<-2147483648> : vector<64xi32>
    %75 = vector.multi_reduction <maxsi>, %74, %cst_18 [1] : vector<64x128xi32> to vector<64xi32>
    %76 = vector.shape_cast %75 : vector<64xi32> to vector<64x1xi32>
    %c127_i32_19 = arith.constant 127 : i32
    %77 = vector.broadcast %c127_i32_19 : i32 to vector<64x1xi32>
    %78 = arith.andi %76, %77 : vector<64x1xi32>
    %c127_i32_20 = arith.constant 127 : i32
    %79 = vector.broadcast %c127_i32_20 : i32 to vector<64x1xi32>
    %80 = arith.subi %79, %78 : vector<64x1xi32>
    %81 = vector.broadcast %80 : vector<64x1xi32> to vector<64x128xi32>
    %82 = arith.cmpi eq, %24, %81 : vector<64x128xi32>
    %83 = arith.extui %82 : vector<64x128xi1> to vector<64x128xi32>
    %84 = arith.sitofp %83 : vector<64x128xi32> to vector<64x128xf32>
    %85 = arith.truncf %84 : vector<64x128xf32> to vector<64x128xbf16>
    %c0_21 = arith.constant 0 : index
    %c0_22 = arith.constant 0 : index
    %86 = vector.load %arg5[%c0_21, %c0_22] : memref<64x128xbf16, #tpu.memory_space<vmem>>, vector<64x128xbf16>
    tpu.vector_store %arg5[%c0_21, %c0_22], %85 {strides = array<i32>} : memref<64x128xbf16, #tpu.memory_space<vmem>>, vector<64x128xbf16>,
    %c0_23 = arith.constant 0 : index
    %c0_24 = arith.constant 0 : index
    %87 = vector.load %arg10[%c0_23, %c0_24] : memref<1x128xf32, #tpu.memory_space<vmem>>, vector<1x128xf32>
    %88 = arith.mulf %84, %16 : vector<64x128xf32>
    %cst_25 = arith.constant dense<0.000000e+00> : vector<128xf32>
    %89 = vector.multi_reduction <add>, %88, %cst_25 [0] : vector<64x128xf32> to vector<128xf32>
    %90 = vector.shape_cast %89 : vector<128xf32> to vector<1x128xf32>
    %91 = arith.addf %87, %90 : vector<1x128xf32>
    %c0_26 = arith.constant 0 : index
    %c0_27 = arith.constant 0 : index
    %92 = vector.load %arg10[%c0_26, %c0_27] : memref<1x128xf32, #tpu.memory_space<vmem>>, vector<1x128xf32>
    tpu.vector_store %arg10[%c0_26, %c0_27], %91 {strides = array<i32>} : memref<1x128xf32, #tpu.memory_space<vmem>>, vector<1x128xf32>,
    %c0_28 = arith.constant 0 : index
    %c0_29 = arith.constant 0 : index
    %93 = vector.load %arg9[%c0_28, %c0_29] : memref<128x32xf32, #tpu.memory_space<vmem>>, vector<128x32xf32>
    %cst_30 = arith.constant dense<0.000000e+00> : vector<128x32xf32>
    %94 = tpu.matmul %84, %4, %cst_30 {dimension_numbers = #tpu.dot_dimension_numbers<[0], [0], [1], [1], [0, 1, 1, 1], [], []>, precision = #tpu.contract_precision<fp32>} : vector<64x128xf32>, vector<64x32xf32>, vector<128x32xf32> -> vector<128x32xf32>
    %95 = arith.addf %93, %94 : vector<128x32xf32>
    %c0_31 = arith.constant 0 : index
    %c0_32 = arith.constant 0 : index
    %96 = vector.load %arg9[%c0_31, %c0_32] : memref<128x32xf32, #tpu.memory_space<vmem>>, vector<128x32xf32>
    tpu.vector_store %arg9[%c0_31, %c0_32], %95 {strides = array<i32>} : memref<128x32xf32, #tpu.memory_space<vmem>>, vector<128x32xf32>,
    %c0_i32_33 = arith.constant 0 : i32
    %97 = arith.cmpi eq, %arg1, %c0_i32_33 : i32
    %98 = arith.extui %97 : i1 to i32
    %c0_i32_34 = arith.constant 0 : i32
    %99 = arith.cmpi ne, %98, %c0_i32_34 : i32
    scf.if %99 {
      %c0_35 = arith.constant 0 : index
      %c0_36 = arith.constant 0 : index
      %100 = vector.load %arg10[%c0_35, %c0_36] : memref<1x128xf32, #tpu.memory_space<vmem>>, vector<1x128xf32>
      %c0_37 = arith.constant 0 : index
      %c0_38 = arith.constant 0 : index
      %c0_39 = arith.constant 0 : index
      %101 = vector.load %arg6[%c0_37, %c0_38, %c0_39] : memref<1x1x128xf32, #tpu.memory_space<vmem>>, vector<1x1x128xf32>
      %102 = vector.shape_cast %101 : vector<1x1x128xf32> to vector<1x128xf32>
      %103 = vector.shape_cast %100 : vector<1x128xf32> to vector<1x1x128xf32>
      tpu.vector_store %arg6[%c0_37, %c0_38, %c0_39], %103 {strides = array<i32>} : memref<1x1x128xf32, #tpu.memory_space<vmem>>, vector<1x1x128xf32>,
      %c0_40 = arith.constant 0 : index
      %c0_41 = arith.constant 0 : index
      %104 = vector.load %arg9[%c0_40, %c0_41] : memref<128x32xf32, #tpu.memory_space<vmem>>, vector<128x32xf32>
      %c0_42 = arith.constant 0 : index
      %c0_43 = arith.constant 0 : index
      %c0_44 = arith.constant 0 : index
      %105 = vector.load %arg7[%c0_42, %c0_43, %c0_44] : memref<1x128x32xf32, #tpu.memory_space<vmem>>, vector<1x128x32xf32>
      %106 = vector.shape_cast %105 : vector<1x128x32xf32> to vector<128x32xf32>
      %107 = vector.shape_cast %104 : vector<128x32xf32> to vector<1x128x32xf32>
      tpu.vector_store %arg7[%c0_42, %c0_43, %c0_44], %107 {strides = array<i32>} : memref<1x128x32xf32, #tpu.memory_space<vmem>>, vector<1x128x32xf32>,
    } else {
    }
    return
  }
  func.func @transform_0(%arg0: i32, %arg1: i32, %arg2: memref<1xi32, #tpu.memory_space<smem>>) -> (i32, i32) {
    %c1_i32 = arith.constant 1 : i32
    %0 = arith.muli %arg0, %c1_i32 : i32
    %1 = arith.addi %0, %arg1 : i32
    %c0_i32 = arith.constant 0 : i32
    %c0_i32_0 = arith.constant 0 : i32
    return %1, %c0_i32 : i32, i32
  }
  func.func @transform_1(%arg0: i32, %arg1: i32, %arg2: memref<1xi32, #tpu.memory_space<smem>>) -> (i32, i32) {
    %c0_i32 = arith.constant 0 : i32
    %c0_i32_0 = arith.constant 0 : i32
    %c0_i32_1 = arith.constant 0 : i32
    return %c0_i32, %c0_i32_0 : i32, i32
  }
  func.func @transform_2(%arg0: i32, %arg1: i32, %arg2: memref<1xi32, #tpu.memory_space<smem>>) -> (i32, i32) {
    %c1_i32 = arith.constant 1 : i32
    %0 = arith.muli %arg0, %c1_i32 : i32
    %1 = arith.addi %0, %arg1 : i32
    %c0_i32 = arith.constant 0 : i32
    %c0_i32_0 = arith.constant 0 : i32
    return %1, %c0_i32 : i32, i32
  }
  func.func @transform_3(%arg0: i32, %arg1: i32, %arg2: memref<1xi32, #tpu.memory_space<smem>>) -> (i32, i32, i32) {
    %c0_i32 = arith.constant 0 : i32
    %c0_i32_0 = arith.constant 0 : i32
    %c0_i32_1 = arith.constant 0 : i32
    return %arg0, %c0_i32, %c0_i32_0 : i32, i32, i32
  }
  func.func @transform_4(%arg0: i32, %arg1: i32, %arg2: memref<1xi32, #tpu.memory_space<smem>>) -> (i32, i32, i32) {
    %c0_i32 = arith.constant 0 : i32
    %c0_i32_0 = arith.constant 0 : i32
    %c0_i32_1 = arith.constant 0 : i32
    return %arg0, %c0_i32, %c0_i32_0 : i32, i32, i32
  }
}

</mosaic_0001>

<llo_original>
// kernel: distance_gumbel_softmax_vq.1
$region0: #{distance_gumbel_softmax_vq.1}
  #allocation0 [shape = 'u32[]', space=smem, size = 0x4, offset = 0x4, fixed_abs, tag = 'smem constant byte address 0x4 - core index']
  #allocation1 [shape = 'u32[144,128]{1,0:T(1,128)}', space=vmem, size = 0x12000, scoped, tag = 'internal scratch']
  #allocation2 [shape = 'f32[1,128]{1,0:T(1,128)}', space=vmem, size = 0x200, scoped, tag = 'scratch operand']
  #allocation3 [shape = 'f32[128,32]{1,0:T(8,128)}', space=vmem, size = 0x10000, scoped, tag = 'scratch operand']
  #allocation4 [shape = 'f32[1,128]{1,0:T(1,128)}', space=vmem, size = 0x200, scoped, tag = 'scratch operand']
  #allocation5 [shape = 's32[1]{0}', space=sflag, size = 0x4, scoped, tag = 'scoped memory for distance_gumbel_softmax_vq.1']
  #allocation6 [shape = 's32[1]{0:T(128)S(6)}', space=smem, size = 0x200, scoped, tag = 'prefetched SMEM operand 0']
  %s0 = inlined_call_operand.<no memory space> [shape: s32[1], index: 0, kind: input, shape index: {}]
  %s1 = inlined_call_operand.vmem [shape: f32[128,32], index: 1, kind: input, shape index: {}]
  %s2 = inlined_call_operand.vmem [shape: f32[128,32], index: 2, kind: input, shape index: {}]
  %s3 = inlined_call_operand.hbm [shape: bf16[128,128], index: 3, kind: output, shape index: {0}]
  %s4 = inlined_call_operand.vmem [shape: f32[2,1,128], index: 4, kind: output, shape index: {1}]
  %s5 = inlined_call_operand.vmem [shape: f32[2,128,32], index: 5, kind: output, shape index: {2}]
  %6 = xla_tuple %s3, %s4, %s5
  %s7 = sld [smem:[#allocation0]]
  $region65: #{distance_gumbel_softmax_vq.1} parent=0
    _
  %s9 = ssub.s32 1, %s7
  %s10 = scalar_select 0, %s9, %s7
  %11 = sst [smem:[#allocation6]] %s0
  $region1: #{distance_gumbel_softmax_vq.1} parent=0
    #allocation7 [shape = 'u8[32768]{0}', space=vmem, size = 0x8000, scoped, tag = 'output window, operand 0']
    #allocation8 [shape = 's32[2]{0}', space=sflag, size = 0x8, scoped, tag = 'scoped memory for distance_gumbel_softmax_vq.1']
    %12 = vsyncpa [#allocation8], 0
    %s13 = scalar_lea.sflag [#allocation8], 1
    %14 = vsyncpa %s13, 0
    loop: start=0, step=1, limit=4
    $region2: #{distance_gumbel_softmax_vq.1} parent=1 // loop_pre_header
      _
    $region3: #{distance_gumbel_softmax_vq.1} parent=1 // loop_header
      %s16 = sphi 0, %s20
      %p17 = scmp.ge.s32.totalorder %s16, 4
      %s23 = sphi 0, %s35
      %s24 = sphi 0, %s31
      %s25 = sphi 0, %s23
      %s26 = sphi 0, %s24
      %s27 = sphi 0, %s25
      %s28 = sphi 0, %s26
      %s40 = sphi 0, %s42
      %s43 = sphi 0, %s40
      %s44 = sphi 0, %s43
      %s60 = sphi 0, %s44
      %s64 = sphi 0, %s64
      %s66 = sphi 0, %s64
      %s67 = sphi 0, %s66
      %s81 = sphi 0, %s67
      %s89 = sphi 0, %s91
      %s92 = sphi 0, %s89
      %s93 = sphi 0, %s92
      %s109 = sphi 0, %s93
      %s115 = sphi 0, %s117
      %s118 = sphi 0, %s115
      %s119 = sphi 0, %s118
      %s135 = sphi 0, %s119
      %s141 = sphi 0, %s143
      %s144 = sphi 0, %s141
      %s145 = sphi 0, %s144
      %s161 = sphi 0, %s145
    $region4: #{distance_gumbel_softmax_vq.1} parent=1 // loop_header_branch
      %19 = sbr.rel (%p17) target = $region8
    $region5: #{distance_gumbel_softmax_vq.1} parent=1 // loop_body
      %s21 = ssub.s32 %s16, 1
      %s22 = ssub.s32 %s16, 2
      %s29 = sadd.s32 1, %s24
      %p30 = scmp.ge.s32.totalorder %s29, 1
      %s31 = scalar_select %p30, 0, %s29
      %s32 = sadd.s32 1, %s23
      %s33 = scalar_select %p30, %s32, %s23
      %p34 = scmp.ge.s32.totalorder %s33, 2
      %s35 = scalar_select %p34, 0, %s33
      %s36 = sadd.s32 %s23, %s24
      %s37 = sadd.s32 %s35, %s31
      %s38 = ssub.s32 %s36, %s37
      %p39 = scmp.eq.s32.totalorder %s38, 0
      %s41 = sadd.s32 %s40, 1
      %s42 = scalar_select %p39, %s40, %s41
      %p45 = pneg %p39
      %p46 = scmp.eq.s32.totalorder %s16, 1
      %p47 = por %p45, %p46
      %p48 = scmp.ne.s32.totalorder %s40, %s43
      %p49 = scmp.eq.s32.totalorder %s16, 0
      %p50 = por %p48, %p49
      %p51 = scmp.ne.s32.totalorder %s40, %s43
      %p52 = scmp.eq.s32.totalorder %s21, 1
      %p53 = por %p51, %p52
      %p54 = scmp.ne.s32.totalorder %s43, %s44
      %p55 = scmp.eq.s32.totalorder %s21, 0
      %p56 = por %p54, %p55
      %p57 = scmp.ne.s32.totalorder %s43, %s44
      %p58 = scmp.eq.s32.totalorder %s22, 1
      %p59 = por %p57, %p58
      %p61 = scmp.ne.s32.totalorder %s44, %s60
      %p62 = scmp.eq.s32.totalorder %s22, 0
      %p63 = por %p61, %p62
      %s65 = sadd.s32 %s64, 1
      %p68 = scmp.eq.s32.totalorder %s16, 1
      %p69 = scmp.ne.s32.totalorder %s64, %s66
      %p70 = scmp.eq.s32.totalorder %s16, 0
      %p71 = por %p69, %p70
      %p72 = scmp.ne.s32.totalorder %s64, %s66
      %p73 = scmp.eq.s32.totalorder %s21, 1
      %p74 = por %p72, %p73
      %p75 = scmp.ne.s32.totalorder %s66, %s67
      %p76 = scmp.eq.s32.totalorder %s21, 0
      %p77 = por %p75, %p76
      %p78 = scmp.ne.s32.totalorder %s66, %s67
      %p79 = scmp.eq.s32.totalorder %s22, 1
      %p80 = por %p78, %p79
      %p82 = scmp.ne.s32.totalorder %s67, %s81
      %p83 = scmp.eq.s32.totalorder %s22, 0
      %p84 = por %p82, %p83
      %s85 = sadd.s32 %s23, %s24
      %s86 = sadd.s32 %s35, %s31
      %s87 = ssub.s32 %s85, %s86
      %p88 = scmp.eq.s32.totalorder %s87, 0
      %s90 = sadd.s32 %s89, 1
      %s91 = scalar_select %p88, %s89, %s90
      %p94 = pneg %p88
      %p95 = scmp.eq.s32.totalorder %s16, 1
      %p96 = por %p94, %p95
      %p97 = scmp.ne.s32.totalorder %s89, %s92
      %p98 = scmp.eq.s32.totalorder %s16, 0
      %p99 = por %p97, %p98
      %p100 = scmp.ne.s32.totalorder %s89, %s92
      %p101 = scmp.eq.s32.totalorder %s21, 1
      %p102 = por %p100, %p101
      %p103 = scmp.ne.s32.totalorder %s92, %s93
      %p104 = scmp.eq.s32.totalorder %s21, 0
      %p105 = por %p103, %p104
      %p106 = scmp.ne.s32.totalorder %s92, %s93
      %p107 = scmp.eq.s32.totalorder %s22, 1
      %p108 = por %p106, %p107
      %p110 = scmp.ne.s32.totalorder %s93, %s109
      %p111 = scmp.eq.s32.totalorder %s22, 0
      %p112 = por %p110, %p111
      %s113 = ssub.s32 %s23, %s35
      %p114 = scmp.eq.s32.totalorder %s113, 0
      %s116 = sadd.s32 %s115, 1
      %s117 = scalar_select %p114, %s115, %s116
      %p120 = pneg %p114
      %p121 = scmp.eq.s32.totalorder %s16, 1
      %p122 = por %p120, %p121
      %p123 = scmp.ne.s32.totalorder %s115, %s118
      %p124 = scmp.eq.s32.totalorder %s16, 0
      %p125 = por %p123, %p124
      %p126 = scmp.ne.s32.totalorder %s115, %s118
      %p127 = scmp.eq.s32.totalorder %s21, 1
      %p128 = por %p126, %p127
      %p129 = scmp.ne.s32.totalorder %s118, %s119
      %p130 = scmp.eq.s32.totalorder %s21, 0
      %p131 = por %p129, %p130
      %p132 = scmp.ne.s32.totalorder %s118, %s119
      %p133 = scmp.eq.s32.totalorder %s22, 1
      %p134 = por %p132, %p133
      %p136 = scmp.ne.s32.totalorder %s119, %s135
      %p137 = scmp.eq.s32.totalorder %s22, 0
      %p138 = por %p136, %p137
      %s139 = ssub.s32 %s23, %s35
      %p140 = scmp.eq.s32.totalorder %s139, 0
      %s142 = sadd.s32 %s141, 1
      %s143 = scalar_select %p140, %s141, %s142
      %p146 = pneg %p140
      %p147 = scmp.eq.s32.totalorder %s16, 1
      %p148 = por %p146, %p147
      %p149 = scmp.ne.s32.totalorder %s141, %s144
      %p150 = scmp.eq.s32.totalorder %s16, 0
      %p151 = por %p149, %p150
      %p152 = scmp.ne.s32.totalorder %s141, %s144
      %p153 = scmp.eq.s32.totalorder %s21, 1
      %p154 = por %p152, %p153
      %p155 = scmp.ne.s32.totalorder %s144, %s145
      %p156 = scmp.eq.s32.totalorder %s21, 0
      %p157 = por %p155, %p156
      %p158 = scmp.ne.s32.totalorder %s144, %s145
      %p159 = scmp.eq.s32.totalorder %s22, 1
      %p160 = por %p158, %p159
      %p162 = scmp.ne.s32.totalorder %s145, %s161
      %p163 = scmp.eq.s32.totalorder %s22, 0
      %p164 = por %p162, %p163
      %p165 = scmp.le.s32.totalorder 1, %s16
      %p166 = scmp.lt.s32.totalorder %s16, 3
      %p167 = pnand %p165, %p166
      %p168 = pneg %p167
      // Predicated region
      $region9: #{distance_gumbel_softmax_vq.1} parent=5 // pred_check
        _
      $region10: #{distance_gumbel_softmax_vq.1} parent=5 // pred_check_branch
        %170 = sbr.rel (%p167) target = $region12
      $region11: #{distance_gumbel_softmax_vq.1} parent=5 // pred_region
        %s171 = ssub.s32 %s16, 1
        // Predicated region
        $region13: #{distance_gumbel_softmax_vq.1} parent=11 // pred_check
          %p172 = pneg %p77
        $region14: #{distance_gumbel_softmax_vq.1} parent=11 // pred_check_branch
          %174 = sbr.rel (%p172) target = $region16
        $region15: #{distance_gumbel_softmax_vq.1} parent=11 // pred_region
          _
        $region16: #{distance_gumbel_softmax_vq.1} parent=11 // pred_fallthru
          _
      $region12: #{distance_gumbel_softmax_vq.1} parent=5 // pred_fallthru
        _
      %p175 = scmp.lt.s32.totalorder %s16, 2
      // Predicated region
      $region17: #{distance_gumbel_softmax_vq.1} parent=5 // pred_check
        %p176 = pneg %p175
      $region18: #{distance_gumbel_softmax_vq.1} parent=5 // pred_check_branch
        %178 = sbr.rel (%p176) target = $region20
      $region19: #{distance_gumbel_softmax_vq.1} parent=5 // pred_region
        // Predicated region
        $region21: #{distance_gumbel_softmax_vq.1} parent=19 // pred_check
          %p179 = pneg %p50
        $region22: #{distance_gumbel_softmax_vq.1} parent=19 // pred_check_branch
          %181 = sbr.rel (%p179) target = $region24
        $region23: #{distance_gumbel_softmax_vq.1} parent=19 // pred_region
          %s182 = sadd.s32 %s23, %s24
          %s183 = smul.u32 8, %s182
          %p184 = scmp.lt.s32.totalorder %s183, 15
          %s185 = scalar_select %p184, %s183, 15
          %s186 = smul.addr %s185, 8
          %s187 = scalar_lea.vmem %s1, %s186
          %s188 = sadd.s32 %s23, %s24
          %s189 = smul.u32 8, %s188
        $region24: #{distance_gumbel_softmax_vq.1} parent=19 // pred_fallthru
          _
      $region20: #{distance_gumbel_softmax_vq.1} parent=5 // pred_fallthru
        _
      %p190 = scmp.le.s32.totalorder 1, %s16
      %p191 = scmp.lt.s32.totalorder %s16, 3
      %p192 = pnand %p190, %p191
      %p193 = pneg %p192
      // Predicated region
      $region25: #{distance_gumbel_softmax_vq.1} parent=5 // pred_check
        _
      $region26: #{distance_gumbel_softmax_vq.1} parent=5 // pred_check_branch
        %195 = sbr.rel (%p192) target = $region28
      $region27: #{distance_gumbel_softmax_vq.1} parent=5 // pred_region
        %s196 = ssub.s32 %s16, 1
        %s197 = sadd.s32 %s25, %s26
        %s198 = smul.u32 8, %s197
        %p199 = scmp.lt.s32.totalorder %s198, 15
        %s200 = scalar_select %p199, %s198, 15
        %s201 = smul.addr %s200, 8
        %s202 = scalar_lea.vmem %s1, %s201
        %p203 = pneg %p56
        %p204 = pneg %p53
        %p205 = pneg %p77
        %p206 = pneg %p74
        %p207 = pneg %p105
        %p208 = pneg %p102
        %s209 = sand.u32 %s92, 1
        %s210 = scalar_lea.sflag [#allocation8], %s209
        %s211 = sand.u32 %s92, 1
        %s212 = smul.addr %s211, 32
        %s213 = scalar_lea.vmem [#allocation7], %s212
        %p214 = pneg %p131
        %p215 = pneg %p128
        %p216 = scmp.lt.s32.totalorder %s25, 1
        %s217 = scalar_select %p216, %s25, 1
        %s218 = scalar_lea.vmem %s4, %s217
        %p219 = pneg %p157
        %p220 = pneg %p154
        %p221 = scmp.lt.s32.totalorder %s25, 1
        %s222 = scalar_select %p221, %s25, 1
        %s223 = smul.addr %s222, 16
        %s224 = smul.addr %s223, 8
        %s225 = scalar_lea.vmem %s5, %s224
        %s226 = sadd.s32 %s25, %s26
        %s227 = smul.u32 8, %s226
        %p228 = scmp.lt.s32.totalorder %s227, 15
        %s229 = scalar_select %p228, %s227, 15
        %s230 = smul.addr %s229, 8
        %s231 = scalar_lea.vmem %s1, %s230
        %s232 = sadd.s32 %s25, %s26
        %s233 = smul.u32 8, %s232
        %s234 = sadd.s32 %s25, %s26
        %s235 = smul.u32 8, %s234
        %p236 = scmp.lt.s32.totalorder %s25, 1
        %s237 = scalar_select %p236, %s25, 1
        %s238 = scalar_lea.vmem %s4, %s237
        %p239 = scmp.lt.s32.totalorder %s25, 1
        %s240 = scalar_select %p239, %s25, 1
        %s241 = smul.addr %s240, 16
        %s242 = smul.addr %s241, 8
        %s243 = scalar_lea.vmem %s5, %s242
        %v244 = vld [vmem:[%s2] sm:$0xff]
        %v245 = vld [vmem:[%s2 + $0x8] sm:$0xff]
        %v246 = vld [vmem:[%s2 + $0x10] sm:$0xff]
        %v247 = vld [vmem:[%s2 + $0x18] sm:$0xff]
        %v248 = vld [vmem:[%s2 + $0x20] sm:$0xff]
        %v249 = vld [vmem:[%s2 + $0x28] sm:$0xff]
        %v250 = vld [vmem:[%s2 + $0x30] sm:$0xff]
        %v251 = vld [vmem:[%s2 + $0x38] sm:$0xff]
        %v252 = vld [vmem:[%s2 + $0x40] sm:$0xff]
        %v253 = vld [vmem:[%s2 + $0x48] sm:$0xff]
        %v254 = vld [vmem:[%s2 + $0x50] sm:$0xff]
        %v255 = vld [vmem:[%s2 + $0x58] sm:$0xff]
        %v256 = vld [vmem:[%s2 + $0x60] sm:$0xff]
        %v257 = vld [vmem:[%s2 + $0x68] sm:$0xff]
        %v258 = vld [vmem:[%s2 + $0x70] sm:$0xff]
        %v259 = vld [vmem:[%s2 + $0x78] sm:$0xff]
        %p260 = scmp.eq.s32.totalorder %s26, 0
        // Predicated region
        $region29: #{distance_gumbel_softmax_vq.1} parent=27 // pred_check
          %p261 = pneg %p260
        $region30: #{distance_gumbel_softmax_vq.1} parent=27 // pred_check_branch
          %263 = sbr.rel (%p261) target = $region32
        $region31: #{distance_gumbel_softmax_vq.1} parent=27 // pred_region
          %v264 = vmul.f32 %v244, %v244
          %v265 = vmul.f32 %v245, %v245
          %v266 = vmul.f32 %v246, %v246
          %v267 = vmul.f32 %v247, %v247
          %v268 = vmul.f32 %v248, %v248
          %v269 = vmul.f32 %v249, %v249
          %v270 = vmul.f32 %v250, %v250
          %v271 = vmul.f32 %v251, %v251
          %v272 = vmul.f32 %v252, %v252
          %v273 = vmul.f32 %v253, %v253
          %v274 = vmul.f32 %v254, %v254
          %v275 = vmul.f32 %v255, %v255
          %v276 = vmul.f32 %v256, %v256
          %v277 = vmul.f32 %v257, %v257
          %v278 = vmul.f32 %v258, %v258
          %v279 = vmul.f32 %v259, %v259
          %vm280 = vcmask 261120
          %v282 = vsel %vm280, 1.0, 0
          %v285 = vsel %vm280, %v264, 0
          %v288 = vsel %vm280, %v265, 0
          %v291 = vsel %vm280, %v266, 0
          %v294 = vsel %vm280, %v267, 0
          %v297 = vsel %vm280, %v268, 0
          %v300 = vsel %vm280, %v269, 0
          %v303 = vsel %vm280, %v270, 0
          %v306 = vsel %vm280, %v271, 0
          %v309 = vsel %vm280, %v272, 0
          %v312 = vsel %vm280, %v273, 0
          %v315 = vsel %vm280, %v274, 0
          %v318 = vsel %vm280, %v275, 0
          %v321 = vsel %vm280, %v276, 0
          %v324 = vsel %vm280, %v277, 0
          %v327 = vsel %vm280, %v278, 0
          %v330 = vsel %vm280, %v279, 0
          %332 = vmatprep.subr.mxu0 0.0
          %v333 = vand.u32 %v285, 4294901760
          %334 = vmatpush1.xpose.msra.mxu0 %v333
          %335 = vmatprep.subr.mxu0 0.0
          %v336 = vand.u32 %v288, 4294901760
          %337 = vmatpush1.xpose.msra.mxu0 %v336
          %338 = vmatprep.subr.mxu0 0.0
          %v339 = vand.u32 %v291, 4294901760
          %340 = vmatpush1.xpose.msra.mxu0 %v339
          %341 = vmatprep.subr.mxu0 0.0
          %v342 = vand.u32 %v294, 4294901760
          %343 = vmatpush1.xpose.msra.mxu0 %v342
          %344 = vmatprep.subr.mxu0 0.0
          %v345 = vand.u32 %v297, 4294901760
          %346 = vmatpush1.xpose.msra.mxu0 %v345
          %347 = vmatprep.subr.mxu0 0.0
          %v348 = vand.u32 %v300, 4294901760
          %349 = vmatpush1.xpose.msra.mxu0 %v348
          %350 = vmatprep.subr.mxu0 0.0
          %v351 = vand.u32 %v303, 4294901760
          %352 = vmatpush1.xpose.msra.mxu0 %v351
          %353 = vmatprep.subr.mxu0 0.0
          %v354 = vand.u32 %v306, 4294901760
          %355 = vmatpush1.xpose.msra.mxu0 %v354
          %356 = vmatprep.subr.mxu0 0.0
          %v357 = vand.u32 %v309, 4294901760
          %358 = vmatpush1.xpose.msra.mxu0 %v357
          %359 = vmatprep.subr.mxu0 0.0
          %v360 = vand.u32 %v312, 4294901760
          %361 = vmatpush1.xpose.msra.mxu0 %v360
          %362 = vmatprep.subr.mxu0 0.0
          %v363 = vand.u32 %v315, 4294901760
          %364 = vmatpush1.xpose.msra.mxu0 %v363
          %365 = vmatprep.subr.mxu0 0.0
          %v366 = vand.u32 %v318, 4294901760
          %367 = vmatpush1.xpose.msra.mxu0 %v366
          %368 = vmatprep.subr.mxu0 0.0
          %v369 = vand.u32 %v321, 4294901760
          %370 = vmatpush1.xpose.msra.mxu0 %v369
          %371 = vmatprep.subr.mxu0 0.0
          %v372 = vand.u32 %v324, 4294901760
          %373 = vmatpush1.xpose.msra.mxu0 %v372
          %374 = vmatprep.subr.mxu0 0.0
          %v375 = vand.u32 %v327, 4294901760
          %376 = vmatpush1.xpose.msra.mxu0 %v375
          %377 = vmatprep.subr.mxu0 0.0
          %v378 = vand.u32 %v330, 4294901760
          %379 = vmatpush1.xpose.msra.mxu0 %v378
          %380 = vmatprep.subr.mxu0 0.0
          %381 = vmatpush1.xpose.msra.mxu0 0.0
          %382 = vmatprep.subr.mxu0 0.0
          %383 = vmatpush1.xpose.msra.mxu0 0.0
          %384 = vmatprep.subr.mxu0 0.0
          %385 = vmatpush1.xpose.msra.mxu0 0.0
          %386 = vmatprep.subr.mxu0 0.0
          %387 = vmatpush1.xpose.msra.mxu0 0.0
          %388 = vmatprep.subr.mxu0 0.0
          %389 = vmatpush1.xpose.msra.mxu0 0.0
          %390 = vmatprep.subr.mxu0 0.0
          %391 = vmatpush1.xpose.msra.mxu0 0.0
          %392 = vmatprep.subr.mxu0 0.0
          %393 = vmatpush1.xpose.msra.mxu0 0.0
          %394 = vmatprep.subr.mxu0 0.0
          %395 = vmatpush1.xpose.msra.mxu0 0.0
          %396 = vmatprep.subr.mxu0 0.0
          %397 = vmatpush1.xpose.msra.mxu0 0.0
          %398 = vmatprep.subr.mxu0 0.0
          %399 = vmatpush1.xpose.msra.mxu0 0.0
          %400 = vmatprep.subr.mxu0 0.0
          %401 = vmatpush1.xpose.msra.mxu0 0.0
          %402 = vmatprep.subr.mxu0 0.0
          %403 = vmatpush1.xpose.msra.mxu0 0.0
          %404 = vmatprep.subr.mxu0 0.0
          %405 = vmatpush1.xpose.msra.mxu0 0.0
          %406 = vmatprep.subr.mxu0 0.0
          %407 = vmatpush1.xpose.msra.mxu0 0.0
          %408 = vmatprep.subr.mxu0 0.0
          %409 = vmatpush1.xpose.msra.mxu0 0.0
          %410 = vmatprep.subr.mxu0 0.0
          %411 = vmatpush1.xpose.msra.mxu0 0.0
          %412 = vmatprep.mubr.f32.mxu0 0.0
          %v413 = vand.u32 %v282, 4294901760
          %v414 = vsub.f32 %v282, %v413
          %v415 = vand.u32 %v414, 4294901760
          %v416 = vsub.f32 %v414, %v415
          %v417 = vand.u32 %v416, 4294901760
          %418 = vmatmul.mubr.f32.gmra.mrb[0].mxu0 %v417
          %v419 = vpop.f32.mrb[0].mxu0
          %v420 = vadd.f32 0.0, %v419
          %v421 = vpop.f32.mrb[0].mxu0
          %422 = vdwg.mxu0
          %423 = vmatprep.subr.mxu0 0.0
          %v424 = vand.u32 %v285, 4294901760
          %v425 = vsub.f32 %v285, %v424
          %v426 = vand.u32 %v425, 4294901760
          %v427 = vsub.f32 %v425, %v426
          %v428 = vand.u32 %v427, 4294901760
          %429 = vmatpush1.xpose.msra.mxu0 %v428
          %430 = vmatprep.subr.mxu0 0.0
          %v431 = vand.u32 %v288, 4294901760
          %v432 = vsub.f32 %v288, %v431
          %v433 = vand.u32 %v432, 4294901760
          %v434 = vsub.f32 %v432, %v433
          %v435 = vand.u32 %v434, 4294901760
          %436 = vmatpush1.xpose.msra.mxu0 %v435
          %437 = vmatprep.subr.mxu0 0.0
          %v438 = vand.u32 %v291, 4294901760
          %v439 = vsub.f32 %v291, %v438
          %v440 = vand.u32 %v439, 4294901760
          %v441 = vsub.f32 %v439, %v440
          %v442 = vand.u32 %v441, 4294901760
          %443 = vmatpush1.xpose.msra.mxu0 %v442
          %444 = vmatprep.subr.mxu0 0.0
          %v445 = vand.u32 %v294, 4294901760
          %v446 = vsub.f32 %v294, %v445
          %v447 = vand.u32 %v446, 4294901760
          %v448 = vsub.f32 %v446, %v447
          %v449 = vand.u32 %v448, 4294901760
          %450 = vmatpush1.xpose.msra.mxu0 %v449
          %451 = vmatprep.subr.mxu0 0.0
          %v452 = vand.u32 %v297, 4294901760
          %v453 = vsub.f32 %v297, %v452
          %v454 = vand.u32 %v453, 4294901760
          %v455 = vsub.f32 %v453, %v454
          %v456 = vand.u32 %v455, 4294901760
          %457 = vmatpush1.xpose.msra.mxu0 %v456
          %458 = vmatprep.subr.mxu0 0.0
          %v459 = vand.u32 %v300, 4294901760
          %v460 = vsub.f32 %v300, %v459
          %v461 = vand.u32 %v460, 4294901760
          %v462 = vsub.f32 %v460, %v461
          %v463 = vand.u32 %v462, 4294901760
          %464 = vmatpush1.xpose.msra.mxu0 %v463
          %465 = vmatprep.subr.mxu0 0.0
          %v466 = vand.u32 %v303, 4294901760
          %v467 = vsub.f32 %v303, %v466
          %v468 = vand.u32 %v467, 4294901760
          %v469 = vsub.f32 %v467, %v468
          %v470 = vand.u32 %v469, 4294901760
          %471 = vmatpush1.xpose.msra.mxu0 %v470
          %472 = vmatprep.subr.mxu0 0.0
          %v473 = vand.u32 %v306, 4294901760
          %v474 = vsub.f32 %v306, %v473
          %v475 = vand.u32 %v474, 4294901760
          %v476 = vsub.f32 %v474, %v475
          %v477 = vand.u32 %v476, 4294901760
          %478 = vmatpush1.xpose.msra.mxu0 %v477
          %479 = vmatprep.subr.mxu0 0.0
          %v480 = vand.u32 %v309, 4294901760
          %v481 = vsub.f32 %v309, %v480
          %v482 = vand.u32 %v481, 4294901760
          %v483 = vsub.f32 %v481, %v482
          %v484 = vand.u32 %v483, 4294901760
          %485 = vmatpush1.xpose.msra.mxu0 %v484
          %486 = vmatprep.subr.mxu0 0.0
          %v487 = vand.u32 %v312, 4294901760
          %v488 = vsub.f32 %v312, %v487
          %v489 = vand.u32 %v488, 4294901760
          %v490 = vsub.f32 %v488, %v489
          %v491 = vand.u32 %v490, 4294901760
          %492 = vmatpush1.xpose.msra.mxu0 %v491
          %493 = vmatprep.subr.mxu0 0.0
          %v494 = vand.u32 %v315, 4294901760
          %v495 = vsub.f32 %v315, %v494
          %v496 = vand.u32 %v495, 4294901760
          %v497 = vsub.f32 %v495, %v496
          %v498 = vand.u32 %v497, 4294901760
          %499 = vmatpush1.xpose.msra.mxu0 %v498
          %500 = vmatprep.subr.mxu0 0.0
          %v501 = vand.u32 %v318, 4294901760
          %v502 = vsub.f32 %v318, %v501
          %v503 = vand.u32 %v502, 4294901760
          %v504 = vsub.f32 %v502, %v503
          %v505 = vand.u32 %v504, 4294901760
          %506 = vmatpush1.xpose.msra.mxu0 %v505
          %507 = vmatprep.subr.mxu0 0.0
          %v508 = vand.u32 %v321, 4294901760
          %v509 = vsub.f32 %v321, %v508
          %v510 = vand.u32 %v509, 4294901760
          %v511 = vsub.f32 %v509, %v510
          %v512 = vand.u32 %v511, 4294901760
          %513 = vmatpush1.xpose.msra.mxu0 %v512
          %514 = vmatprep.subr.mxu0 0.0
          %v515 = vand.u32 %v324, 4294901760
          %v516 = vsub.f32 %v324, %v515
          %v517 = vand.u32 %v516, 4294901760
          %v518 = vsub.f32 %v516, %v517
          %v519 = vand.u32 %v518, 4294901760
          %520 = vmatpush1.xpose.msra.mxu0 %v519
          %521 = vmatprep.subr.mxu0 0.0
          %v522 = vand.u32 %v327, 4294901760
          %v523 = vsub.f32 %v327, %v522
          %v524 = vand.u32 %v523, 4294901760
          %v525 = vsub.f32 %v523, %v524
          %v526 = vand.u32 %v525, 4294901760
          %527 = vmatpush1.xpose.msra.mxu0 %v526
          %528 = vmatprep.subr.mxu0 0.0
          %v529 = vand.u32 %v330, 4294901760
          %v530 = vsub.f32 %v330, %v529
          %v531 = vand.u32 %v530, 4294901760
          %v532 = vsub.f32 %v530, %v531
          %v533 = vand.u32 %v532, 4294901760
          %534 = vmatpush1.xpose.msra.mxu0 %v533
          %535 = vmatprep.subr.mxu0 0.0
          %536 = vmatpush1.xpose.msra.mxu0 0.0
          %537 = vmatprep.subr.mxu0 0.0
          %538 = vmatpush1.xpose.msra.mxu0 0.0
          %539 = vmatprep.subr.mxu0 0.0
          %540 = vmatpush1.xpose.msra.mxu0 0.0
          %541 = vmatprep.subr.mxu0 0.0
          %542 = vmatpush1.xpose.msra.mxu0 0.0
          %543 = vmatprep.subr.mxu0 0.0
          %544 = vmatpush1.xpose.msra.mxu0 0.0
          %545 = vmatprep.subr.mxu0 0.0
          %546 = vmatpush1.xpose.msra.mxu0 0.0
          %547 = vmatprep.subr.mxu0 0.0
          %548 = vmatpush1.xpose.msra.mxu0 0.0
          %549 = vmatprep.subr.mxu0 0.0
          %550 = vmatpush1.xpose.msra.mxu0 0.0
          %551 = vmatprep.subr.mxu0 0.0
          %552 = vmatpush1.xpose.msra.mxu0 0.0
          %553 = vmatprep.subr.mxu0 0.0
          %554 = vmatpush1.xpose.msra.mxu0 0.0
          %555 = vmatprep.subr.mxu0 0.0
          %556 = vmatpush1.xpose.msra.mxu0 0.0
          %557 = vmatprep.subr.mxu0 0.0
          %558 = vmatpush1.xpose.msra.mxu0 0.0
          %559 = vmatprep.subr.mxu0 0.0
          %560 = vmatpush1.xpose.msra.mxu0 0.0
          %561 = vmatprep.subr.mxu0 0.0
          %562 = vmatpush1.xpose.msra.mxu0 0.0
          %563 = vmatprep.subr.mxu0 0.0
          %564 = vmatpush1.xpose.msra.mxu0 0.0
          %565 = vmatprep.subr.mxu0 0.0
          %566 = vmatpush1.xpose.msra.mxu0 0.0
          %567 = vmatprep.mubr.f32.mxu0 0.0
          %v568 = vand.u32 %v282, 4294901760
          %569 = vmatmul.mubr.f32.gmra.mrb[0].mxu0 %v568
          %v570 = vpop.f32.mrb[0].mxu0
          %v571 = vadd.f32 %v420, %v570
          %v572 = vpop.f32.mrb[0].mxu0
          %573 = vdwg.mxu0
          %574 = vmatprep.subr.mxu0 0.0
          %v575 = vand.u32 %v285, 4294901760
          %v576 = vsub.f32 %v285, %v575
          %577 = vmatpush1.xpose.msra.mxu0 %v576
          %578 = vmatprep.subr.mxu0 0.0
          %v579 = vand.u32 %v288, 4294901760
          %v580 = vsub.f32 %v288, %v579
          %581 = vmatpush1.xpose.msra.mxu0 %v580
          %582 = vmatprep.subr.mxu0 0.0
          %v583 = vand.u32 %v291, 4294901760
          %v584 = vsub.f32 %v291, %v583
          %585 = vmatpush1.xpose.msra.mxu0 %v584
          %586 = vmatprep.subr.mxu0 0.0
          %v587 = vand.u32 %v294, 4294901760
          %v588 = vsub.f32 %v294, %v587
          %589 = vmatpush1.xpose.msra.mxu0 %v588
          %590 = vmatprep.subr.mxu0 0.0
          %v591 = vand.u32 %v297, 4294901760
          %v592 = vsub.f32 %v297, %v591
          %593 = vmatpush1.xpose.msra.mxu0 %v592
          %594 = vmatprep.subr.mxu0 0.0
          %v595 = vand.u32 %v300, 4294901760
          %v596 = vsub.f32 %v300, %v595
          %597 = vmatpush1.xpose.msra.mxu0 %v596
          %598 = vmatprep.subr.mxu0 0.0
          %v599 = vand.u32 %v303, 4294901760
          %v600 = vsub.f32 %v303, %v599
          %601 = vmatpush1.xpose.msra.mxu0 %v600
          %602 = vmatprep.subr.mxu0 0.0
          %v603 = vand.u32 %v306, 4294901760
          %v604 = vsub.f32 %v306, %v603
          %605 = vmatpush1.xpose.msra.mxu0 %v604
          %606 = vmatprep.subr.mxu0 0.0
          %v607 = vand.u32 %v309, 4294901760
          %v608 = vsub.f32 %v309, %v607
          %609 = vmatpush1.xpose.msra.mxu0 %v608
          %610 = vmatprep.subr.mxu0 0.0
          %v611 = vand.u32 %v312, 4294901760
          %v612 = vsub.f32 %v312, %v611
          %613 = vmatpush1.xpose.msra.mxu0 %v612
          %614 = vmatprep.subr.mxu0 0.0
          %v615 = vand.u32 %v315, 4294901760
          %v616 = vsub.f32 %v315, %v615
          %617 = vmatpush1.xpose.msra.mxu0 %v616
          %618 = vmatprep.subr.mxu0 0.0
          %v619 = vand.u32 %v318, 4294901760
          %v620 = vsub.f32 %v318, %v619
          %621 = vmatpush1.xpose.msra.mxu0 %v620
          %622 = vmatprep.subr.mxu0 0.0
          %v623 = vand.u32 %v321, 4294901760
          %v624 = vsub.f32 %v321, %v623
          %625 = vmatpush1.xpose.msra.mxu0 %v624
          %626 = vmatprep.subr.mxu0 0.0
          %v627 = vand.u32 %v324, 4294901760
          %v628 = vsub.f32 %v324, %v627
          %629 = vmatpush1.xpose.msra.mxu0 %v628
          %630 = vmatprep.subr.mxu0 0.0
          %v631 = vand.u32 %v327, 4294901760
          %v632 = vsub.f32 %v327, %v631
          %633 = vmatpush1.xpose.msra.mxu0 %v632
          %634 = vmatprep.subr.mxu0 0.0
          %v635 = vand.u32 %v330, 4294901760
          %v636 = vsub.f32 %v330, %v635
          %637 = vmatpush1.xpose.msra.mxu0 %v636
          %638 = vmatprep.subr.mxu0 0.0
          %639 = vmatpush1.xpose.msra.mxu0 0.0
          %640 = vmatprep.subr.mxu0 0.0
          %641 = vmatpush1.xpose.msra.mxu0 0.0
          %642 = vmatprep.subr.mxu0 0.0
          %643 = vmatpush1.xpose.msra.mxu0 0.0
          %644 = vmatprep.subr.mxu0 0.0
          %645 = vmatpush1.xpose.msra.mxu0 0.0
          %646 = vmatprep.subr.mxu0 0.0
          %647 = vmatpush1.xpose.msra.mxu0 0.0
          %648 = vmatprep.subr.mxu0 0.0
          %649 = vmatpush1.xpose.msra.mxu0 0.0
          %650 = vmatprep.subr.mxu0 0.0
          %651 = vmatpush1.xpose.msra.mxu0 0.0
          %652 = vmatprep.subr.mxu0 0.0
          %653 = vmatpush1.xpose.msra.mxu0 0.0
          %654 = vmatprep.subr.mxu0 0.0
          %655 = vmatpush1.xpose.msra.mxu0 0.0
          %656 = vmatprep.subr.mxu0 0.0
          %657 = vmatpush1.xpose.msra.mxu0 0.0
          %658 = vmatprep.subr.mxu0 0.0
          %659 = vmatpush1.xpose.msra.mxu0 0.0
          %660 = vmatprep.subr.mxu0 0.0
          %661 = vmatpush1.xpose.msra.mxu0 0.0
          %662 = vmatprep.subr.mxu0 0.0
          %663 = vmatpush1.xpose.msra.mxu0 0.0
          %664 = vmatprep.subr.mxu0 0.0
          %665 = vmatpush1.xpose.msra.mxu0 0.0
          %666 = vmatprep.subr.mxu0 0.0
          %667 = vmatpush1.xpose.msra.mxu0 0.0
          %668 = vmatprep.subr.mxu0 0.0
          %669 = vmatpush1.xpose.msra.mxu0 0.0
          %670 = vmatprep.mubr.f32.mxu0 0.0
          %v671 = vand.u32 %v282, 4294901760
          %v672 = vsub.f32 %v282, %v671
          %673 = vmatmul.mubr.f32.gmra.mrb[0].mxu0 %v672
          %v674 = vpop.f32.mrb[0].mxu0
          %v675 = vadd.f32 %v571, %v674
          %v676 = vpop.f32.mrb[0].mxu0
          %677 = vdwg.mxu0
          %678 = vmatprep.subr.mxu0 0.0
          %v679 = vand.u32 %v285, 4294901760
          %680 = vmatpush1.xpose.msra.mxu0 %v679
          %681 = vmatprep.subr.mxu0 0.0
          %v682 = vand.u32 %v288, 4294901760
          %683 = vmatpush1.xpose.msra.mxu0 %v682
          %684 = vmatprep.subr.mxu0 0.0
          %v685 = vand.u32 %v291, 4294901760
          %686 = vmatpush1.xpose.msra.mxu0 %v685
          %687 = vmatprep.subr.mxu0 0.0
          %v688 = vand.u32 %v294, 4294901760
          %689 = vmatpush1.xpose.msra.mxu0 %v688
          %690 = vmatprep.subr.mxu0 0.0
          %v691 = vand.u32 %v297, 4294901760
          %692 = vmatpush1.xpose.msra.mxu0 %v691
          %693 = vmatprep.subr.mxu0 0.0
          %v694 = vand.u32 %v300, 4294901760
          %695 = vmatpush1.xpose.msra.mxu0 %v694
          %696 = vmatprep.subr.mxu0 0.0
          %v697 = vand.u32 %v303, 4294901760
          %698 = vmatpush1.xpose.msra.mxu0 %v697
          %699 = vmatprep.subr.mxu0 0.0
          %v700 = vand.u32 %v306, 4294901760
          %701 = vmatpush1.xpose.msra.mxu0 %v700
          %702 = vmatprep.subr.mxu0 0.0
          %v703 = vand.u32 %v309, 4294901760
          %704 = vmatpush1.xpose.msra.mxu0 %v703
          %705 = vmatprep.subr.mxu0 0.0
          %v706 = vand.u32 %v312, 4294901760
          %707 = vmatpush1.xpose.msra.mxu0 %v706
          %708 = vmatprep.subr.mxu0 0.0
          %v709 = vand.u32 %v315, 4294901760
          %710 = vmatpush1.xpose.msra.mxu0 %v709
          %711 = vmatprep.subr.mxu0 0.0
          %v712 = vand.u32 %v318, 4294901760
          %713 = vmatpush1.xpose.msra.mxu0 %v712
          %714 = vmatprep.subr.mxu0 0.0
          %v715 = vand.u32 %v321, 4294901760
          %716 = vmatpush1.xpose.msra.mxu0 %v715
          %717 = vmatprep.subr.mxu0 0.0
          %v718 = vand.u32 %v324, 4294901760
          %719 = vmatpush1.xpose.msra.mxu0 %v718
          %720 = vmatprep.subr.mxu0 0.0
          %v721 = vand.u32 %v327, 4294901760
          %722 = vmatpush1.xpose.msra.mxu0 %v721
          %723 = vmatprep.subr.mxu0 0.0
          %v724 = vand.u32 %v330, 4294901760
          %725 = vmatpush1.xpose.msra.mxu0 %v724
          %726 = vmatprep.subr.mxu0 0.0
          %727 = vmatpush1.xpose.msra.mxu0 0.0
          %728 = vmatprep.subr.mxu0 0.0
          %729 = vmatpush1.xpose.msra.mxu0 0.0
          %730 = vmatprep.subr.mxu0 0.0
          %731 = vmatpush1.xpose.msra.mxu0 0.0
          %732 = vmatprep.subr.mxu0 0.0
          %733 = vmatpush1.xpose.msra.mxu0 0.0
          %734 = vmatprep.subr.mxu0 0.0
          %735 = vmatpush1.xpose.msra.mxu0 0.0
          %736 = vmatprep.subr.mxu0 0.0
          %737 = vmatpush1.xpose.msra.mxu0 0.0
          %738 = vmatprep.subr.mxu0 0.0
          %739 = vmatpush1.xpose.msra.mxu0 0.0
          %740 = vmatprep.subr.mxu0 0.0
          %741 = vmatpush1.xpose.msra.mxu0 0.0
          %742 = vmatprep.subr.mxu0 0.0
          %743 = vmatpush1.xpose.msra.mxu0 0.0
          %744 = vmatprep.subr.mxu0 0.0
          %745 = vmatpush1.xpose.msra.mxu0 0.0
          %746 = vmatprep.subr.mxu0 0.0
          %747 = vmatpush1.xpose.msra.mxu0 0.0
          %748 = vmatprep.subr.mxu0 0.0
          %749 = vmatpush1.xpose.msra.mxu0 0.0
          %750 = vmatprep.subr.mxu0 0.0
          %751 = vmatpush1.xpose.msra.mxu0 0.0
          %752 = vmatprep.subr.mxu0 0.0
          %753 = vmatpush1.xpose.msra.mxu0 0.0
          %754 = vmatprep.subr.mxu0 0.0
          %755 = vmatpush1.xpose.msra.mxu0 0.0
          %756 = vmatprep.subr.mxu0 0.0
          %757 = vmatpush1.xpose.msra.mxu0 0.0
          %758 = vmatprep.mubr.f32.mxu0 0.0
          %v759 = vand.u32 %v282, 4294901760
          %v760 = vsub.f32 %v282, %v759
          %v761 = vand.u32 %v760, 4294901760
          %762 = vmatmul.mubr.f32.gmra.mrb[0].mxu0 %v761
          %v763 = vpop.f32.mrb[0].mxu0
          %v764 = vadd.f32 %v675, %v763
          %v765 = vpop.f32.mrb[0].mxu0
          %766 = vdwg.mxu0
          %767 = vmatprep.subr.mxu0 0.0
          %v768 = vand.u32 %v285, 4294901760
          %v769 = vsub.f32 %v285, %v768
          %v770 = vand.u32 %v769, 4294901760
          %771 = vmatpush1.xpose.msra.mxu0 %v770
          %772 = vmatprep.subr.mxu0 0.0
          %v773 = vand.u32 %v288, 4294901760
          %v774 = vsub.f32 %v288, %v773
          %v775 = vand.u32 %v774, 4294901760
          %776 = vmatpush1.xpose.msra.mxu0 %v775
          %777 = vmatprep.subr.mxu0 0.0
          %v778 = vand.u32 %v291, 4294901760
          %v779 = vsub.f32 %v291, %v778
          %v780 = vand.u32 %v779, 4294901760
          %781 = vmatpush1.xpose.msra.mxu0 %v780
          %782 = vmatprep.subr.mxu0 0.0
          %v783 = vand.u32 %v294, 4294901760
          %v784 = vsub.f32 %v294, %v783
          %v785 = vand.u32 %v784, 4294901760
          %786 = vmatpush1.xpose.msra.mxu0 %v785
          %787 = vmatprep.subr.mxu0 0.0
          %v788 = vand.u32 %v297, 4294901760
          %v789 = vsub.f32 %v297, %v788
          %v790 = vand.u32 %v789, 4294901760
          %791 = vmatpush1.xpose.msra.mxu0 %v790
          %792 = vmatprep.subr.mxu0 0.0
          %v793 = vand.u32 %v300, 4294901760
          %v794 = vsub.f32 %v300, %v793
          %v795 = vand.u32 %v794, 4294901760
          %796 = vmatpush1.xpose.msra.mxu0 %v795
          %797 = vmatprep.subr.mxu0 0.0
          %v798 = vand.u32 %v303, 4294901760
          %v799 = vsub.f32 %v303, %v798
          %v800 = vand.u32 %v799, 4294901760
          %801 = vmatpush1.xpose.msra.mxu0 %v800
          %802 = vmatprep.subr.mxu0 0.0
          %v803 = vand.u32 %v306, 4294901760
          %v804 = vsub.f32 %v306, %v803
          %v805 = vand.u32 %v804, 4294901760
          %806 = vmatpush1.xpose.msra.mxu0 %v805
          %807 = vmatprep.subr.mxu0 0.0
          %v808 = vand.u32 %v309, 4294901760
          %v809 = vsub.f32 %v309, %v808
          %v810 = vand.u32 %v809, 4294901760
          %811 = vmatpush1.xpose.msra.mxu0 %v810
          %812 = vmatprep.subr.mxu0 0.0
          %v813 = vand.u32 %v312, 4294901760
          %v814 = vsub.f32 %v312, %v813
          %v815 = vand.u32 %v814, 4294901760
          %816 = vmatpush1.xpose.msra.mxu0 %v815
          %817 = vmatprep.subr.mxu0 0.0
          %v818 = vand.u32 %v315, 4294901760
          %v819 = vsub.f32 %v315, %v818
          %v820 = vand.u32 %v819, 4294901760
          %821 = vmatpush1.xpose.msra.mxu0 %v820
          %822 = vmatprep.subr.mxu0 0.0
          %v823 = vand.u32 %v318, 4294901760
          %v824 = vsub.f32 %v318, %v823
          %v825 = vand.u32 %v824, 4294901760
          %826 = vmatpush1.xpose.msra.mxu0 %v825
          %827 = vmatprep.subr.mxu0 0.0
          %v828 = vand.u32 %v321, 4294901760
          %v829 = vsub.f32 %v321, %v828
          %v830 = vand.u32 %v829, 4294901760
          %831 = vmatpush1.xpose.msra.mxu0 %v830
          %832 = vmatprep.subr.mxu0 0.0
          %v833 = vand.u32 %v324, 4294901760
          %v834 = vsub.f32 %v324, %v833
          %v835 = vand.u32 %v834, 4294901760
          %836 = vmatpush1.xpose.msra.mxu0 %v835
          %837 = vmatprep.subr.mxu0 0.0
          %v838 = vand.u32 %v327, 4294901760
          %v839 = vsub.f32 %v327, %v838
          %v840 = vand.u32 %v839, 4294901760
          %841 = vmatpush1.xpose.msra.mxu0 %v840
          %842 = vmatprep.subr.mxu0 0.0
          %v843 = vand.u32 %v330, 4294901760
          %v844 = vsub.f32 %v330, %v843
          %v845 = vand.u32 %v844, 4294901760
          %846 = vmatpush1.xpose.msra.mxu0 %v845
          %847 = vmatprep.subr.mxu0 0.0
          %848 = vmatpush1.xpose.msra.mxu0 0.0
          %849 = vmatprep.subr.mxu0 0.0
          %850 = vmatpush1.xpose.msra.mxu0 0.0
          %851 = vmatprep.subr.mxu0 0.0
          %852 = vmatpush1.xpose.msra.mxu0 0.0
          %853 = vmatprep.subr.mxu0 0.0
          %854 = vmatpush1.xpose.msra.mxu0 0.0
          %855 = vmatprep.subr.mxu0 0.0
          %856 = vmatpush1.xpose.msra.mxu0 0.0
          %857 = vmatprep.subr.mxu0 0.0
          %858 = vmatpush1.xpose.msra.mxu0 0.0
          %859 = vmatprep.subr.mxu0 0.0
          %860 = vmatpush1.xpose.msra.mxu0 0.0
          %861 = vmatprep.subr.mxu0 0.0
          %862 = vmatpush1.xpose.msra.mxu0 0.0
          %863 = vmatprep.subr.mxu0 0.0
          %864 = vmatpush1.xpose.msra.mxu0 0.0
          %865 = vmatprep.subr.mxu0 0.0
          %866 = vmatpush1.xpose.msra.mxu0 0.0
          %867 = vmatprep.subr.mxu0 0.0
          %868 = vmatpush1.xpose.msra.mxu0 0.0
          %869 = vmatprep.subr.mxu0 0.0
          %870 = vmatpush1.xpose.msra.mxu0 0.0
          %871 = vmatprep.subr.mxu0 0.0
          %872 = vmatpush1.xpose.msra.mxu0 0.0
          %873 = vmatprep.subr.mxu0 0.0
          %874 = vmatpush1.xpose.msra.mxu0 0.0
          %875 = vmatprep.subr.mxu0 0.0
          %876 = vmatpush1.xpose.msra.mxu0 0.0
          %877 = vmatprep.subr.mxu0 0.0
          %878 = vmatpush1.xpose.msra.mxu0 0.0
          %879 = vmatprep.mubr.f32.mxu0 0.0
          %v880 = vand.u32 %v282, 4294901760
          %881 = vmatmul.mubr.f32.gmra.mrb[0].mxu0 %v880
          %v882 = vpop.f32.mrb[0].mxu0
          %v883 = vadd.f32 %v764, %v882
          %v884 = vpop.f32.mrb[0].mxu0
          %885 = vdwg.mxu0
          %886 = vmatprep.subr.mxu0 0.0
          %v887 = vand.u32 %v285, 4294901760
          %888 = vmatpush1.xpose.msra.mxu0 %v887
          %889 = vmatprep.subr.mxu0 0.0
          %v890 = vand.u32 %v288, 4294901760
          %891 = vmatpush1.xpose.msra.mxu0 %v890
          %892 = vmatprep.subr.mxu0 0.0
          %v893 = vand.u32 %v291, 4294901760
          %894 = vmatpush1.xpose.msra.mxu0 %v893
          %895 = vmatprep.subr.mxu0 0.0
          %v896 = vand.u32 %v294, 4294901760
          %897 = vmatpush1.xpose.msra.mxu0 %v896
          %898 = vmatprep.subr.mxu0 0.0
          %v899 = vand.u32 %v297, 4294901760
          %900 = vmatpush1.xpose.msra.mxu0 %v899
          %901 = vmatprep.subr.mxu0 0.0
          %v902 = vand.u32 %v300, 4294901760
          %903 = vmatpush1.xpose.msra.mxu0 %v902
          %904 = vmatprep.subr.mxu0 0.0
          %v905 = vand.u32 %v303, 4294901760
          %906 = vmatpush1.xpose.msra.mxu0 %v905
          %907 = vmatprep.subr.mxu0 0.0
          %v908 = vand.u32 %v306, 4294901760
          %909 = vmatpush1.xpose.msra.mxu0 %v908
          %910 = vmatprep.subr.mxu0 0.0
          %v911 = vand.u32 %v309, 4294901760
          %912 = vmatpush1.xpose.msra.mxu0 %v911
          %913 = vmatprep.subr.mxu0 0.0
          %v914 = vand.u32 %v312, 4294901760
          %915 = vmatpush1.xpose.msra.mxu0 %v914
          %916 = vmatprep.subr.mxu0 0.0
          %v917 = vand.u32 %v315, 4294901760
          %918 = vmatpush1.xpose.msra.mxu0 %v917
          %919 = vmatprep.subr.mxu0 0.0
          %v920 = vand.u32 %v318, 4294901760
          %921 = vmatpush1.xpose.msra.mxu0 %v920
          %922 = vmatprep.subr.mxu0 0.0
          %v923 = vand.u32 %v321, 4294901760
          %924 = vmatpush1.xpose.msra.mxu0 %v923
          %925 = vmatprep.subr.mxu0 0.0
          %v926 = vand.u32 %v324, 4294901760
          %927 = vmatpush1.xpose.msra.mxu0 %v926
          %928 = vmatprep.subr.mxu0 0.0
          %v929 = vand.u32 %v327, 4294901760
          %930 = vmatpush1.xpose.msra.mxu0 %v929
          %931 = vmatprep.subr.mxu0 0.0
          %v932 = vand.u32 %v330, 4294901760
          %933 = vmatpush1.xpose.msra.mxu0 %v932
          %934 = vmatprep.subr.mxu0 0.0
          %935 = vmatpush1.xpose.msra.mxu0 0.0
          %936 = vmatprep.subr.mxu0 0.0
          %937 = vmatpush1.xpose.msra.mxu0 0.0
          %938 = vmatprep.subr.mxu0 0.0
          %939 = vmatpush1.xpose.msra.mxu0 0.0
          %940 = vmatprep.subr.mxu0 0.0
          %941 = vmatpush1.xpose.msra.mxu0 0.0
          %942 = vmatprep.subr.mxu0 0.0
          %943 = vmatpush1.xpose.msra.mxu0 0.0
          %944 = vmatprep.subr.mxu0 0.0
          %945 = vmatpush1.xpose.msra.mxu0 0.0
          %946 = vmatprep.subr.mxu0 0.0
          %947 = vmatpush1.xpose.msra.mxu0 0.0
          %948 = vmatprep.subr.mxu0 0.0
          %949 = vmatpush1.xpose.msra.mxu0 0.0
          %950 = vmatprep.subr.mxu0 0.0
          %951 = vmatpush1.xpose.msra.mxu0 0.0
          %952 = vmatprep.subr.mxu0 0.0
          %953 = vmatpush1.xpose.msra.mxu0 0.0
          %954 = vmatprep.subr.mxu0 0.0
          %955 = vmatpush1.xpose.msra.mxu0 0.0
          %956 = vmatprep.subr.mxu0 0.0
          %957 = vmatpush1.xpose.msra.mxu0 0.0
          %958 = vmatprep.subr.mxu0 0.0
          %959 = vmatpush1.xpose.msra.mxu0 0.0
          %960 = vmatprep.subr.mxu0 0.0
          %961 = vmatpush1.xpose.msra.mxu0 0.0
          %962 = vmatprep.subr.mxu0 0.0
          %963 = vmatpush1.xpose.msra.mxu0 0.0
          %964 = vmatprep.subr.mxu0 0.0
          %965 = vmatpush1.xpose.msra.mxu0 0.0
          %966 = vmatprep.mubr.f32.mxu0 0.0
          %v967 = vand.u32 %v282, 4294901760
          %968 = vmatmul.mubr.f32.gmra.mrb[0].mxu0 %v967
          %v969 = vpop.f32.mrb[0].mxu0
          %v970 = vadd.f32 %v883, %v969
          %v971 = vpop.f32.mrb[0].mxu0
          %972 = vdwg.mxu0
          %v973 = vlaneseq
          %v974 = vand.u32 %v973, 127
          %vm975 = vcmp.lt.s32.totalorder %v974, 64
          %v976 = vsel %vm975, %v970, 1e+30
          %977 = vst [vmem:[#allocation2] sm:$0x1] %v976
          %978 = vst.msk [vmem:[#allocation3] sm:$0xff] %vm280, 0.0
          %979 = vst.msk [vmem:[#allocation3 + $0x8] sm:$0xff] %vm280, 0.0
          %980 = vst.msk [vmem:[#allocation3 + $0x10] sm:$0xff] %vm280, 0.0
          %981 = vst.msk [vmem:[#allocation3 + $0x18] sm:$0xff] %vm280, 0.0
          %982 = vst.msk [vmem:[#allocation3 + $0x20] sm:$0xff] %vm280, 0.0
          %983 = vst.msk [vmem:[#allocation3 + $0x28] sm:$0xff] %vm280, 0.0
          %984 = vst.msk [vmem:[#allocation3 + $0x30] sm:$0xff] %vm280, 0.0
          %985 = vst.msk [vmem:[#allocation3 + $0x38] sm:$0xff] %vm280, 0.0
          %986 = vst.msk [vmem:[#allocation3 + $0x40] sm:$0xff] %vm280, 0.0
          %987 = vst.msk [vmem:[#allocation3 + $0x48] sm:$0xff] %vm280, 0.0
          %988 = vst.msk [vmem:[#allocation3 + $0x50] sm:$0xff] %vm280, 0.0
          %989 = vst.msk [vmem:[#allocation3 + $0x58] sm:$0xff] %vm280, 0.0
          %990 = vst.msk [vmem:[#allocation3 + $0x60] sm:$0xff] %vm280, 0.0
          %991 = vst.msk [vmem:[#allocation3 + $0x68] sm:$0xff] %vm280, 0.0
          %992 = vst.msk [vmem:[#allocation3 + $0x70] sm:$0xff] %vm280, 0.0
          %993 = vst.msk [vmem:[#allocation3 + $0x78] sm:$0xff] %vm280, 0.0
          %994 = vst [vmem:[#allocation4] sm:$0x1] 0.0
        $region32: #{distance_gumbel_softmax_vq.1} parent=27 // pred_fallthru
          _
        %v995 = vld [vmem:[%s231] sm:$0xff]
        %v996 = vld [vmem:[%s231 + $0x8] sm:$0xff]
        %v997 = vld [vmem:[%s231 + $0x10] sm:$0xff]
        %v998 = vld [vmem:[%s231 + $0x18] sm:$0xff]
        %v999 = vld [vmem:[%s231 + $0x20] sm:$0xff]
        %v1000 = vld [vmem:[%s231 + $0x28] sm:$0xff]
        %v1001 = vld [vmem:[%s231 + $0x30] sm:$0xff]
        %v1002 = vld [vmem:[%s231 + $0x38] sm:$0xff]
        %v1003 = vmul.f32 %v995, %v995
        %v1004 = vmul.f32 %v996, %v996
        %v1005 = vmul.f32 %v997, %v997
        %v1006 = vmul.f32 %v998, %v998
        %v1007 = vmul.f32 %v999, %v999
        %v1008 = vmul.f32 %v1000, %v1000
        %v1009 = vmul.f32 %v1001, %v1001
        %v1010 = vmul.f32 %v1002, %v1002
        %vm1011 = vcmask 261120
        %v1013 = vsel %vm1011, %v995, 0
        %v1016 = vsel %vm1011, %v996, 0
        %v1019 = vsel %vm1011, %v997, 0
        %v1022 = vsel %vm1011, %v998, 0
        %v1025 = vsel %vm1011, %v999, 0
        %v1028 = vsel %vm1011, %v1000, 0
        %v1031 = vsel %vm1011, %v1001, 0
        %v1034 = vsel %vm1011, %v1002, 0
        %v1037 = vsel %vm1011, %v244, 0
        %v1040 = vsel %vm1011, %v245, 0
        %v1043 = vsel %vm1011, %v246, 0
        %v1046 = vsel %vm1011, %v247, 0
        %v1049 = vsel %vm1011, %v248, 0
        %v1052 = vsel %vm1011, %v249, 0
        %v1055 = vsel %vm1011, %v250, 0
        %v1058 = vsel %vm1011, %v251, 0
        %v1061 = vsel %vm1011, %v252, 0
        %v1064 = vsel %vm1011, %v253, 0
        %v1067 = vsel %vm1011, %v254, 0
        %v1070 = vsel %vm1011, %v255, 0
        %v1073 = vsel %vm1011, %v256, 0
        %v1076 = vsel %vm1011, %v257, 0
        %v1079 = vsel %vm1011, %v258, 0
        %v1082 = vsel %vm1011, %v259, 0
        %1084 = vmatprep.subr.mxu0 0.0
        %v1085 = vand.u32 %v1037, 4294901760
        %1086 = vmatpush1.xpose.msra.mxu0 %v1085
        %1087 = vmatprep.subr.mxu0 0.0
        %v1088 = vand.u32 %v1040, 4294901760
        %1089 = vmatpush1.xpose.msra.mxu0 %v1088
        %1090 = vmatprep.subr.mxu0 0.0
        %v1091 = vand.u32 %v1043, 4294901760
        %1092 = vmatpush1.xpose.msra.mxu0 %v1091
        %1093 = vmatprep.subr.mxu0 0.0
        %v1094 = vand.u32 %v1046, 4294901760
        %1095 = vmatpush1.xpose.msra.mxu0 %v1094
        %1096 = vmatprep.subr.mxu0 0.0
        %v1097 = vand.u32 %v1049, 4294901760
        %1098 = vmatpush1.xpose.msra.mxu0 %v1097
        %1099 = vmatprep.subr.mxu0 0.0
        %v1100 = vand.u32 %v1052, 4294901760
        %1101 = vmatpush1.xpose.msra.mxu0 %v1100
        %1102 = vmatprep.subr.mxu0 0.0
        %v1103 = vand.u32 %v1055, 4294901760
        %1104 = vmatpush1.xpose.msra.mxu0 %v1103
        %1105 = vmatprep.subr.mxu0 0.0
        %v1106 = vand.u32 %v1058, 4294901760
        %1107 = vmatpush1.xpose.msra.mxu0 %v1106
        %1108 = vmatprep.subr.mxu0 0.0
        %v1109 = vand.u32 %v1061, 4294901760
        %1110 = vmatpush1.xpose.msra.mxu0 %v1109
        %1111 = vmatprep.subr.mxu0 0.0
        %v1112 = vand.u32 %v1064, 4294901760
        %1113 = vmatpush1.xpose.msra.mxu0 %v1112
        %1114 = vmatprep.subr.mxu0 0.0
        %v1115 = vand.u32 %v1067, 4294901760
        %1116 = vmatpush1.xpose.msra.mxu0 %v1115
        %1117 = vmatprep.subr.mxu0 0.0
        %v1118 = vand.u32 %v1070, 4294901760
        %1119 = vmatpush1.xpose.msra.mxu0 %v1118
        %1120 = vmatprep.subr.mxu0 0.0
        %v1121 = vand.u32 %v1073, 4294901760
        %1122 = vmatpush1.xpose.msra.mxu0 %v1121
        %1123 = vmatprep.subr.mxu0 0.0
        %v1124 = vand.u32 %v1076, 4294901760
        %1125 = vmatpush1.xpose.msra.mxu0 %v1124
        %1126 = vmatprep.subr.mxu0 0.0
        %v1127 = vand.u32 %v1079, 4294901760
        %1128 = vmatpush1.xpose.msra.mxu0 %v1127
        %1129 = vmatprep.subr.mxu0 0.0
        %v1130 = vand.u32 %v1082, 4294901760
        %1131 = vmatpush1.xpose.msra.mxu0 %v1130
        %1132 = vmatprep.subr.mxu0 0.0
        %1133 = vmatpush1.xpose.msra.mxu0 0.0
        %1134 = vmatprep.subr.mxu0 0.0
        %1135 = vmatpush1.xpose.msra.mxu0 0.0
        %1136 = vmatprep.subr.mxu0 0.0
        %1137 = vmatpush1.xpose.msra.mxu0 0.0
        %1138 = vmatprep.subr.mxu0 0.0
        %1139 = vmatpush1.xpose.msra.mxu0 0.0
        %1140 = vmatprep.subr.mxu0 0.0
        %1141 = vmatpush1.xpose.msra.mxu0 0.0
        %1142 = vmatprep.subr.mxu0 0.0
        %1143 = vmatpush1.xpose.msra.mxu0 0.0
        %1144 = vmatprep.subr.mxu0 0.0
        %1145 = vmatpush1.xpose.msra.mxu0 0.0
        %1146 = vmatprep.subr.mxu0 0.0
        %1147 = vmatpush1.xpose.msra.mxu0 0.0
        %1148 = vmatprep.subr.mxu0 0.0
        %1149 = vmatpush1.xpose.msra.mxu0 0.0
        %1150 = vmatprep.subr.mxu0 0.0
        %1151 = vmatpush1.xpose.msra.mxu0 0.0
        %1152 = vmatprep.subr.mxu0 0.0
        %1153 = vmatpush1.xpose.msra.mxu0 0.0
        %1154 = vmatprep.subr.mxu0 0.0
        %1155 = vmatpush1.xpose.msra.mxu0 0.0
        %1156 = vmatprep.subr.mxu0 0.0
        %1157 = vmatpush1.xpose.msra.mxu0 0.0
        %1158 = vmatprep.subr.mxu0 0.0
        %1159 = vmatpush1.xpose.msra.mxu0 0.0
        %1160 = vmatprep.subr.mxu0 0.0
        %1161 = vmatpush1.xpose.msra.mxu0 0.0
        %1162 = vmatprep.subr.mxu0 0.0
        %1163 = vmatpush1.xpose.msra.mxu0 0.0
        %1164 = vmatprep.mubr.f32.mxu0 0.0
        %v1165 = vand.u32 %v1013, 4294901760
        %v1166 = vsub.f32 %v1013, %v1165
        %v1167 = vand.u32 %v1166, 4294901760
        %v1168 = vsub.f32 %v1166, %v1167
        %v1169 = vand.u32 %v1168, 4294901760
        %1170 = vmatmul.mubr.f32.gmra.mrb[0].mxu0 %v1169
        %v1171 = vpop.f32.mrb[0].mxu0
        %v1172 = vadd.f32 0.0, %v1171
        %v1173 = vpop.f32.mrb[0].mxu0
        %1174 = vmatprep.mubr.f32.mxu0 0.0
        %v1175 = vand.u32 %v1016, 4294901760
        %v1176 = vsub.f32 %v1016, %v1175
        %v1177 = vand.u32 %v1176, 4294901760
        %v1178 = vsub.f32 %v1176, %v1177
        %v1179 = vand.u32 %v1178, 4294901760
        %1180 = vmatmul.mubr.f32.gmra.mrb[0].mxu0 %v1179
        %v1181 = vpop.f32.mrb[0].mxu0
        %v1182 = vadd.f32 0.0, %v1181
        %v1183 = vpop.f32.mrb[0].mxu0
        %1184 = vmatprep.mubr.f32.mxu0 0.0
        %v1185 = vand.u32 %v1019, 4294901760
        %v1186 = vsub.f32 %v1019, %v1185
        %v1187 = vand.u32 %v1186, 4294901760
        %v1188 = vsub.f32 %v1186, %v1187
        %v1189 = vand.u32 %v1188, 4294901760
        %1190 = vmatmul.mubr.f32.gmra.mrb[0].mxu0 %v1189
        %v1191 = vpop.f32.mrb[0].mxu0
        %v1192 = vadd.f32 0.0, %v1191
        %v1193 = vpop.f32.mrb[0].mxu0
        %1194 = vmatprep.mubr.f32.mxu0 0.0
        %v1195 = vand.u32 %v1022, 4294901760
        %v1196 = vsub.f32 %v1022, %v1195
        %v1197 = vand.u32 %v1196, 4294901760
        %v1198 = vsub.f32 %v1196, %v1197
        %v1199 = vand.u32 %v1198, 4294901760
        %1200 = vmatmul.mubr.f32.gmra.mrb[0].mxu0 %v1199
        %v1201 = vpop.f32.mrb[0].mxu0
        %v1202 = vadd.f32 0.0, %v1201
        %v1203 = vpop.f32.mrb[0].mxu0
        %1204 = vmatprep.mubr.f32.mxu0 0.0
        %v1205 = vand.u32 %v1025, 4294901760
        %v1206 = vsub.f32 %v1025, %v1205
        %v1207 = vand.u32 %v1206, 4294901760
        %v1208 = vsub.f32 %v1206, %v1207
        %v1209 = vand.u32 %v1208, 4294901760
        %1210 = vmatmul.mubr.f32.gmra.mrb[0].mxu0 %v1209
        %v1211 = vpop.f32.mrb[0].mxu0
        %v1212 = vadd.f32 0.0, %v1211
        %v1213 = vpop.f32.mrb[0].mxu0
        %1214 = vmatprep.mubr.f32.mxu0 0.0
        %v1215 = vand.u32 %v1028, 4294901760
        %v1216 = vsub.f32 %v1028, %v1215
        %v1217 = vand.u32 %v1216, 4294901760
        %v1218 = vsub.f32 %v1216, %v1217
        %v1219 = vand.u32 %v1218, 4294901760
        %1220 = vmatmul.mubr.f32.gmra.mrb[0].mxu0 %v1219
        %v1221 = vpop.f32.mrb[0].mxu0
        %v1222 = vadd.f32 0.0, %v1221
        %v1223 = vpop.f32.mrb[0].mxu0
        %1224 = vmatprep.mubr.f32.mxu0 0.0
        %v1225 = vand.u32 %v1031, 4294901760
        %v1226 = vsub.f32 %v1031, %v1225
        %v1227 = vand.u32 %v1226, 4294901760
        %v1228 = vsub.f32 %v1226, %v1227
        %v1229 = vand.u32 %v1228, 4294901760
        %1230 = vmatmul.mubr.f32.gmra.mrb[0].mxu0 %v1229
        %v1231 = vpop.f32.mrb[0].mxu0
        %v1232 = vadd.f32 0.0, %v1231
        %v1233 = vpop.f32.mrb[0].mxu0
        %1234 = vmatprep.mubr.f32.mxu0 0.0
        %v1235 = vand.u32 %v1034, 4294901760
        %v1236 = vsub.f32 %v1034, %v1235
        %v1237 = vand.u32 %v1236, 4294901760
        %v1238 = vsub.f32 %v1236, %v1237
        %v1239 = vand.u32 %v1238, 4294901760
        %1240 = vmatmul.mubr.f32.gmra.mrb[0].mxu0 %v1239
        %v1241 = vpop.f32.mrb[0].mxu0
        %v1242 = vadd.f32 0.0, %v1241
        %v1243 = vpop.f32.mrb[0].mxu0
        %1244 = vdwg.mxu0
        %1245 = vmatprep.subr.mxu0 0.0
        %v1246 = vand.u32 %v1037, 4294901760
        %v1247 = vsub.f32 %v1037, %v1246
        %v1248 = vand.u32 %v1247, 4294901760
        %v1249 = vsub.f32 %v1247, %v1248
        %v1250 = vand.u32 %v1249, 4294901760
        %1251 = vmatpush1.xpose.msra.mxu0 %v1250
        %1252 = vmatprep.subr.mxu0 0.0
        %v1253 = vand.u32 %v1040, 4294901760
        %v1254 = vsub.f32 %v1040, %v1253
        %v1255 = vand.u32 %v1254, 4294901760
        %v1256 = vsub.f32 %v1254, %v1255
        %v1257 = vand.u32 %v1256, 4294901760
        %1258 = vmatpush1.xpose.msra.mxu0 %v1257
        %1259 = vmatprep.subr.mxu0 0.0
        %v1260 = vand.u32 %v1043, 4294901760
        %v1261 = vsub.f32 %v1043, %v1260
        %v1262 = vand.u32 %v1261, 4294901760
        %v1263 = vsub.f32 %v1261, %v1262
        %v1264 = vand.u32 %v1263, 4294901760
        %1265 = vmatpush1.xpose.msra.mxu0 %v1264
        %1266 = vmatprep.subr.mxu0 0.0
        %v1267 = vand.u32 %v1046, 4294901760
        %v1268 = vsub.f32 %v1046, %v1267
        %v1269 = vand.u32 %v1268, 4294901760
        %v1270 = vsub.f32 %v1268, %v1269
        %v1271 = vand.u32 %v1270, 4294901760
        %1272 = vmatpush1.xpose.msra.mxu0 %v1271
        %1273 = vmatprep.subr.mxu0 0.0
        %v1274 = vand.u32 %v1049, 4294901760
        %v1275 = vsub.f32 %v1049, %v1274
        %v1276 = vand.u32 %v1275, 4294901760
        %v1277 = vsub.f32 %v1275, %v1276
        %v1278 = vand.u32 %v1277, 4294901760
        %1279 = vmatpush1.xpose.msra.mxu0 %v1278
        %1280 = vmatprep.subr.mxu0 0.0
        %v1281 = vand.u32 %v1052, 4294901760
        %v1282 = vsub.f32 %v1052, %v1281
        %v1283 = vand.u32 %v1282, 4294901760
        %v1284 = vsub.f32 %v1282, %v1283
        %v1285 = vand.u32 %v1284, 4294901760
        %1286 = vmatpush1.xpose.msra.mxu0 %v1285
        %1287 = vmatprep.subr.mxu0 0.0
        %v1288 = vand.u32 %v1055, 4294901760
        %v1289 = vsub.f32 %v1055, %v1288
        %v1290 = vand.u32 %v1289, 4294901760
        %v1291 = vsub.f32 %v1289, %v1290
        %v1292 = vand.u32 %v1291, 4294901760
        %1293 = vmatpush1.xpose.msra.mxu0 %v1292
        %1294 = vmatprep.subr.mxu0 0.0
        %v1295 = vand.u32 %v1058, 4294901760
        %v1296 = vsub.f32 %v1058, %v1295
        %v1297 = vand.u32 %v1296, 4294901760
        %v1298 = vsub.f32 %v1296, %v1297
        %v1299 = vand.u32 %v1298, 4294901760
        %1300 = vmatpush1.xpose.msra.mxu0 %v1299
        %1301 = vmatprep.subr.mxu0 0.0
        %v1302 = vand.u32 %v1061, 4294901760
        %v1303 = vsub.f32 %v1061, %v1302
        %v1304 = vand.u32 %v1303, 4294901760
        %v1305 = vsub.f32 %v1303, %v1304
        %v1306 = vand.u32 %v1305, 4294901760
        %1307 = vmatpush1.xpose.msra.mxu0 %v1306
        %1308 = vmatprep.subr.mxu0 0.0
        %v1309 = vand.u32 %v1064, 4294901760
        %v1310 = vsub.f32 %v1064, %v1309
        %v1311 = vand.u32 %v1310, 4294901760
        %v1312 = vsub.f32 %v1310, %v1311
        %v1313 = vand.u32 %v1312, 4294901760
        %1314 = vmatpush1.xpose.msra.mxu0 %v1313
        %1315 = vmatprep.subr.mxu0 0.0
        %v1316 = vand.u32 %v1067, 4294901760
        %v1317 = vsub.f32 %v1067, %v1316
        %v1318 = vand.u32 %v1317, 4294901760
        %v1319 = vsub.f32 %v1317, %v1318
        %v1320 = vand.u32 %v1319, 4294901760
        %1321 = vmatpush1.xpose.msra.mxu0 %v1320
        %1322 = vmatprep.subr.mxu0 0.0
        %v1323 = vand.u32 %v1070, 4294901760
        %v1324 = vsub.f32 %v1070, %v1323
        %v1325 = vand.u32 %v1324, 4294901760
        %v1326 = vsub.f32 %v1324, %v1325
        %v1327 = vand.u32 %v1326, 4294901760
        %1328 = vmatpush1.xpose.msra.mxu0 %v1327
        %1329 = vmatprep.subr.mxu0 0.0
        %v1330 = vand.u32 %v1073, 4294901760
        %v1331 = vsub.f32 %v1073, %v1330
        %v1332 = vand.u32 %v1331, 4294901760
        %v1333 = vsub.f32 %v1331, %v1332
        %v1334 = vand.u32 %v1333, 4294901760
        %1335 = vmatpush1.xpose.msra.mxu0 %v1334
        %1336 = vmatprep.subr.mxu0 0.0
        %v1337 = vand.u32 %v1076, 4294901760
        %v1338 = vsub.f32 %v1076, %v1337
        %v1339 = vand.u32 %v1338, 4294901760
        %v1340 = vsub.f32 %v1338, %v1339
        %v1341 = vand.u32 %v1340, 4294901760
        %1342 = vmatpush1.xpose.msra.mxu0 %v1341
        %1343 = vmatprep.subr.mxu0 0.0
        %v1344 = vand.u32 %v1079, 4294901760
        %v1345 = vsub.f32 %v1079, %v1344
        %v1346 = vand.u32 %v1345, 4294901760
        %v1347 = vsub.f32 %v1345, %v1346
        %v1348 = vand.u32 %v1347, 4294901760
        %1349 = vmatpush1.xpose.msra.mxu0 %v1348
        %1350 = vmatprep.subr.mxu0 0.0
        %v1351 = vand.u32 %v1082, 4294901760
        %v1352 = vsub.f32 %v1082, %v1351
        %v1353 = vand.u32 %v1352, 4294901760
        %v1354 = vsub.f32 %v1352, %v1353
        %v1355 = vand.u32 %v1354, 4294901760
        %1356 = vmatpush1.xpose.msra.mxu0 %v1355
        %1357 = vmatprep.subr.mxu0 0.0
        %1358 = vmatpush1.xpose.msra.mxu0 0.0
        %1359 = vmatprep.subr.mxu0 0.0
        %1360 = vmatpush1.xpose.msra.mxu0 0.0
        %1361 = vmatprep.subr.mxu0 0.0
        %1362 = vmatpush1.xpose.msra.mxu0 0.0
        %1363 = vmatprep.subr.mxu0 0.0
        %1364 = vmatpush1.xpose.msra.mxu0 0.0
        %1365 = vmatprep.subr.mxu0 0.0
        %1366 = vmatpush1.xpose.msra.mxu0 0.0
        %1367 = vmatprep.subr.mxu0 0.0
        %1368 = vmatpush1.xpose.msra.mxu0 0.0
        %1369 = vmatprep.subr.mxu0 0.0
        %1370 = vmatpush1.xpose.msra.mxu0 0.0
        %1371 = vmatprep.subr.mxu0 0.0
        %1372 = vmatpush1.xpose.msra.mxu0 0.0
        %1373 = vmatprep.subr.mxu0 0.0
        %1374 = vmatpush1.xpose.msra.mxu0 0.0
        %1375 = vmatprep.subr.mxu0 0.0
        %1376 = vmatpush1.xpose.msra.mxu0 0.0
        %1377 = vmatprep.subr.mxu0 0.0
        %1378 = vmatpush1.xpose.msra.mxu0 0.0
        %1379 = vmatprep.subr.mxu0 0.0
        %1380 = vmatpush1.xpose.msra.mxu0 0.0
        %1381 = vmatprep.subr.mxu0 0.0
        %1382 = vmatpush1.xpose.msra.mxu0 0.0
        %1383 = vmatprep.subr.mxu0 0.0
        %1384 = vmatpush1.xpose.msra.mxu0 0.0
        %1385 = vmatprep.subr.mxu0 0.0
        %1386 = vmatpush1.xpose.msra.mxu0 0.0
        %1387 = vmatprep.subr.mxu0 0.0
        %1388 = vmatpush1.xpose.msra.mxu0 0.0
        %1389 = vmatprep.mubr.f32.mxu0 0.0
        %v1390 = vand.u32 %v1013, 4294901760
        %1391 = vmatmul.mubr.f32.gmra.mrb[0].mxu0 %v1390
        %v1392 = vpop.f32.mrb[0].mxu0
        %v1393 = vadd.f32 %v1172, %v1392
        %v1394 = vpop.f32.mrb[0].mxu0
        %1395 = vmatprep.mubr.f32.mxu0 0.0
        %v1396 = vand.u32 %v1016, 4294901760
        %1397 = vmatmul.mubr.f32.gmra.mrb[0].mxu0 %v1396
        %v1398 = vpop.f32.mrb[0].mxu0
        %v1399 = vadd.f32 %v1182, %v1398
        %v1400 = vpop.f32.mrb[0].mxu0
        %1401 = vmatprep.mubr.f32.mxu0 0.0
        %v1402 = vand.u32 %v1019, 4294901760
        %1403 = vmatmul.mubr.f32.gmra.mrb[0].mxu0 %v1402
        %v1404 = vpop.f32.mrb[0].mxu0
        %v1405 = vadd.f32 %v1192, %v1404
        %v1406 = vpop.f32.mrb[0].mxu0
        %1407 = vmatprep.mubr.f32.mxu0 0.0
        %v1408 = vand.u32 %v1022, 4294901760
        %1409 = vmatmul.mubr.f32.gmra.mrb[0].mxu0 %v1408
        %v1410 = vpop.f32.mrb[0].mxu0
        %v1411 = vadd.f32 %v1202, %v1410
        %v1412 = vpop.f32.mrb[0].mxu0
        %1413 = vmatprep.mubr.f32.mxu0 0.0
        %v1414 = vand.u32 %v1025, 4294901760
        %1415 = vmatmul.mubr.f32.gmra.mrb[0].mxu0 %v1414
        %v1416 = vpop.f32.mrb[0].mxu0
        %v1417 = vadd.f32 %v1212, %v1416
        %v1418 = vpop.f32.mrb[0].mxu0
        %1419 = vmatprep.mubr.f32.mxu0 0.0
        %v1420 = vand.u32 %v1028, 4294901760
        %1421 = vmatmul.mubr.f32.gmra.mrb[0].mxu0 %v1420
        %v1422 = vpop.f32.mrb[0].mxu0
        %v1423 = vadd.f32 %v1222, %v1422
        %v1424 = vpop.f32.mrb[0].mxu0
        %1425 = vmatprep.mubr.f32.mxu0 0.0
        %v1426 = vand.u32 %v1031, 4294901760
        %1427 = vmatmul.mubr.f32.gmra.mrb[0].mxu0 %v1426
        %v1428 = vpop.f32.mrb[0].mxu0
        %v1429 = vadd.f32 %v1232, %v1428
        %v1430 = vpop.f32.mrb[0].mxu0
        %1431 = vmatprep.mubr.f32.mxu0 0.0
        %v1432 = vand.u32 %v1034, 4294901760
        %1433 = vmatmul.mubr.f32.gmra.mrb[0].mxu0 %v1432
        %v1434 = vpop.f32.mrb[0].mxu0
        %v1435 = vadd.f32 %v1242, %v1434
        %v1436 = vpop.f32.mrb[0].mxu0
        %1437 = vdwg.mxu0
        %1438 = vmatprep.subr.mxu0 0.0
        %v1439 = vand.u32 %v1037, 4294901760
        %v1440 = vsub.f32 %v1037, %v1439
        %1441 = vmatpush1.xpose.msra.mxu0 %v1440
        %1442 = vmatprep.subr.mxu0 0.0
        %v1443 = vand.u32 %v1040, 4294901760
        %v1444 = vsub.f32 %v1040, %v1443
        %1445 = vmatpush1.xpose.msra.mxu0 %v1444
        %1446 = vmatprep.subr.mxu0 0.0
        %v1447 = vand.u32 %v1043, 4294901760
        %v1448 = vsub.f32 %v1043, %v1447
        %1449 = vmatpush1.xpose.msra.mxu0 %v1448
        %1450 = vmatprep.subr.mxu0 0.0
        %v1451 = vand.u32 %v1046, 4294901760
        %v1452 = vsub.f32 %v1046, %v1451
        %1453 = vmatpush1.xpose.msra.mxu0 %v1452
        %1454 = vmatprep.subr.mxu0 0.0
        %v1455 = vand.u32 %v1049, 4294901760
        %v1456 = vsub.f32 %v1049, %v1455
        %1457 = vmatpush1.xpose.msra.mxu0 %v1456
        %1458 = vmatprep.subr.mxu0 0.0
        %v1459 = vand.u32 %v1052, 4294901760
        %v1460 = vsub.f32 %v1052, %v1459
        %1461 = vmatpush1.xpose.msra.mxu0 %v1460
        %1462 = vmatprep.subr.mxu0 0.0
        %v1463 = vand.u32 %v1055, 4294901760
        %v1464 = vsub.f32 %v1055, %v1463
        %1465 = vmatpush1.xpose.msra.mxu0 %v1464
        %1466 = vmatprep.subr.mxu0 0.0
        %v1467 = vand.u32 %v1058, 4294901760
        %v1468 = vsub.f32 %v1058, %v1467
        %1469 = vmatpush1.xpose.msra.mxu0 %v1468
        %1470 = vmatprep.subr.mxu0 0.0
        %v1471 = vand.u32 %v1061, 4294901760
        %v1472 = vsub.f32 %v1061, %v1471
        %1473 = vmatpush1.xpose.msra.mxu0 %v1472
        %1474 = vmatprep.subr.mxu0 0.0
        %v1475 = vand.u32 %v1064, 4294901760
        %v1476 = vsub.f32 %v1064, %v1475
        %1477 = vmatpush1.xpose.msra.mxu0 %v1476
        %1478 = vmatprep.subr.mxu0 0.0
        %v1479 = vand.u32 %v1067, 4294901760
        %v1480 = vsub.f32 %v1067, %v1479
        %1481 = vmatpush1.xpose.msra.mxu0 %v1480
        %1482 = vmatprep.subr.mxu0 0.0
        %v1483 = vand.u32 %v1070, 4294901760
        %v1484 = vsub.f32 %v1070, %v1483
        %1485 = vmatpush1.xpose.msra.mxu0 %v1484
        %1486 = vmatprep.subr.mxu0 0.0
        %v1487 = vand.u32 %v1073, 4294901760
        %v1488 = vsub.f32 %v1073, %v1487
        %1489 = vmatpush1.xpose.msra.mxu0 %v1488
        %1490 = vmatprep.subr.mxu0 0.0
        %v1491 = vand.u32 %v1076, 4294901760
        %v1492 = vsub.f32 %v1076, %v1491
        %1493 = vmatpush1.xpose.msra.mxu0 %v1492
        %1494 = vmatprep.subr.mxu0 0.0
        %v1495 = vand.u32 %v1079, 4294901760
        %v1496 = vsub.f32 %v1079, %v1495
        %1497 = vmatpush1.xpose.msra.mxu0 %v1496
        %1498 = vmatprep.subr.mxu0 0.0
        %v1499 = vand.u32 %v1082, 4294901760
        %v1500 = vsub.f32 %v1082, %v1499
        %1501 = vmatpush1.xpose.msra.mxu0 %v1500
        %1502 = vmatprep.subr.mxu0 0.0
        %1503 = vmatpush1.xpose.msra.mxu0 0.0
        %1504 = vmatprep.subr.mxu0 0.0
        %1505 = vmatpush1.xpose.msra.mxu0 0.0
        %1506 = vmatprep.subr.mxu0 0.0
        %1507 = vmatpush1.xpose.msra.mxu0 0.0
        %1508 = vmatprep.subr.mxu0 0.0
        %1509 = vmatpush1.xpose.msra.mxu0 0.0
        %1510 = vmatprep.subr.mxu0 0.0
        %1511 = vmatpush1.xpose.msra.mxu0 0.0
        %1512 = vmatprep.subr.mxu0 0.0
        %1513 = vmatpush1.xpose.msra.mxu0 0.0
        %1514 = vmatprep.subr.mxu0 0.0
        %1515 = vmatpush1.xpose.msra.mxu0 0.0
        %1516 = vmatprep.subr.mxu0 0.0
        %1517 = vmatpush1.xpose.msra.mxu0 0.0
        %1518 = vmatprep.subr.mxu0 0.0
        %1519 = vmatpush1.xpose.msra.mxu0 0.0
        %1520 = vmatprep.subr.mxu0 0.0
        %1521 = vmatpush1.xpose.msra.mxu0 0.0
        %1522 = vmatprep.subr.mxu0 0.0
        %1523 = vmatpush1.xpose.msra.mxu0 0.0
        %1524 = vmatprep.subr.mxu0 0.0
        %1525 = vmatpush1.xpose.msra.mxu0 0.0
        %1526 = vmatprep.subr.mxu0 0.0
        %1527 = vmatpush1.xpose.msra.mxu0 0.0
        %1528 = vmatprep.subr.mxu0 0.0
        %1529 = vmatpush1.xpose.msra.mxu0 0.0
        %1530 = vmatprep.subr.mxu0 0.0
        %1531 = vmatpush1.xpose.msra.mxu0 0.0
        %1532 = vmatprep.subr.mxu0 0.0
        %1533 = vmatpush1.xpose.msra.mxu0 0.0
        %1534 = vmatprep.mubr.f32.mxu0 0.0
        %v1535 = vand.u32 %v1013, 4294901760
        %v1536 = vsub.f32 %v1013, %v1535
        %1537 = vmatmul.mubr.f32.gmra.mrb[0].mxu0 %v1536
        %v1538 = vpop.f32.mrb[0].mxu0
        %v1539 = vadd.f32 %v1393, %v1538
        %v1540 = vpop.f32.mrb[0].mxu0
        %1541 = vmatprep.mubr.f32.mxu0 0.0
        %v1542 = vand.u32 %v1016, 4294901760
        %v1543 = vsub.f32 %v1016, %v1542
        %1544 = vmatmul.mubr.f32.gmra.mrb[0].mxu0 %v1543
        %v1545 = vpop.f32.mrb[0].mxu0
        %v1546 = vadd.f32 %v1399, %v1545
        %v1547 = vpop.f32.mrb[0].mxu0
        %1548 = vmatprep.mubr.f32.mxu0 0.0
        %v1549 = vand.u32 %v1019, 4294901760
        %v1550 = vsub.f32 %v1019, %v1549
        %1551 = vmatmul.mubr.f32.gmra.mrb[0].mxu0 %v1550
        %v1552 = vpop.f32.mrb[0].mxu0
        %v1553 = vadd.f32 %v1405, %v1552
        %v1554 = vpop.f32.mrb[0].mxu0
        %1555 = vmatprep.mubr.f32.mxu0 0.0
        %v1556 = vand.u32 %v1022, 4294901760
        %v1557 = vsub.f32 %v1022, %v1556
        %1558 = vmatmul.mubr.f32.gmra.mrb[0].mxu0 %v1557
        %v1559 = vpop.f32.mrb[0].mxu0
        %v1560 = vadd.f32 %v1411, %v1559
        %v1561 = vpop.f32.mrb[0].mxu0
        %1562 = vmatprep.mubr.f32.mxu0 0.0
        %v1563 = vand.u32 %v1025, 4294901760
        %v1564 = vsub.f32 %v1025, %v1563
        %1565 = vmatmul.mubr.f32.gmra.mrb[0].mxu0 %v1564
        %v1566 = vpop.f32.mrb[0].mxu0
        %v1567 = vadd.f32 %v1417, %v1566
        %v1568 = vpop.f32.mrb[0].mxu0
        %1569 = vmatprep.mubr.f32.mxu0 0.0
        %v1570 = vand.u32 %v1028, 4294901760
        %v1571 = vsub.f32 %v1028, %v1570
        %1572 = vmatmul.mubr.f32.gmra.mrb[0].mxu0 %v1571
        %v1573 = vpop.f32.mrb[0].mxu0
        %v1574 = vadd.f32 %v1423, %v1573
        %v1575 = vpop.f32.mrb[0].mxu0
        %1576 = vmatprep.mubr.f32.mxu0 0.0
        %v1577 = vand.u32 %v1031, 4294901760
        %v1578 = vsub.f32 %v1031, %v1577
        %1579 = vmatmul.mubr.f32.gmra.mrb[0].mxu0 %v1578
        %v1580 = vpop.f32.mrb[0].mxu0
        %v1581 = vadd.f32 %v1429, %v1580
        %v1582 = vpop.f32.mrb[0].mxu0
        %1583 = vmatprep.mubr.f32.mxu0 0.0
        %v1584 = vand.u32 %v1034, 4294901760
        %v1585 = vsub.f32 %v1034, %v1584
        %1586 = vmatmul.mubr.f32.gmra.mrb[0].mxu0 %v1585
        %v1587 = vpop.f32.mrb[0].mxu0
        %v1588 = vadd.f32 %v1435, %v1587
        %v1589 = vpop.f32.mrb[0].mxu0
        %1590 = vdwg.mxu0
        %1591 = vmatprep.subr.mxu0 0.0
        %v1592 = vand.u32 %v1037, 4294901760
        %1593 = vmatpush1.xpose.msra.mxu0 %v1592
        %1594 = vmatprep.subr.mxu0 0.0
        %v1595 = vand.u32 %v1040, 4294901760
        %1596 = vmatpush1.xpose.msra.mxu0 %v1595
        %1597 = vmatprep.subr.mxu0 0.0
        %v1598 = vand.u32 %v1043, 4294901760
        %1599 = vmatpush1.xpose.msra.mxu0 %v1598
        %1600 = vmatprep.subr.mxu0 0.0
        %v1601 = vand.u32 %v1046, 4294901760
        %1602 = vmatpush1.xpose.msra.mxu0 %v1601
        %1603 = vmatprep.subr.mxu0 0.0
        %v1604 = vand.u32 %v1049, 4294901760
        %1605 = vmatpush1.xpose.msra.mxu0 %v1604
        %1606 = vmatprep.subr.mxu0 0.0
        %v1607 = vand.u32 %v1052, 4294901760
        %1608 = vmatpush1.xpose.msra.mxu0 %v1607
        %1609 = vmatprep.subr.mxu0 0.0
        %v1610 = vand.u32 %v1055, 4294901760
        %1611 = vmatpush1.xpose.msra.mxu0 %v1610
        %1612 = vmatprep.subr.mxu0 0.0
        %v1613 = vand.u32 %v1058, 4294901760
        %1614 = vmatpush1.xpose.msra.mxu0 %v1613
        %1615 = vmatprep.subr.mxu0 0.0
        %v1616 = vand.u32 %v1061, 4294901760
        %1617 = vmatpush1.xpose.msra.mxu0 %v1616
        %1618 = vmatprep.subr.mxu0 0.0
        %v1619 = vand.u32 %v1064, 4294901760
        %1620 = vmatpush1.xpose.msra.mxu0 %v1619
        %1621 = vmatprep.subr.mxu0 0.0
        %v1622 = vand.u32 %v1067, 4294901760
        %1623 = vmatpush1.xpose.msra.mxu0 %v1622
        %1624 = vmatprep.subr.mxu0 0.0
        %v1625 = vand.u32 %v1070, 4294901760
        %1626 = vmatpush1.xpose.msra.mxu0 %v1625
        %1627 = vmatprep.subr.mxu0 0.0
        %v1628 = vand.u32 %v1073, 4294901760
        %1629 = vmatpush1.xpose.msra.mxu0 %v1628
        %1630 = vmatprep.subr.mxu0 0.0
        %v1631 = vand.u32 %v1076, 4294901760
        %1632 = vmatpush1.xpose.msra.mxu0 %v1631
        %1633 = vmatprep.subr.mxu0 0.0
        %v1634 = vand.u32 %v1079, 4294901760
        %1635 = vmatpush1.xpose.msra.mxu0 %v1634
        %1636 = vmatprep.subr.mxu0 0.0
        %v1637 = vand.u32 %v1082, 4294901760
        %1638 = vmatpush1.xpose.msra.mxu0 %v1637
        %1639 = vmatprep.subr.mxu0 0.0
        %1640 = vmatpush1.xpose.msra.mxu0 0.0
        %1641 = vmatprep.subr.mxu0 0.0
        %1642 = vmatpush1.xpose.msra.mxu0 0.0
        %1643 = vmatprep.subr.mxu0 0.0
        %1644 = vmatpush1.xpose.msra.mxu0 0.0
        %1645 = vmatprep.subr.mxu0 0.0
        %1646 = vmatpush1.xpose.msra.mxu0 0.0
        %1647 = vmatprep.subr.mxu0 0.0
        %1648 = vmatpush1.xpose.msra.mxu0 0.0
        %1649 = vmatprep.subr.mxu0 0.0
        %1650 = vmatpush1.xpose.msra.mxu0 0.0
        %1651 = vmatprep.subr.mxu0 0.0
        %1652 = vmatpush1.xpose.msra.mxu0 0.0
        %1653 = vmatprep.subr.mxu0 0.0
        %1654 = vmatpush1.xpose.msra.mxu0 0.0
        %1655 = vmatprep.subr.mxu0 0.0
        %1656 = vmatpush1.xpose.msra.mxu0 0.0
        %1657 = vmatprep.subr.mxu0 0.0
        %1658 = vmatpush1.xpose.msra.mxu0 0.0
        %1659 = vmatprep.subr.mxu0 0.0
        %1660 = vmatpush1.xpose.msra.mxu0 0.0
        %1661 = vmatprep.subr.mxu0 0.0
        %1662 = vmatpush1.xpose.msra.mxu0 0.0
        %1663 = vmatprep.subr.mxu0 0.0
        %1664 = vmatpush1.xpose.msra.mxu0 0.0
        %1665 = vmatprep.subr.mxu0 0.0
        %1666 = vmatpush1.xpose.msra.mxu0 0.0
        %1667 = vmatprep.subr.mxu0 0.0
        %1668 = vmatpush1.xpose.msra.mxu0 0.0
        %1669 = vmatprep.subr.mxu0 0.0
        %1670 = vmatpush1.xpose.msra.mxu0 0.0
        %1671 = vmatprep.mubr.f32.mxu0 0.0
        %v1672 = vand.u32 %v1013, 4294901760
        %v1673 = vsub.f32 %v1013, %v1672
        %v1674 = vand.u32 %v1673, 4294901760
        %1675 = vmatmul.mubr.f32.gmra.mrb[0].mxu0 %v1674
        %v1676 = vpop.f32.mrb[0].mxu0
        %v1677 = vadd.f32 %v1539, %v1676
        %v1678 = vpop.f32.mrb[0].mxu0
        %1679 = vmatprep.mubr.f32.mxu0 0.0
        %v1680 = vand.u32 %v1016, 4294901760
        %v1681 = vsub.f32 %v1016, %v1680
        %v1682 = vand.u32 %v1681, 4294901760
        %1683 = vmatmul.mubr.f32.gmra.mrb[0].mxu0 %v1682
        %v1684 = vpop.f32.mrb[0].mxu0
        %v1685 = vadd.f32 %v1546, %v1684
        %v1686 = vpop.f32.mrb[0].mxu0
        %1687 = vmatprep.mubr.f32.mxu0 0.0
        %v1688 = vand.u32 %v1019, 4294901760
        %v1689 = vsub.f32 %v1019, %v1688
        %v1690 = vand.u32 %v1689, 4294901760
        %1691 = vmatmul.mubr.f32.gmra.mrb[0].mxu0 %v1690
        %v1692 = vpop.f32.mrb[0].mxu0
        %v1693 = vadd.f32 %v1553, %v1692
        %v1694 = vpop.f32.mrb[0].mxu0
        %1695 = vmatprep.mubr.f32.mxu0 0.0
        %v1696 = vand.u32 %v1022, 4294901760
        %v1697 = vsub.f32 %v1022, %v1696
        %v1698 = vand.u32 %v1697, 4294901760
        %1699 = vmatmul.mubr.f32.gmra.mrb[0].mxu0 %v1698
        %v1700 = vpop.f32.mrb[0].mxu0
        %v1701 = vadd.f32 %v1560, %v1700
        %v1702 = vpop.f32.mrb[0].mxu0
        %1703 = vmatprep.mubr.f32.mxu0 0.0
        %v1704 = vand.u32 %v1025, 4294901760
        %v1705 = vsub.f32 %v1025, %v1704
        %v1706 = vand.u32 %v1705, 4294901760
        %1707 = vmatmul.mubr.f32.gmra.mrb[0].mxu0 %v1706
        %v1708 = vpop.f32.mrb[0].mxu0
        %v1709 = vadd.f32 %v1567, %v1708
        %v1710 = vpop.f32.mrb[0].mxu0
        %1711 = vmatprep.mubr.f32.mxu0 0.0
        %v1712 = vand.u32 %v1028, 4294901760
        %v1713 = vsub.f32 %v1028, %v1712
        %v1714 = vand.u32 %v1713, 4294901760
        %1715 = vmatmul.mubr.f32.gmra.mrb[0].mxu0 %v1714
        %v1716 = vpop.f32.mrb[0].mxu0
        %v1717 = vadd.f32 %v1574, %v1716
        %v1718 = vpop.f32.mrb[0].mxu0
        %1719 = vmatprep.mubr.f32.mxu0 0.0
        %v1720 = vand.u32 %v1031, 4294901760
        %v1721 = vsub.f32 %v1031, %v1720
        %v1722 = vand.u32 %v1721, 4294901760
        %1723 = vmatmul.mubr.f32.gmra.mrb[0].mxu0 %v1722
        %v1724 = vpop.f32.mrb[0].mxu0
        %v1725 = vadd.f32 %v1581, %v1724
        %v1726 = vpop.f32.mrb[0].mxu0
        %1727 = vmatprep.mubr.f32.mxu0 0.0
        %v1728 = vand.u32 %v1034, 4294901760
        %v1729 = vsub.f32 %v1034, %v1728
        %v1730 = vand.u32 %v1729, 4294901760
        %1731 = vmatmul.mubr.f32.gmra.mrb[0].mxu0 %v1730
        %v1732 = vpop.f32.mrb[0].mxu0
        %v1733 = vadd.f32 %v1588, %v1732
        %v1734 = vpop.f32.mrb[0].mxu0
        %1735 = vdwg.mxu0
        %1736 = vmatprep.subr.mxu0 0.0
        %v1737 = vand.u32 %v1037, 4294901760
        %v1738 = vsub.f32 %v1037, %v1737
        %v1739 = vand.u32 %v1738, 4294901760
        %1740 = vmatpush1.xpose.msra.mxu0 %v1739
        %1741 = vmatprep.subr.mxu0 0.0
        %v1742 = vand.u32 %v1040, 4294901760
        %v1743 = vsub.f32 %v1040, %v1742
        %v1744 = vand.u32 %v1743, 4294901760
        %1745 = vmatpush1.xpose.msra.mxu0 %v1744
        %1746 = vmatprep.subr.mxu0 0.0
        %v1747 = vand.u32 %v1043, 4294901760
        %v1748 = vsub.f32 %v1043, %v1747
        %v1749 = vand.u32 %v1748, 4294901760
        %1750 = vmatpush1.xpose.msra.mxu0 %v1749
        %1751 = vmatprep.subr.mxu0 0.0
        %v1752 = vand.u32 %v1046, 4294901760
        %v1753 = vsub.f32 %v1046, %v1752
        %v1754 = vand.u32 %v1753, 4294901760
        %1755 = vmatpush1.xpose.msra.mxu0 %v1754
        %1756 = vmatprep.subr.mxu0 0.0
        %v1757 = vand.u32 %v1049, 4294901760
        %v1758 = vsub.f32 %v1049, %v1757
        %v1759 = vand.u32 %v1758, 4294901760
        %1760 = vmatpush1.xpose.msra.mxu0 %v1759
        %1761 = vmatprep.subr.mxu0 0.0
        %v1762 = vand.u32 %v1052, 4294901760
        %v1763 = vsub.f32 %v1052, %v1762
        %v1764 = vand.u32 %v1763, 4294901760
        %1765 = vmatpush1.xpose.msra.mxu0 %v1764
        %1766 = vmatprep.subr.mxu0 0.0
        %v1767 = vand.u32 %v1055, 4294901760
        %v1768 = vsub.f32 %v1055, %v1767
        %v1769 = vand.u32 %v1768, 4294901760
        %1770 = vmatpush1.xpose.msra.mxu0 %v1769
        %1771 = vmatprep.subr.mxu0 0.0
        %v1772 = vand.u32 %v1058, 4294901760
        %v1773 = vsub.f32 %v1058, %v1772
        %v1774 = vand.u32 %v1773, 4294901760
        %1775 = vmatpush1.xpose.msra.mxu0 %v1774
        %1776 = vmatprep.subr.mxu0 0.0
        %v1777 = vand.u32 %v1061, 4294901760
        %v1778 = vsub.f32 %v1061, %v1777
        %v1779 = vand.u32 %v1778, 4294901760
        %1780 = vmatpush1.xpose.msra.mxu0 %v1779
        %1781 = vmatprep.subr.mxu0 0.0
        %v1782 = vand.u32 %v1064, 4294901760
        %v1783 = vsub.f32 %v1064, %v1782
        %v1784 = vand.u32 %v1783, 4294901760
        %1785 = vmatpush1.xpose.msra.mxu0 %v1784
        %1786 = vmatprep.subr.mxu0 0.0
        %v1787 = vand.u32 %v1067, 4294901760
        %v1788 = vsub.f32 %v1067, %v1787
        %v1789 = vand.u32 %v1788, 4294901760
        %1790 = vmatpush1.xpose.msra.mxu0 %v1789
        %1791 = vmatprep.subr.mxu0 0.0
        %v1792 = vand.u32 %v1070, 4294901760
        %v1793 = vsub.f32 %v1070, %v1792
        %v1794 = vand.u32 %v1793, 4294901760
        %1795 = vmatpush1.xpose.msra.mxu0 %v1794
        %1796 = vmatprep.subr.mxu0 0.0
        %v1797 = vand.u32 %v1073, 4294901760
        %v1798 = vsub.f32 %v1073, %v1797
        %v1799 = vand.u32 %v1798, 4294901760
        %1800 = vmatpush1.xpose.msra.mxu0 %v1799
        %1801 = vmatprep.subr.mxu0 0.0
        %v1802 = vand.u32 %v1076, 4294901760
        %v1803 = vsub.f32 %v1076, %v1802
        %v1804 = vand.u32 %v1803, 4294901760
        %1805 = vmatpush1.xpose.msra.mxu0 %v1804
        %1806 = vmatprep.subr.mxu0 0.0
        %v1807 = vand.u32 %v1079, 4294901760
        %v1808 = vsub.f32 %v1079, %v1807
        %v1809 = vand.u32 %v1808, 4294901760
        %1810 = vmatpush1.xpose.msra.mxu0 %v1809
        %1811 = vmatprep.subr.mxu0 0.0
        %v1812 = vand.u32 %v1082, 4294901760
        %v1813 = vsub.f32 %v1082, %v1812
        %v1814 = vand.u32 %v1813, 4294901760
        %1815 = vmatpush1.xpose.msra.mxu0 %v1814
        %1816 = vmatprep.subr.mxu0 0.0
        %1817 = vmatpush1.xpose.msra.mxu0 0.0
        %1818 = vmatprep.subr.mxu0 0.0
        %1819 = vmatpush1.xpose.msra.mxu0 0.0
        %1820 = vmatprep.subr.mxu0 0.0
        %1821 = vmatpush1.xpose.msra.mxu0 0.0
        %1822 = vmatprep.subr.mxu0 0.0
        %1823 = vmatpush1.xpose.msra.mxu0 0.0
        %1824 = vmatprep.subr.mxu0 0.0
        %1825 = vmatpush1.xpose.msra.mxu0 0.0
        %1826 = vmatprep.subr.mxu0 0.0
        %1827 = vmatpush1.xpose.msra.mxu0 0.0
        %1828 = vmatprep.subr.mxu0 0.0
        %1829 = vmatpush1.xpose.msra.mxu0 0.0
        %1830 = vmatprep.subr.mxu0 0.0
        %1831 = vmatpush1.xpose.msra.mxu0 0.0
        %1832 = vmatprep.subr.mxu0 0.0
        %1833 = vmatpush1.xpose.msra.mxu0 0.0
        %1834 = vmatprep.subr.mxu0 0.0
        %1835 = vmatpush1.xpose.msra.mxu0 0.0
        %1836 = vmatprep.subr.mxu0 0.0
        %1837 = vmatpush1.xpose.msra.mxu0 0.0
        %1838 = vmatprep.subr.mxu0 0.0
        %1839 = vmatpush1.xpose.msra.mxu0 0.0
        %1840 = vmatprep.subr.mxu0 0.0
        %1841 = vmatpush1.xpose.msra.mxu0 0.0
        %1842 = vmatprep.subr.mxu0 0.0
        %1843 = vmatpush1.xpose.msra.mxu0 0.0
        %1844 = vmatprep.subr.mxu0 0.0
        %1845 = vmatpush1.xpose.msra.mxu0 0.0
        %1846 = vmatprep.subr.mxu0 0.0
        %1847 = vmatpush1.xpose.msra.mxu0 0.0
        %1848 = vmatprep.mubr.f32.mxu0 0.0
        %v1849 = vand.u32 %v1013, 4294901760
        %1850 = vmatmul.mubr.f32.gmra.mrb[0].mxu0 %v1849
        %v1851 = vpop.f32.mrb[0].mxu0
        %v1852 = vadd.f32 %v1677, %v1851
        %v1853 = vpop.f32.mrb[0].mxu0
        %1854 = vmatprep.mubr.f32.mxu0 0.0
        %v1855 = vand.u32 %v1016, 4294901760
        %1856 = vmatmul.mubr.f32.gmra.mrb[0].mxu0 %v1855
        %v1857 = vpop.f32.mrb[0].mxu0
        %v1858 = vadd.f32 %v1685, %v1857
        %v1859 = vpop.f32.mrb[0].mxu0
        %1860 = vmatprep.mubr.f32.mxu0 0.0
        %v1861 = vand.u32 %v1019, 4294901760
        %1862 = vmatmul.mubr.f32.gmra.mrb[0].mxu0 %v1861
        %v1863 = vpop.f32.mrb[0].mxu0
        %v1864 = vadd.f32 %v1693, %v1863
        %v1865 = vpop.f32.mrb[0].mxu0
        %1866 = vmatprep.mubr.f32.mxu0 0.0
        %v1867 = vand.u32 %v1022, 4294901760
        %1868 = vmatmul.mubr.f32.gmra.mrb[0].mxu0 %v1867
        %v1869 = vpop.f32.mrb[0].mxu0
        %v1870 = vadd.f32 %v1701, %v1869
        %v1871 = vpop.f32.mrb[0].mxu0
        %1872 = vmatprep.mubr.f32.mxu0 0.0
        %v1873 = vand.u32 %v1025, 4294901760
        %1874 = vmatmul.mubr.f32.gmra.mrb[0].mxu0 %v1873
        %v1875 = vpop.f32.mrb[0].mxu0
        %v1876 = vadd.f32 %v1709, %v1875
        %v1877 = vpop.f32.mrb[0].mxu0
        %1878 = vmatprep.mubr.f32.mxu0 0.0
        %v1879 = vand.u32 %v1028, 4294901760
        %1880 = vmatmul.mubr.f32.gmra.mrb[0].mxu0 %v1879
        %v1881 = vpop.f32.mrb[0].mxu0
        %v1882 = vadd.f32 %v1717, %v1881
        %v1883 = vpop.f32.mrb[0].mxu0
        %1884 = vmatprep.mubr.f32.mxu0 0.0
        %v1885 = vand.u32 %v1031, 4294901760
        %1886 = vmatmul.mubr.f32.gmra.mrb[0].mxu0 %v1885
        %v1887 = vpop.f32.mrb[0].mxu0
        %v1888 = vadd.f32 %v1725, %v1887
        %v1889 = vpop.f32.mrb[0].mxu0
        %1890 = vmatprep.mubr.f32.mxu0 0.0
        %v1891 = vand.u32 %v1034, 4294901760
        %1892 = vmatmul.mubr.f32.gmra.mrb[0].mxu0 %v1891
        %v1893 = vpop.f32.mrb[0].mxu0
        %v1894 = vadd.f32 %v1733, %v1893
        %v1895 = vpop.f32.mrb[0].mxu0
        %1896 = vdwg.mxu0
        %1897 = vmatprep.subr.mxu0 0.0
        %v1898 = vand.u32 %v1037, 4294901760
        %1899 = vmatpush1.xpose.msra.mxu0 %v1898
        %1900 = vmatprep.subr.mxu0 0.0
        %v1901 = vand.u32 %v1040, 4294901760
        %1902 = vmatpush1.xpose.msra.mxu0 %v1901
        %1903 = vmatprep.subr.mxu0 0.0
        %v1904 = vand.u32 %v1043, 4294901760
        %1905 = vmatpush1.xpose.msra.mxu0 %v1904
        %1906 = vmatprep.subr.mxu0 0.0
        %v1907 = vand.u32 %v1046, 4294901760
        %1908 = vmatpush1.xpose.msra.mxu0 %v1907
        %1909 = vmatprep.subr.mxu0 0.0
        %v1910 = vand.u32 %v1049, 4294901760
        %1911 = vmatpush1.xpose.msra.mxu0 %v1910
        %1912 = vmatprep.subr.mxu0 0.0
        %v1913 = vand.u32 %v1052, 4294901760
        %1914 = vmatpush1.xpose.msra.mxu0 %v1913
        %1915 = vmatprep.subr.mxu0 0.0
        %v1916 = vand.u32 %v1055, 4294901760
        %1917 = vmatpush1.xpose.msra.mxu0 %v1916
        %1918 = vmatprep.subr.mxu0 0.0
        %v1919 = vand.u32 %v1058, 4294901760
        %1920 = vmatpush1.xpose.msra.mxu0 %v1919
        %1921 = vmatprep.subr.mxu0 0.0
        %v1922 = vand.u32 %v1061, 4294901760
        %1923 = vmatpush1.xpose.msra.mxu0 %v1922
        %1924 = vmatprep.subr.mxu0 0.0
        %v1925 = vand.u32 %v1064, 4294901760
        %1926 = vmatpush1.xpose.msra.mxu0 %v1925
        %1927 = vmatprep.subr.mxu0 0.0
        %v1928 = vand.u32 %v1067, 4294901760
        %1929 = vmatpush1.xpose.msra.mxu0 %v1928
        %1930 = vmatprep.subr.mxu0 0.0
        %v1931 = vand.u32 %v1070, 4294901760
        %1932 = vmatpush1.xpose.msra.mxu0 %v1931
        %1933 = vmatprep.subr.mxu0 0.0
        %v1934 = vand.u32 %v1073, 4294901760
        %1935 = vmatpush1.xpose.msra.mxu0 %v1934
        %1936 = vmatprep.subr.mxu0 0.0
        %v1937 = vand.u32 %v1076, 4294901760
        %1938 = vmatpush1.xpose.msra.mxu0 %v1937
        %1939 = vmatprep.subr.mxu0 0.0
        %v1940 = vand.u32 %v1079, 4294901760
        %1941 = vmatpush1.xpose.msra.mxu0 %v1940
        %1942 = vmatprep.subr.mxu0 0.0
        %v1943 = vand.u32 %v1082, 4294901760
        %1944 = vmatpush1.xpose.msra.mxu0 %v1943
        %1945 = vmatprep.subr.mxu0 0.0
        %1946 = vmatpush1.xpose.msra.mxu0 0.0
        %1947 = vmatprep.subr.mxu0 0.0
        %1948 = vmatpush1.xpose.msra.mxu0 0.0
        %1949 = vmatprep.subr.mxu0 0.0
        %1950 = vmatpush1.xpose.msra.mxu0 0.0
        %1951 = vmatprep.subr.mxu0 0.0
        %1952 = vmatpush1.xpose.msra.mxu0 0.0
        %1953 = vmatprep.subr.mxu0 0.0
        %1954 = vmatpush1.xpose.msra.mxu0 0.0
        %1955 = vmatprep.subr.mxu0 0.0
        %1956 = vmatpush1.xpose.msra.mxu0 0.0
        %1957 = vmatprep.subr.mxu0 0.0
        %1958 = vmatpush1.xpose.msra.mxu0 0.0
        %1959 = vmatprep.subr.mxu0 0.0
        %1960 = vmatpush1.xpose.msra.mxu0 0.0
        %1961 = vmatprep.subr.mxu0 0.0
        %1962 = vmatpush1.xpose.msra.mxu0 0.0
        %1963 = vmatprep.subr.mxu0 0.0
        %1964 = vmatpush1.xpose.msra.mxu0 0.0
        %1965 = vmatprep.subr.mxu0 0.0
        %1966 = vmatpush1.xpose.msra.mxu0 0.0
        %1967 = vmatprep.subr.mxu0 0.0
        %1968 = vmatpush1.xpose.msra.mxu0 0.0
        %1969 = vmatprep.subr.mxu0 0.0
        %1970 = vmatpush1.xpose.msra.mxu0 0.0
        %1971 = vmatprep.subr.mxu0 0.0
        %1972 = vmatpush1.xpose.msra.mxu0 0.0
        %1973 = vmatprep.subr.mxu0 0.0
        %1974 = vmatpush1.xpose.msra.mxu0 0.0
        %1975 = vmatprep.subr.mxu0 0.0
        %1976 = vmatpush1.xpose.msra.mxu0 0.0
        %1977 = vmatprep.mubr.f32.mxu0 0.0
        %v1978 = vand.u32 %v1013, 4294901760
        %1979 = vmatmul.mubr.f32.gmra.mrb[0].mxu0 %v1978
        %v1980 = vpop.f32.mrb[0].mxu0
        %v1981 = vadd.f32 %v1852, %v1980
        %v1982 = vpop.f32.mrb[0].mxu0
        %1983 = vmatprep.mubr.f32.mxu0 0.0
        %v1984 = vand.u32 %v1016, 4294901760
        %1985 = vmatmul.mubr.f32.gmra.mrb[0].mxu0 %v1984
        %v1986 = vpop.f32.mrb[0].mxu0
        %v1987 = vadd.f32 %v1858, %v1986
        %v1988 = vpop.f32.mrb[0].mxu0
        %1989 = vmatprep.mubr.f32.mxu0 0.0
        %v1990 = vand.u32 %v1019, 4294901760
        %1991 = vmatmul.mubr.f32.gmra.mrb[0].mxu0 %v1990
        %v1992 = vpop.f32.mrb[0].mxu0
        %v1993 = vadd.f32 %v1864, %v1992
        %v1994 = vpop.f32.mrb[0].mxu0
        %1995 = vmatprep.mubr.f32.mxu0 0.0
        %v1996 = vand.u32 %v1022, 4294901760
        %1997 = vmatmul.mubr.f32.gmra.mrb[0].mxu0 %v1996
        %v1998 = vpop.f32.mrb[0].mxu0
        %v1999 = vadd.f32 %v1870, %v1998
        %v2000 = vpop.f32.mrb[0].mxu0
        %2001 = vmatprep.mubr.f32.mxu0 0.0
        %v2002 = vand.u32 %v1025, 4294901760
        %2003 = vmatmul.mubr.f32.gmra.mrb[0].mxu0 %v2002
        %v2004 = vpop.f32.mrb[0].mxu0
        %v2005 = vadd.f32 %v1876, %v2004
        %v2006 = vpop.f32.mrb[0].mxu0
        %2007 = vmatprep.mubr.f32.mxu0 0.0
        %v2008 = vand.u32 %v1028, 4294901760
        %2009 = vmatmul.mubr.f32.gmra.mrb[0].mxu0 %v2008
        %v2010 = vpop.f32.mrb[0].mxu0
        %v2011 = vadd.f32 %v1882, %v2010
        %v2012 = vpop.f32.mrb[0].mxu0
        %2013 = vmatprep.mubr.f32.mxu0 0.0
        %v2014 = vand.u32 %v1031, 4294901760
        %2015 = vmatmul.mubr.f32.gmra.mrb[0].mxu0 %v2014
        %v2016 = vpop.f32.mrb[0].mxu0
        %v2017 = vadd.f32 %v1888, %v2016
        %v2018 = vpop.f32.mrb[0].mxu0
        %2019 = vmatprep.mubr.f32.mxu0 0.0
        %v2020 = vand.u32 %v1034, 4294901760
        %2021 = vmatmul.mubr.f32.gmra.mrb[0].mxu0 %v2020
        %v2022 = vpop.f32.mrb[0].mxu0
        %v2023 = vadd.f32 %v1894, %v2022
        %v2024 = vpop.f32.mrb[0].mxu0
        %2025 = vdwg.mxu0
        %v2026 = vld [vmem:[#allocation2] sm:$0x1]
        %v2028 = vlaneseq
        %v2029 = vshrl.u32 %v2028, 7
        %v2030 = vsub.s32 0, %v2029
        %v2031 = vrot.slane %v2026, %v2030
        %v2034 = vsel %vm1011, %v1003, 0
        %v2037 = vsel %vm1011, %v1004, 0
        %v2040 = vsel %vm1011, %v1005, 0
        %v2043 = vsel %vm1011, %v1006, 0
        %v2046 = vsel %vm1011, %v1007, 0
        %v2049 = vsel %vm1011, %v1008, 0
        %v2052 = vsel %vm1011, %v1009, 0
        %v2055 = vsel %vm1011, %v1010, 0
        %2057 = vmatprep.subr.mxu0 0.0
        %2058 = vmatpush1.msra.mxu0 1.0
        %2059 = vmatprep.subr.mxu0 0.0
        %2060 = vmatpush1.msra.mxu0 1.0
        %2061 = vmatprep.subr.mxu0 0.0
        %2062 = vmatpush1.msra.mxu0 1.0
        %2063 = vmatprep.subr.mxu0 0.0
        %2064 = vmatpush1.msra.mxu0 1.0
        %2065 = vmatprep.subr.mxu0 0.0
        %2066 = vmatpush1.msra.mxu0 0.0
        %2067 = vmatprep.subr.mxu0 0.0
        %2068 = vmatpush1.msra.mxu0 0.0
        %2069 = vmatprep.subr.mxu0 0.0
        %2070 = vmatpush1.msra.mxu0 0.0
        %2071 = vmatprep.subr.mxu0 0.0
        %2072 = vmatpush1.msra.mxu0 0.0
        %2073 = vmatprep.subr.mxu0 0.0
        %2074 = vmatpush1.msra.mxu0 0.0
        %2075 = vmatprep.subr.mxu0 0.0
        %2076 = vmatpush1.msra.mxu0 0.0
        %2077 = vmatprep.subr.mxu0 0.0
        %2078 = vmatpush1.msra.mxu0 0.0
        %2079 = vmatprep.subr.mxu0 0.0
        %2080 = vmatpush1.msra.mxu0 0.0
        %2081 = vmatprep.subr.mxu0 0.0
        %2082 = vmatpush1.msra.mxu0 0.0
        %2083 = vmatprep.subr.mxu0 0.0
        %2084 = vmatpush1.msra.mxu0 0.0
        %2085 = vmatprep.subr.mxu0 0.0
        %2086 = vmatpush1.msra.mxu0 0.0
        %2087 = vmatprep.subr.mxu0 0.0
        %2088 = vmatpush1.msra.mxu0 0.0
        %2089 = vmatprep.subr.mxu0 0.0
        %2090 = vmatpush1.msra.mxu0 0.0
        %2091 = vmatprep.subr.mxu0 0.0
        %2092 = vmatpush1.msra.mxu0 0.0
        %2093 = vmatprep.subr.mxu0 0.0
        %2094 = vmatpush1.msra.mxu0 0.0
        %2095 = vmatprep.subr.mxu0 0.0
        %2096 = vmatpush1.msra.mxu0 0.0
        %2097 = vmatprep.subr.mxu0 0.0
        %2098 = vmatpush1.msra.mxu0 0.0
        %2099 = vmatprep.subr.mxu0 0.0
        %2100 = vmatpush1.msra.mxu0 0.0
        %2101 = vmatprep.subr.mxu0 0.0
        %2102 = vmatpush1.msra.mxu0 0.0
        %2103 = vmatprep.subr.mxu0 0.0
        %2104 = vmatpush1.msra.mxu0 0.0
        %2105 = vmatprep.subr.mxu0 0.0
        %2106 = vmatpush1.msra.mxu0 0.0
        %2107 = vmatprep.subr.mxu0 0.0
        %2108 = vmatpush1.msra.mxu0 0.0
        %2109 = vmatprep.subr.mxu0 0.0
        %2110 = vmatpush1.msra.mxu0 0.0
        %2111 = vmatprep.subr.mxu0 0.0
        %2112 = vmatpush1.msra.mxu0 0.0
        %2113 = vmatprep.subr.mxu0 0.0
        %2114 = vmatpush1.msra.mxu0 0.0
        %2115 = vmatprep.subr.mxu0 0.0
        %2116 = vmatpush1.msra.mxu0 0.0
        %2117 = vmatprep.subr.mxu0 0.0
        %2118 = vmatpush1.msra.mxu0 0.0
        %2119 = vmatprep.subr.mxu0 0.0
        %2120 = vmatpush1.msra.mxu0 0.0
        %2121 = vmatprep.mubr.f32.mxu0 0.0
        %v2122 = vand.u32 %v2034, 4294901760
        %v2123 = vsub.f32 %v2034, %v2122
        %v2124 = vand.u32 %v2123, 4294901760
        %v2125 = vsub.f32 %v2123, %v2124
        %v2126 = vand.u32 %v2125, 4294901760
        %2127 = vmatmul.mubr.f32.gmra.mrb[0].mxu0 %v2126
        %v2128 = vpop.f32.mrb[0].mxu0
        %v2129 = vadd.f32 %v2031, %v2128
        %v2130 = vpop.f32.mrb[0].mxu0
        %2131 = vmatprep.mubr.f32.mxu0 0.0
        %v2132 = vand.u32 %v2037, 4294901760
        %v2133 = vsub.f32 %v2037, %v2132
        %v2134 = vand.u32 %v2133, 4294901760
        %v2135 = vsub.f32 %v2133, %v2134
        %v2136 = vand.u32 %v2135, 4294901760
        %2137 = vmatmul.mubr.f32.gmra.mrb[0].mxu0 %v2136
        %v2138 = vpop.f32.mrb[0].mxu0
        %v2139 = vadd.f32 %v2031, %v2138
        %v2140 = vpop.f32.mrb[0].mxu0
        %2141 = vmatprep.mubr.f32.mxu0 0.0
        %v2142 = vand.u32 %v2040, 4294901760
        %v2143 = vsub.f32 %v2040, %v2142
        %v2144 = vand.u32 %v2143, 4294901760
        %v2145 = vsub.f32 %v2143, %v2144
        %v2146 = vand.u32 %v2145, 4294901760
        %2147 = vmatmul.mubr.f32.gmra.mrb[0].mxu0 %v2146
        %v2148 = vpop.f32.mrb[0].mxu0
        %v2149 = vadd.f32 %v2031, %v2148
        %v2150 = vpop.f32.mrb[0].mxu0
        %2151 = vmatprep.mubr.f32.mxu0 0.0
        %v2152 = vand.u32 %v2043, 4294901760
        %v2153 = vsub.f32 %v2043, %v2152
        %v2154 = vand.u32 %v2153, 4294901760
        %v2155 = vsub.f32 %v2153, %v2154
        %v2156 = vand.u32 %v2155, 4294901760
        %2157 = vmatmul.mubr.f32.gmra.mrb[0].mxu0 %v2156
        %v2158 = vpop.f32.mrb[0].mxu0
        %v2159 = vadd.f32 %v2031, %v2158
        %v2160 = vpop.f32.mrb[0].mxu0
        %2161 = vmatprep.mubr.f32.mxu0 0.0
        %v2162 = vand.u32 %v2046, 4294901760
        %v2163 = vsub.f32 %v2046, %v2162
        %v2164 = vand.u32 %v2163, 4294901760
        %v2165 = vsub.f32 %v2163, %v2164
        %v2166 = vand.u32 %v2165, 4294901760
        %2167 = vmatmul.mubr.f32.gmra.mrb[0].mxu0 %v2166
        %v2168 = vpop.f32.mrb[0].mxu0
        %v2169 = vadd.f32 %v2031, %v2168
        %v2170 = vpop.f32.mrb[0].mxu0
        %2171 = vmatprep.mubr.f32.mxu0 0.0
        %v2172 = vand.u32 %v2049, 4294901760
        %v2173 = vsub.f32 %v2049, %v2172
        %v2174 = vand.u32 %v2173, 4294901760
        %v2175 = vsub.f32 %v2173, %v2174
        %v2176 = vand.u32 %v2175, 4294901760
        %2177 = vmatmul.mubr.f32.gmra.mrb[0].mxu0 %v2176
        %v2178 = vpop.f32.mrb[0].mxu0
        %v2179 = vadd.f32 %v2031, %v2178
        %v2180 = vpop.f32.mrb[0].mxu0
        %2181 = vmatprep.mubr.f32.mxu0 0.0
        %v2182 = vand.u32 %v2052, 4294901760
        %v2183 = vsub.f32 %v2052, %v2182
        %v2184 = vand.u32 %v2183, 4294901760
        %v2185 = vsub.f32 %v2183, %v2184
        %v2186 = vand.u32 %v2185, 4294901760
        %2187 = vmatmul.mubr.f32.gmra.mrb[0].mxu0 %v2186
        %v2188 = vpop.f32.mrb[0].mxu0
        %v2189 = vadd.f32 %v2031, %v2188
        %v2190 = vpop.f32.mrb[0].mxu0
        %2191 = vmatprep.mubr.f32.mxu0 0.0
        %v2192 = vand.u32 %v2055, 4294901760
        %v2193 = vsub.f32 %v2055, %v2192
        %v2194 = vand.u32 %v2193, 4294901760
        %v2195 = vsub.f32 %v2193, %v2194
        %v2196 = vand.u32 %v2195, 4294901760
        %2197 = vmatmul.mubr.f32.gmra.mrb[0].mxu0 %v2196
        %v2198 = vpop.f32.mrb[0].mxu0
        %v2199 = vadd.f32 %v2031, %v2198
        %v2200 = vpop.f32.mrb[0].mxu0
        %2201 = vdwg.mxu0
        %2202 = vmatprep.subr.mxu0 0.0
        %2203 = vmatpush1.msra.mxu0 0.0
        %2204 = vmatprep.subr.mxu0 0.0
        %2205 = vmatpush1.msra.mxu0 0.0
        %2206 = vmatprep.subr.mxu0 0.0
        %2207 = vmatpush1.msra.mxu0 0.0
        %2208 = vmatprep.subr.mxu0 0.0
        %2209 = vmatpush1.msra.mxu0 0.0
        %2210 = vmatprep.subr.mxu0 0.0
        %2211 = vmatpush1.msra.mxu0 0.0
        %2212 = vmatprep.subr.mxu0 0.0
        %2213 = vmatpush1.msra.mxu0 0.0
        %2214 = vmatprep.subr.mxu0 0.0
        %2215 = vmatpush1.msra.mxu0 0.0
        %2216 = vmatprep.subr.mxu0 0.0
        %2217 = vmatpush1.msra.mxu0 0.0
        %2218 = vmatprep.subr.mxu0 0.0
        %2219 = vmatpush1.msra.mxu0 0.0
        %2220 = vmatprep.subr.mxu0 0.0
        %2221 = vmatpush1.msra.mxu0 0.0
        %2222 = vmatprep.subr.mxu0 0.0
        %2223 = vmatpush1.msra.mxu0 0.0
        %2224 = vmatprep.subr.mxu0 0.0
        %2225 = vmatpush1.msra.mxu0 0.0
        %2226 = vmatprep.subr.mxu0 0.0
        %2227 = vmatpush1.msra.mxu0 0.0
        %2228 = vmatprep.subr.mxu0 0.0
        %2229 = vmatpush1.msra.mxu0 0.0
        %2230 = vmatprep.subr.mxu0 0.0
        %2231 = vmatpush1.msra.mxu0 0.0
        %2232 = vmatprep.subr.mxu0 0.0
        %2233 = vmatpush1.msra.mxu0 0.0
        %2234 = vmatprep.subr.mxu0 0.0
        %2235 = vmatpush1.msra.mxu0 0.0
        %2236 = vmatprep.subr.mxu0 0.0
        %2237 = vmatpush1.msra.mxu0 0.0
        %2238 = vmatprep.subr.mxu0 0.0
        %2239 = vmatpush1.msra.mxu0 0.0
        %2240 = vmatprep.subr.mxu0 0.0
        %2241 = vmatpush1.msra.mxu0 0.0
        %2242 = vmatprep.subr.mxu0 0.0
        %2243 = vmatpush1.msra.mxu0 0.0
        %2244 = vmatprep.subr.mxu0 0.0
        %2245 = vmatpush1.msra.mxu0 0.0
        %2246 = vmatprep.subr.mxu0 0.0
        %2247 = vmatpush1.msra.mxu0 0.0
        %2248 = vmatprep.subr.mxu0 0.0
        %2249 = vmatpush1.msra.mxu0 0.0
        %2250 = vmatprep.subr.mxu0 0.0
        %2251 = vmatpush1.msra.mxu0 0.0
        %2252 = vmatprep.subr.mxu0 0.0
        %2253 = vmatpush1.msra.mxu0 0.0
        %2254 = vmatprep.subr.mxu0 0.0
        %2255 = vmatpush1.msra.mxu0 0.0
        %2256 = vmatprep.subr.mxu0 0.0
        %2257 = vmatpush1.msra.mxu0 0.0
        %2258 = vmatprep.subr.mxu0 0.0
        %2259 = vmatpush1.msra.mxu0 0.0
        %2260 = vmatprep.subr.mxu0 0.0
        %2261 = vmatpush1.msra.mxu0 0.0
        %2262 = vmatprep.subr.mxu0 0.0
        %2263 = vmatpush1.msra.mxu0 0.0
        %2264 = vmatprep.subr.mxu0 0.0
        %2265 = vmatpush1.msra.mxu0 0.0
        %2266 = vmatprep.mubr.f32.mxu0 0.0
        %v2267 = vand.u32 %v2034, 4294901760
        %2268 = vmatmul.mubr.f32.gmra.mrb[0].mxu0 %v2267
        %v2269 = vpop.f32.mrb[0].mxu0
        %v2270 = vadd.f32 %v2129, %v2269
        %v2271 = vpop.f32.mrb[0].mxu0
        %2272 = vmatprep.mubr.f32.mxu0 0.0
        %v2273 = vand.u32 %v2037, 4294901760
        %2274 = vmatmul.mubr.f32.gmra.mrb[0].mxu0 %v2273
        %v2275 = vpop.f32.mrb[0].mxu0
        %v2276 = vadd.f32 %v2139, %v2275
        %v2277 = vpop.f32.mrb[0].mxu0
        %2278 = vmatprep.mubr.f32.mxu0 0.0
        %v2279 = vand.u32 %v2040, 4294901760
        %2280 = vmatmul.mubr.f32.gmra.mrb[0].mxu0 %v2279
        %v2281 = vpop.f32.mrb[0].mxu0
        %v2282 = vadd.f32 %v2149, %v2281
        %v2283 = vpop.f32.mrb[0].mxu0
        %2284 = vmatprep.mubr.f32.mxu0 0.0
        %v2285 = vand.u32 %v2043, 4294901760
        %2286 = vmatmul.mubr.f32.gmra.mrb[0].mxu0 %v2285
        %v2287 = vpop.f32.mrb[0].mxu0
        %v2288 = vadd.f32 %v2159, %v2287
        %v2289 = vpop.f32.mrb[0].mxu0
        %2290 = vmatprep.mubr.f32.mxu0 0.0
        %v2291 = vand.u32 %v2046, 4294901760
        %2292 = vmatmul.mubr.f32.gmra.mrb[0].mxu0 %v2291
        %v2293 = vpop.f32.mrb[0].mxu0
        %v2294 = vadd.f32 %v2169, %v2293
        %v2295 = vpop.f32.mrb[0].mxu0
        %2296 = vmatprep.mubr.f32.mxu0 0.0
        %v2297 = vand.u32 %v2049, 4294901760
        %2298 = vmatmul.mubr.f32.gmra.mrb[0].mxu0 %v2297
        %v2299 = vpop.f32.mrb[0].mxu0
        %v2300 = vadd.f32 %v2179, %v2299
        %v2301 = vpop.f32.mrb[0].mxu0
        %2302 = vmatprep.mubr.f32.mxu0 0.0
        %v2303 = vand.u32 %v2052, 4294901760
        %2304 = vmatmul.mubr.f32.gmra.mrb[0].mxu0 %v2303
        %v2305 = vpop.f32.mrb[0].mxu0
        %v2306 = vadd.f32 %v2189, %v2305
        %v2307 = vpop.f32.mrb[0].mxu0
        %2308 = vmatprep.mubr.f32.mxu0 0.0
        %v2309 = vand.u32 %v2055, 4294901760
        %2310 = vmatmul.mubr.f32.gmra.mrb[0].mxu0 %v2309
        %v2311 = vpop.f32.mrb[0].mxu0
        %v2312 = vadd.f32 %v2199, %v2311
        %v2313 = vpop.f32.mrb[0].mxu0
        %2314 = vdwg.mxu0
        %2315 = vmatprep.subr.mxu0 0.0
        %2316 = vmatpush1.msra.mxu0 0.0
        %2317 = vmatprep.subr.mxu0 0.0
        %2318 = vmatpush1.msra.mxu0 0.0
        %2319 = vmatprep.subr.mxu0 0.0
        %2320 = vmatpush1.msra.mxu0 0.0
        %2321 = vmatprep.subr.mxu0 0.0
        %2322 = vmatpush1.msra.mxu0 0.0
        %2323 = vmatprep.subr.mxu0 0.0
        %2324 = vmatpush1.msra.mxu0 0.0
        %2325 = vmatprep.subr.mxu0 0.0
        %2326 = vmatpush1.msra.mxu0 0.0
        %2327 = vmatprep.subr.mxu0 0.0
        %2328 = vmatpush1.msra.mxu0 0.0
        %2329 = vmatprep.subr.mxu0 0.0
        %2330 = vmatpush1.msra.mxu0 0.0
        %2331 = vmatprep.subr.mxu0 0.0
        %2332 = vmatpush1.msra.mxu0 0.0
        %2333 = vmatprep.subr.mxu0 0.0
        %2334 = vmatpush1.msra.mxu0 0.0
        %2335 = vmatprep.subr.mxu0 0.0
        %2336 = vmatpush1.msra.mxu0 0.0
        %2337 = vmatprep.subr.mxu0 0.0
        %2338 = vmatpush1.msra.mxu0 0.0
        %2339 = vmatprep.subr.mxu0 0.0
        %2340 = vmatpush1.msra.mxu0 0.0
        %2341 = vmatprep.subr.mxu0 0.0
        %2342 = vmatpush1.msra.mxu0 0.0
        %2343 = vmatprep.subr.mxu0 0.0
        %2344 = vmatpush1.msra.mxu0 0.0
        %2345 = vmatprep.subr.mxu0 0.0
        %2346 = vmatpush1.msra.mxu0 0.0
        %2347 = vmatprep.subr.mxu0 0.0
        %2348 = vmatpush1.msra.mxu0 0.0
        %2349 = vmatprep.subr.mxu0 0.0
        %2350 = vmatpush1.msra.mxu0 0.0
        %2351 = vmatprep.subr.mxu0 0.0
        %2352 = vmatpush1.msra.mxu0 0.0
        %2353 = vmatprep.subr.mxu0 0.0
        %2354 = vmatpush1.msra.mxu0 0.0
        %2355 = vmatprep.subr.mxu0 0.0
        %2356 = vmatpush1.msra.mxu0 0.0
        %2357 = vmatprep.subr.mxu0 0.0
        %2358 = vmatpush1.msra.mxu0 0.0
        %2359 = vmatprep.subr.mxu0 0.0
        %2360 = vmatpush1.msra.mxu0 0.0
        %2361 = vmatprep.subr.mxu0 0.0
        %2362 = vmatpush1.msra.mxu0 0.0
        %2363 = vmatprep.subr.mxu0 0.0
        %2364 = vmatpush1.msra.mxu0 0.0
        %2365 = vmatprep.subr.mxu0 0.0
        %2366 = vmatpush1.msra.mxu0 0.0
        %2367 = vmatprep.subr.mxu0 0.0
        %2368 = vmatpush1.msra.mxu0 0.0
        %2369 = vmatprep.subr.mxu0 0.0
        %2370 = vmatpush1.msra.mxu0 0.0
        %2371 = vmatprep.subr.mxu0 0.0
        %2372 = vmatpush1.msra.mxu0 0.0
        %2373 = vmatprep.subr.mxu0 0.0
        %2374 = vmatpush1.msra.mxu0 0.0
        %2375 = vmatprep.subr.mxu0 0.0
        %2376 = vmatpush1.msra.mxu0 0.0
        %2377 = vmatprep.subr.mxu0 0.0
        %2378 = vmatpush1.msra.mxu0 0.0
        %2379 = vmatprep.mubr.f32.mxu0 0.0
        %v2380 = vand.u32 %v2034, 4294901760
        %v2381 = vsub.f32 %v2034, %v2380
        %2382 = vmatmul.mubr.f32.gmra.mrb[0].mxu0 %v2381
        %v2383 = vpop.f32.mrb[0].mxu0
        %v2384 = vadd.f32 %v2270, %v2383
        %v2385 = vpop.f32.mrb[0].mxu0
        %2386 = vmatprep.mubr.f32.mxu0 0.0
        %v2387 = vand.u32 %v2037, 4294901760
        %v2388 = vsub.f32 %v2037, %v2387
        %2389 = vmatmul.mubr.f32.gmra.mrb[0].mxu0 %v2388
        %v2390 = vpop.f32.mrb[0].mxu0
        %v2391 = vadd.f32 %v2276, %v2390
        %v2392 = vpop.f32.mrb[0].mxu0
        %2393 = vmatprep.mubr.f32.mxu0 0.0
        %v2394 = vand.u32 %v2040, 4294901760
        %v2395 = vsub.f32 %v2040, %v2394
        %2396 = vmatmul.mubr.f32.gmra.mrb[0].mxu0 %v2395
        %v2397 = vpop.f32.mrb[0].mxu0
        %v2398 = vadd.f32 %v2282, %v2397
        %v2399 = vpop.f32.mrb[0].mxu0
        %2400 = vmatprep.mubr.f32.mxu0 0.0
        %v2401 = vand.u32 %v2043, 4294901760
        %v2402 = vsub.f32 %v2043, %v2401
        %2403 = vmatmul.mubr.f32.gmra.mrb[0].mxu0 %v2402
        %v2404 = vpop.f32.mrb[0].mxu0
        %v2405 = vadd.f32 %v2288, %v2404
        %v2406 = vpop.f32.mrb[0].mxu0
        %2407 = vmatprep.mubr.f32.mxu0 0.0
        %v2408 = vand.u32 %v2046, 4294901760
        %v2409 = vsub.f32 %v2046, %v2408
        %2410 = vmatmul.mubr.f32.gmra.mrb[0].mxu0 %v2409
        %v2411 = vpop.f32.mrb[0].mxu0
        %v2412 = vadd.f32 %v2294, %v2411
        %v2413 = vpop.f32.mrb[0].mxu0
        %2414 = vmatprep.mubr.f32.mxu0 0.0
        %v2415 = vand.u32 %v2049, 4294901760
        %v2416 = vsub.f32 %v2049, %v2415
        %2417 = vmatmul.mubr.f32.gmra.mrb[0].mxu0 %v2416
        %v2418 = vpop.f32.mrb[0].mxu0
        %v2419 = vadd.f32 %v2300, %v2418
        %v2420 = vpop.f32.mrb[0].mxu0
        %2421 = vmatprep.mubr.f32.mxu0 0.0
        %v2422 = vand.u32 %v2052, 4294901760
        %v2423 = vsub.f32 %v2052, %v2422
        %2424 = vmatmul.mubr.f32.gmra.mrb[0].mxu0 %v2423
        %v2425 = vpop.f32.mrb[0].mxu0
        %v2426 = vadd.f32 %v2306, %v2425
        %v2427 = vpop.f32.mrb[0].mxu0
        %2428 = vmatprep.mubr.f32.mxu0 0.0
        %v2429 = vand.u32 %v2055, 4294901760
        %v2430 = vsub.f32 %v2055, %v2429
        %2431 = vmatmul.mubr.f32.gmra.mrb[0].mxu0 %v2430
        %v2432 = vpop.f32.mrb[0].mxu0
        %v2433 = vadd.f32 %v2312, %v2432
        %v2434 = vpop.f32.mrb[0].mxu0
        %2435 = vdwg.mxu0
        %2436 = vmatprep.subr.mxu0 0.0
        %2437 = vmatpush1.msra.mxu0 1.0
        %2438 = vmatprep.subr.mxu0 0.0
        %2439 = vmatpush1.msra.mxu0 1.0
        %2440 = vmatprep.subr.mxu0 0.0
        %2441 = vmatpush1.msra.mxu0 1.0
        %2442 = vmatprep.subr.mxu0 0.0
        %2443 = vmatpush1.msra.mxu0 1.0
        %2444 = vmatprep.subr.mxu0 0.0
        %2445 = vmatpush1.msra.mxu0 0.0
        %2446 = vmatprep.subr.mxu0 0.0
        %2447 = vmatpush1.msra.mxu0 0.0
        %2448 = vmatprep.subr.mxu0 0.0
        %2449 = vmatpush1.msra.mxu0 0.0
        %2450 = vmatprep.subr.mxu0 0.0
        %2451 = vmatpush1.msra.mxu0 0.0
        %2452 = vmatprep.subr.mxu0 0.0
        %2453 = vmatpush1.msra.mxu0 0.0
        %2454 = vmatprep.subr.mxu0 0.0
        %2455 = vmatpush1.msra.mxu0 0.0
        %2456 = vmatprep.subr.mxu0 0.0
        %2457 = vmatpush1.msra.mxu0 0.0
        %2458 = vmatprep.subr.mxu0 0.0
        %2459 = vmatpush1.msra.mxu0 0.0
        %2460 = vmatprep.subr.mxu0 0.0
        %2461 = vmatpush1.msra.mxu0 0.0
        %2462 = vmatprep.subr.mxu0 0.0
        %2463 = vmatpush1.msra.mxu0 0.0
        %2464 = vmatprep.subr.mxu0 0.0
        %2465 = vmatpush1.msra.mxu0 0.0
        %2466 = vmatprep.subr.mxu0 0.0
        %2467 = vmatpush1.msra.mxu0 0.0
        %2468 = vmatprep.subr.mxu0 0.0
        %2469 = vmatpush1.msra.mxu0 0.0
        %2470 = vmatprep.subr.mxu0 0.0
        %2471 = vmatpush1.msra.mxu0 0.0
        %2472 = vmatprep.subr.mxu0 0.0
        %2473 = vmatpush1.msra.mxu0 0.0
        %2474 = vmatprep.subr.mxu0 0.0
        %2475 = vmatpush1.msra.mxu0 0.0
        %2476 = vmatprep.subr.mxu0 0.0
        %2477 = vmatpush1.msra.mxu0 0.0
        %2478 = vmatprep.subr.mxu0 0.0
        %2479 = vmatpush1.msra.mxu0 0.0
        %2480 = vmatprep.subr.mxu0 0.0
        %2481 = vmatpush1.msra.mxu0 0.0
        %2482 = vmatprep.subr.mxu0 0.0
        %2483 = vmatpush1.msra.mxu0 0.0
        %2484 = vmatprep.subr.mxu0 0.0
        %2485 = vmatpush1.msra.mxu0 0.0
        %2486 = vmatprep.subr.mxu0 0.0
        %2487 = vmatpush1.msra.mxu0 0.0
        %2488 = vmatprep.subr.mxu0 0.0
        %2489 = vmatpush1.msra.mxu0 0.0
        %2490 = vmatprep.subr.mxu0 0.0
        %2491 = vmatpush1.msra.mxu0 0.0
        %2492 = vmatprep.subr.mxu0 0.0
        %2493 = vmatpush1.msra.mxu0 0.0
        %2494 = vmatprep.subr.mxu0 0.0
        %2495 = vmatpush1.msra.mxu0 0.0
        %2496 = vmatprep.subr.mxu0 0.0
        %2497 = vmatpush1.msra.mxu0 0.0
        %2498 = vmatprep.subr.mxu0 0.0
        %2499 = vmatpush1.msra.mxu0 0.0
        %2500 = vmatprep.mubr.f32.mxu0 0.0
        %v2501 = vand.u32 %v2034, 4294901760
        %v2502 = vsub.f32 %v2034, %v2501
        %v2503 = vand.u32 %v2502, 4294901760
        %2504 = vmatmul.mubr.f32.gmra.mrb[0].mxu0 %v2503
        %v2505 = vpop.f32.mrb[0].mxu0
        %v2506 = vadd.f32 %v2384, %v2505
        %v2507 = vpop.f32.mrb[0].mxu0
        %2508 = vmatprep.mubr.f32.mxu0 0.0
        %v2509 = vand.u32 %v2037, 4294901760
        %v2510 = vsub.f32 %v2037, %v2509
        %v2511 = vand.u32 %v2510, 4294901760
        %2512 = vmatmul.mubr.f32.gmra.mrb[0].mxu0 %v2511
        %v2513 = vpop.f32.mrb[0].mxu0
        %v2514 = vadd.f32 %v2391, %v2513
        %v2515 = vpop.f32.mrb[0].mxu0
        %2516 = vmatprep.mubr.f32.mxu0 0.0
        %v2517 = vand.u32 %v2040, 4294901760
        %v2518 = vsub.f32 %v2040, %v2517
        %v2519 = vand.u32 %v2518, 4294901760
        %2520 = vmatmul.mubr.f32.gmra.mrb[0].mxu0 %v2519
        %v2521 = vpop.f32.mrb[0].mxu0
        %v2522 = vadd.f32 %v2398, %v2521
        %v2523 = vpop.f32.mrb[0].mxu0
        %2524 = vmatprep.mubr.f32.mxu0 0.0
        %v2525 = vand.u32 %v2043, 4294901760
        %v2526 = vsub.f32 %v2043, %v2525
        %v2527 = vand.u32 %v2526, 4294901760
        %2528 = vmatmul.mubr.f32.gmra.mrb[0].mxu0 %v2527
        %v2529 = vpop.f32.mrb[0].mxu0
        %v2530 = vadd.f32 %v2405, %v2529
        %v2531 = vpop.f32.mrb[0].mxu0
        %2532 = vmatprep.mubr.f32.mxu0 0.0
        %v2533 = vand.u32 %v2046, 4294901760
        %v2534 = vsub.f32 %v2046, %v2533
        %v2535 = vand.u32 %v2534, 4294901760
        %2536 = vmatmul.mubr.f32.gmra.mrb[0].mxu0 %v2535
        %v2537 = vpop.f32.mrb[0].mxu0
        %v2538 = vadd.f32 %v2412, %v2537
        %v2539 = vpop.f32.mrb[0].mxu0
        %2540 = vmatprep.mubr.f32.mxu0 0.0
        %v2541 = vand.u32 %v2049, 4294901760
        %v2542 = vsub.f32 %v2049, %v2541
        %v2543 = vand.u32 %v2542, 4294901760
        %2544 = vmatmul.mubr.f32.gmra.mrb[0].mxu0 %v2543
        %v2545 = vpop.f32.mrb[0].mxu0
        %v2546 = vadd.f32 %v2419, %v2545
        %v2547 = vpop.f32.mrb[0].mxu0
        %2548 = vmatprep.mubr.f32.mxu0 0.0
        %v2549 = vand.u32 %v2052, 4294901760
        %v2550 = vsub.f32 %v2052, %v2549
        %v2551 = vand.u32 %v2550, 4294901760
        %2552 = vmatmul.mubr.f32.gmra.mrb[0].mxu0 %v2551
        %v2553 = vpop.f32.mrb[0].mxu0
        %v2554 = vadd.f32 %v2426, %v2553
        %v2555 = vpop.f32.mrb[0].mxu0
        %2556 = vmatprep.mubr.f32.mxu0 0.0
        %v2557 = vand.u32 %v2055, 4294901760
        %v2558 = vsub.f32 %v2055, %v2557
        %v2559 = vand.u32 %v2558, 4294901760
        %2560 = vmatmul.mubr.f32.gmra.mrb[0].mxu0 %v2559
        %v2561 = vpop.f32.mrb[0].mxu0
        %v2562 = vadd.f32 %v2433, %v2561
        %v2563 = vpop.f32.mrb[0].mxu0
        %2564 = vdwg.mxu0
        %2565 = vmatprep.subr.mxu0 0.0
        %2566 = vmatpush1.msra.mxu0 0.0
        %2567 = vmatprep.subr.mxu0 0.0
        %2568 = vmatpush1.msra.mxu0 0.0
        %2569 = vmatprep.subr.mxu0 0.0
        %2570 = vmatpush1.msra.mxu0 0.0
        %2571 = vmatprep.subr.mxu0 0.0
        %2572 = vmatpush1.msra.mxu0 0.0
        %2573 = vmatprep.subr.mxu0 0.0
        %2574 = vmatpush1.msra.mxu0 0.0
        %2575 = vmatprep.subr.mxu0 0.0
        %2576 = vmatpush1.msra.mxu0 0.0
        %2577 = vmatprep.subr.mxu0 0.0
        %2578 = vmatpush1.msra.mxu0 0.0
        %2579 = vmatprep.subr.mxu0 0.0
        %2580 = vmatpush1.msra.mxu0 0.0
        %2581 = vmatprep.subr.mxu0 0.0
        %2582 = vmatpush1.msra.mxu0 0.0
        %2583 = vmatprep.subr.mxu0 0.0
        %2584 = vmatpush1.msra.mxu0 0.0
        %2585 = vmatprep.subr.mxu0 0.0
        %2586 = vmatpush1.msra.mxu0 0.0
        %2587 = vmatprep.subr.mxu0 0.0
        %2588 = vmatpush1.msra.mxu0 0.0
        %2589 = vmatprep.subr.mxu0 0.0
        %2590 = vmatpush1.msra.mxu0 0.0
        %2591 = vmatprep.subr.mxu0 0.0
        %2592 = vmatpush1.msra.mxu0 0.0
        %2593 = vmatprep.subr.mxu0 0.0
        %2594 = vmatpush1.msra.mxu0 0.0
        %2595 = vmatprep.subr.mxu0 0.0
        %2596 = vmatpush1.msra.mxu0 0.0
        %2597 = vmatprep.subr.mxu0 0.0
        %2598 = vmatpush1.msra.mxu0 0.0
        %2599 = vmatprep.subr.mxu0 0.0
        %2600 = vmatpush1.msra.mxu0 0.0
        %2601 = vmatprep.subr.mxu0 0.0
        %2602 = vmatpush1.msra.mxu0 0.0
        %2603 = vmatprep.subr.mxu0 0.0
        %2604 = vmatpush1.msra.mxu0 0.0
        %2605 = vmatprep.subr.mxu0 0.0
        %2606 = vmatpush1.msra.mxu0 0.0
        %2607 = vmatprep.subr.mxu0 0.0
        %2608 = vmatpush1.msra.mxu0 0.0
        %2609 = vmatprep.subr.mxu0 0.0
        %2610 = vmatpush1.msra.mxu0 0.0
        %2611 = vmatprep.subr.mxu0 0.0
        %2612 = vmatpush1.msra.mxu0 0.0
        %2613 = vmatprep.subr.mxu0 0.0
        %2614 = vmatpush1.msra.mxu0 0.0
        %2615 = vmatprep.subr.mxu0 0.0
        %2616 = vmatpush1.msra.mxu0 0.0
        %2617 = vmatprep.subr.mxu0 0.0
        %2618 = vmatpush1.msra.mxu0 0.0
        %2619 = vmatprep.subr.mxu0 0.0
        %2620 = vmatpush1.msra.mxu0 0.0
        %2621 = vmatprep.subr.mxu0 0.0
        %2622 = vmatpush1.msra.mxu0 0.0
        %2623 = vmatprep.subr.mxu0 0.0
        %2624 = vmatpush1.msra.mxu0 0.0
        %2625 = vmatprep.subr.mxu0 0.0
        %2626 = vmatpush1.msra.mxu0 0.0
        %2627 = vmatprep.subr.mxu0 0.0
        %2628 = vmatpush1.msra.mxu0 0.0
        %2629 = vmatprep.mubr.f32.mxu0 0.0
        %v2630 = vand.u32 %v2034, 4294901760
        %2631 = vmatmul.mubr.f32.gmra.mrb[0].mxu0 %v2630
        %v2632 = vpop.f32.mrb[0].mxu0
        %v2633 = vadd.f32 %v2506, %v2632
        %v2634 = vpop.f32.mrb[0].mxu0
        %2635 = vmatprep.mubr.f32.mxu0 0.0
        %v2636 = vand.u32 %v2037, 4294901760
        %2637 = vmatmul.mubr.f32.gmra.mrb[0].mxu0 %v2636
        %v2638 = vpop.f32.mrb[0].mxu0
        %v2639 = vadd.f32 %v2514, %v2638
        %v2640 = vpop.f32.mrb[0].mxu0
        %2641 = vmatprep.mubr.f32.mxu0 0.0
        %v2642 = vand.u32 %v2040, 4294901760
        %2643 = vmatmul.mubr.f32.gmra.mrb[0].mxu0 %v2642
        %v2644 = vpop.f32.mrb[0].mxu0
        %v2645 = vadd.f32 %v2522, %v2644
        %v2646 = vpop.f32.mrb[0].mxu0
        %2647 = vmatprep.mubr.f32.mxu0 0.0
        %v2648 = vand.u32 %v2043, 4294901760
        %2649 = vmatmul.mubr.f32.gmra.mrb[0].mxu0 %v2648
        %v2650 = vpop.f32.mrb[0].mxu0
        %v2651 = vadd.f32 %v2530, %v2650
        %v2652 = vpop.f32.mrb[0].mxu0
        %2653 = vmatprep.mubr.f32.mxu0 0.0
        %v2654 = vand.u32 %v2046, 4294901760
        %2655 = vmatmul.mubr.f32.gmra.mrb[0].mxu0 %v2654
        %v2656 = vpop.f32.mrb[0].mxu0
        %v2657 = vadd.f32 %v2538, %v2656
        %v2658 = vpop.f32.mrb[0].mxu0
        %2659 = vmatprep.mubr.f32.mxu0 0.0
        %v2660 = vand.u32 %v2049, 4294901760
        %2661 = vmatmul.mubr.f32.gmra.mrb[0].mxu0 %v2660
        %v2662 = vpop.f32.mrb[0].mxu0
        %v2663 = vadd.f32 %v2546, %v2662
        %v2664 = vpop.f32.mrb[0].mxu0
        %2665 = vmatprep.mubr.f32.mxu0 0.0
        %v2666 = vand.u32 %v2052, 4294901760
        %2667 = vmatmul.mubr.f32.gmra.mrb[0].mxu0 %v2666
        %v2668 = vpop.f32.mrb[0].mxu0
        %v2669 = vadd.f32 %v2554, %v2668
        %v2670 = vpop.f32.mrb[0].mxu0
        %2671 = vmatprep.mubr.f32.mxu0 0.0
        %v2672 = vand.u32 %v2055, 4294901760
        %2673 = vmatmul.mubr.f32.gmra.mrb[0].mxu0 %v2672
        %v2674 = vpop.f32.mrb[0].mxu0
        %v2675 = vadd.f32 %v2562, %v2674
        %v2676 = vpop.f32.mrb[0].mxu0
        %2677 = vdwg.mxu0
        %2678 = vmatprep.subr.mxu0 0.0
        %2679 = vmatpush1.msra.mxu0 1.0
        %2680 = vmatprep.subr.mxu0 0.0
        %2681 = vmatpush1.msra.mxu0 1.0
        %2682 = vmatprep.subr.mxu0 0.0
        %2683 = vmatpush1.msra.mxu0 1.0
        %2684 = vmatprep.subr.mxu0 0.0
        %2685 = vmatpush1.msra.mxu0 1.0
        %2686 = vmatprep.subr.mxu0 0.0
        %2687 = vmatpush1.msra.mxu0 0.0
        %2688 = vmatprep.subr.mxu0 0.0
        %2689 = vmatpush1.msra.mxu0 0.0
        %2690 = vmatprep.subr.mxu0 0.0
        %2691 = vmatpush1.msra.mxu0 0.0
        %2692 = vmatprep.subr.mxu0 0.0
        %2693 = vmatpush1.msra.mxu0 0.0
        %2694 = vmatprep.subr.mxu0 0.0
        %2695 = vmatpush1.msra.mxu0 0.0
        %2696 = vmatprep.subr.mxu0 0.0
        %2697 = vmatpush1.msra.mxu0 0.0
        %2698 = vmatprep.subr.mxu0 0.0
        %2699 = vmatpush1.msra.mxu0 0.0
        %2700 = vmatprep.subr.mxu0 0.0
        %2701 = vmatpush1.msra.mxu0 0.0
        %2702 = vmatprep.subr.mxu0 0.0
        %2703 = vmatpush1.msra.mxu0 0.0
        %2704 = vmatprep.subr.mxu0 0.0
        %2705 = vmatpush1.msra.mxu0 0.0
        %2706 = vmatprep.subr.mxu0 0.0
        %2707 = vmatpush1.msra.mxu0 0.0
        %2708 = vmatprep.subr.mxu0 0.0
        %2709 = vmatpush1.msra.mxu0 0.0
        %2710 = vmatprep.subr.mxu0 0.0
        %2711 = vmatpush1.msra.mxu0 0.0
        %2712 = vmatprep.subr.mxu0 0.0
        %2713 = vmatpush1.msra.mxu0 0.0
        %2714 = vmatprep.subr.mxu0 0.0
        %2715 = vmatpush1.msra.mxu0 0.0
        %2716 = vmatprep.subr.mxu0 0.0
        %2717 = vmatpush1.msra.mxu0 0.0
        %2718 = vmatprep.subr.mxu0 0.0
        %2719 = vmatpush1.msra.mxu0 0.0
        %2720 = vmatprep.subr.mxu0 0.0
        %2721 = vmatpush1.msra.mxu0 0.0
        %2722 = vmatprep.subr.mxu0 0.0
        %2723 = vmatpush1.msra.mxu0 0.0
        %2724 = vmatprep.subr.mxu0 0.0
        %2725 = vmatpush1.msra.mxu0 0.0
        %2726 = vmatprep.subr.mxu0 0.0
        %2727 = vmatpush1.msra.mxu0 0.0
        %2728 = vmatprep.subr.mxu0 0.0
        %2729 = vmatpush1.msra.mxu0 0.0
        %2730 = vmatprep.subr.mxu0 0.0
        %2731 = vmatpush1.msra.mxu0 0.0
        %2732 = vmatprep.subr.mxu0 0.0
        %2733 = vmatpush1.msra.mxu0 0.0
        %2734 = vmatprep.subr.mxu0 0.0
        %2735 = vmatpush1.msra.mxu0 0.0
        %2736 = vmatprep.subr.mxu0 0.0
        %2737 = vmatpush1.msra.mxu0 0.0
        %2738 = vmatprep.subr.mxu0 0.0
        %2739 = vmatpush1.msra.mxu0 0.0
        %2740 = vmatprep.subr.mxu0 0.0
        %2741 = vmatpush1.msra.mxu0 0.0
        %2742 = vmatprep.mubr.f32.mxu0 0.0
        %v2743 = vand.u32 %v2034, 4294901760
        %2744 = vmatmul.mubr.f32.gmra.mrb[0].mxu0 %v2743
        %v2745 = vpop.f32.mrb[0].mxu0
        %v2746 = vadd.f32 %v2633, %v2745
        %v2747 = vpop.f32.mrb[0].mxu0
        %2748 = vmatprep.mubr.f32.mxu0 0.0
        %v2749 = vand.u32 %v2037, 4294901760
        %2750 = vmatmul.mubr.f32.gmra.mrb[0].mxu0 %v2749
        %v2751 = vpop.f32.mrb[0].mxu0
        %v2752 = vadd.f32 %v2639, %v2751
        %v2753 = vpop.f32.mrb[0].mxu0
        %2754 = vmatprep.mubr.f32.mxu0 0.0
        %v2755 = vand.u32 %v2040, 4294901760
        %2756 = vmatmul.mubr.f32.gmra.mrb[0].mxu0 %v2755
        %v2757 = vpop.f32.mrb[0].mxu0
        %v2758 = vadd.f32 %v2645, %v2757
        %v2759 = vpop.f32.mrb[0].mxu0
        %2760 = vmatprep.mubr.f32.mxu0 0.0
        %v2761 = vand.u32 %v2043, 4294901760
        %2762 = vmatmul.mubr.f32.gmra.mrb[0].mxu0 %v2761
        %v2763 = vpop.f32.mrb[0].mxu0
        %v2764 = vadd.f32 %v2651, %v2763
        %v2765 = vpop.f32.mrb[0].mxu0
        %2766 = vmatprep.mubr.f32.mxu0 0.0
        %v2767 = vand.u32 %v2046, 4294901760
        %2768 = vmatmul.mubr.f32.gmra.mrb[0].mxu0 %v2767
        %v2769 = vpop.f32.mrb[0].mxu0
        %v2770 = vadd.f32 %v2657, %v2769
        %v2771 = vpop.f32.mrb[0].mxu0
        %2772 = vmatprep.mubr.f32.mxu0 0.0
        %v2773 = vand.u32 %v2049, 4294901760
        %2774 = vmatmul.mubr.f32.gmra.mrb[0].mxu0 %v2773
        %v2775 = vpop.f32.mrb[0].mxu0
        %v2776 = vadd.f32 %v2663, %v2775
        %v2777 = vpop.f32.mrb[0].mxu0
        %2778 = vmatprep.mubr.f32.mxu0 0.0
        %v2779 = vand.u32 %v2052, 4294901760
        %2780 = vmatmul.mubr.f32.gmra.mrb[0].mxu0 %v2779
        %v2781 = vpop.f32.mrb[0].mxu0
        %v2782 = vadd.f32 %v2669, %v2781
        %v2783 = vpop.f32.mrb[0].mxu0
        %2784 = vmatprep.mubr.f32.mxu0 0.0
        %v2785 = vand.u32 %v2055, 4294901760
        %2786 = vmatmul.mubr.f32.gmra.mrb[0].mxu0 %v2785
        %v2787 = vpop.f32.mrb[0].mxu0
        %v2788 = vadd.f32 %v2675, %v2787
        %v2789 = vpop.f32.mrb[0].mxu0
        %2790 = vdwg.mxu0
        %v2791 = vmul.f32 %v1981, 2.0
        %v2792 = vmul.f32 %v1987, 2.0
        %v2793 = vmul.f32 %v1993, 2.0
        %v2794 = vmul.f32 %v1999, 2.0
        %v2795 = vmul.f32 %v2005, 2.0
        %v2796 = vmul.f32 %v2011, 2.0
        %v2797 = vmul.f32 %v2017, 2.0
        %v2798 = vmul.f32 %v2023, 2.0
        %v2799 = vsub.f32 %v2746, %v2791
        %v2800 = vsub.f32 %v2752, %v2792
        %v2801 = vsub.f32 %v2758, %v2793
        %v2802 = vsub.f32 %v2764, %v2794
        %v2803 = vsub.f32 %v2770, %v2795
        %v2804 = vsub.f32 %v2776, %v2796
        %v2805 = vsub.f32 %v2782, %v2797
        %v2806 = vsub.f32 %v2788, %v2798
        %v2807 = vmax.f32 %v2799, 0.0
        %v2808 = vmax.f32 %v2800, 0.0
        %v2809 = vmax.f32 %v2801, 0.0
        %v2810 = vmax.f32 %v2802, 0.0
        %v2811 = vmax.f32 %v2803, 0.0
        %v2812 = vmax.f32 %v2804, 0.0
        %v2813 = vmax.f32 %v2805, 0.0
        %v2814 = vmax.f32 %v2806, 0.0
        %v2815 = vrsqrt.pop %v2807
        %v2816 = vmul.f32 %v2807, %v2815
        %vm2817 = vcmp.eq.f32.partialorder %v2807, inf
        %v2818 = vsel %vm2817, %v2807, %v2816
        %vm2819 = vcmp.eq.f32.partialorder %v2807, 0.0
        %v2820 = vand.u32 %v2807, 2147483648
        %v2821 = vsel %vm2819, %v2820, %v2818
        %v2822 = vrsqrt.pop %v2808
        %v2823 = vmul.f32 %v2808, %v2822
        %vm2824 = vcmp.eq.f32.partialorder %v2808, inf
        %v2825 = vsel %vm2824, %v2808, %v2823
        %vm2826 = vcmp.eq.f32.partialorder %v2808, 0.0
        %v2827 = vand.u32 %v2808, 2147483648
        %v2828 = vsel %vm2826, %v2827, %v2825
        %v2829 = vrsqrt.pop %v2809
        %v2830 = vmul.f32 %v2809, %v2829
        %vm2831 = vcmp.eq.f32.partialorder %v2809, inf
        %v2832 = vsel %vm2831, %v2809, %v2830
        %vm2833 = vcmp.eq.f32.partialorder %v2809, 0.0
        %v2834 = vand.u32 %v2809, 2147483648
        %v2835 = vsel %vm2833, %v2834, %v2832
        %v2836 = vrsqrt.pop %v2810
        %v2837 = vmul.f32 %v2810, %v2836
        %vm2838 = vcmp.eq.f32.partialorder %v2810, inf
        %v2839 = vsel %vm2838, %v2810, %v2837
        %vm2840 = vcmp.eq.f32.partialorder %v2810, 0.0
        %v2841 = vand.u32 %v2810, 2147483648
        %v2842 = vsel %vm2840, %v2841, %v2839
        %v2843 = vrsqrt.pop %v2811
        %v2844 = vmul.f32 %v2811, %v2843
        %vm2845 = vcmp.eq.f32.partialorder %v2811, inf
        %v2846 = vsel %vm2845, %v2811, %v2844
        %vm2847 = vcmp.eq.f32.partialorder %v2811, 0.0
        %v2848 = vand.u32 %v2811, 2147483648
        %v2849 = vsel %vm2847, %v2848, %v2846
        %v2850 = vrsqrt.pop %v2812
        %v2851 = vmul.f32 %v2812, %v2850
        %vm2852 = vcmp.eq.f32.partialorder %v2812, inf
        %v2853 = vsel %vm2852, %v2812, %v2851
        %vm2854 = vcmp.eq.f32.partialorder %v2812, 0.0
        %v2855 = vand.u32 %v2812, 2147483648
        %v2856 = vsel %vm2854, %v2855, %v2853
        %v2857 = vrsqrt.pop %v2813
        %v2858 = vmul.f32 %v2813, %v2857
        %vm2859 = vcmp.eq.f32.partialorder %v2813, inf
        %v2860 = vsel %vm2859, %v2813, %v2858
        %vm2861 = vcmp.eq.f32.partialorder %v2813, 0.0
        %v2862 = vand.u32 %v2813, 2147483648
        %v2863 = vsel %vm2861, %v2862, %v2860
        %v2864 = vrsqrt.pop %v2814
        %v2865 = vmul.f32 %v2814, %v2864
        %vm2866 = vcmp.eq.f32.partialorder %v2814, inf
        %v2867 = vsel %vm2866, %v2814, %v2865
        %vm2868 = vcmp.eq.f32.partialorder %v2814, 0.0
        %v2869 = vand.u32 %v2814, 2147483648
        %v2870 = vsel %vm2868, %v2869, %v2867
        %s2871 = sadd.s32 %s25, %s26
        %v2872 = vlaneseq
        %v2873 = vshrl.u32 %v2872, 7
        %v2874 = vadd.s32 %v2873, 8
        %v2875 = vadd.s32 %v2873, 16
        %v2876 = vadd.s32 %v2873, 24
        %v2877 = vadd.s32 %v2873, 32
        %v2878 = vadd.s32 %v2873, 40
        %v2879 = vadd.s32 %v2873, 48
        %v2880 = vadd.s32 %v2873, 56
        %s2881 = smul.u32 %s2871, 64
        %v2882 = vstv %s2881
        %v2883 = vadd.s32 %v2873, %v2882
        %v2884 = vadd.s32 %v2874, %v2882
        %v2885 = vadd.s32 %v2875, %v2882
        %v2886 = vadd.s32 %v2876, %v2882
        %v2887 = vadd.s32 %v2877, %v2882
        %v2888 = vadd.s32 %v2878, %v2882
        %v2889 = vadd.s32 %v2879, %v2882
        %v2890 = vadd.s32 %v2880, %v2882
        %v2891 = vlaneseq
        %v2892 = vand.u32 %v2891, 127
        %v2893 = vmul.u32 %v2883, 128
        %v2894 = vmul.u32 %v2884, 128
        %v2895 = vmul.u32 %v2885, 128
        %v2896 = vmul.u32 %v2886, 128
        %v2897 = vmul.u32 %v2887, 128
        %v2898 = vmul.u32 %v2888, 128
        %v2899 = vmul.u32 %v2889, 128
        %v2900 = vmul.u32 %v2890, 128
        %v2901 = vadd.s32 %v2893, %v2892
        %v2902 = vadd.s32 %v2894, %v2892
        %v2903 = vadd.s32 %v2895, %v2892
        %v2904 = vadd.s32 %v2896, %v2892
        %v2905 = vadd.s32 %v2897, %v2892
        %v2906 = vadd.s32 %v2898, %v2892
        %v2907 = vadd.s32 %v2899, %v2892
        %v2908 = vadd.s32 %v2900, %v2892
        %v2909 = vmul.u32 %v2901, 2654435769
        %v2910 = vmul.u32 %v2902, 2654435769
        %v2911 = vmul.u32 %v2903, 2654435769
        %v2912 = vmul.u32 %v2904, 2654435769
        %v2913 = vmul.u32 %v2905, 2654435769
        %v2914 = vmul.u32 %v2906, 2654435769
        %v2915 = vmul.u32 %v2907, 2654435769
        %v2916 = vmul.u32 %v2908, 2654435769
        %s2917 = sld [smem:[#allocation6]]
        %v2918 = vstv %s2917
        %v2919 = vadd.s32 %v2909, %v2918
        %v2920 = vadd.s32 %v2910, %v2918
        %v2921 = vadd.s32 %v2911, %v2918
        %v2922 = vadd.s32 %v2912, %v2918
        %v2923 = vadd.s32 %v2913, %v2918
        %v2924 = vadd.s32 %v2914, %v2918
        %v2925 = vadd.s32 %v2915, %v2918
        %v2926 = vadd.s32 %v2916, %v2918
        %v2927 = vshrl.u32 %v2919, 16
        %v2928 = vshrl.u32 %v2920, 16
        %v2929 = vshrl.u32 %v2921, 16
        %v2930 = vshrl.u32 %v2922, 16
        %v2931 = vshrl.u32 %v2923, 16
        %v2932 = vshrl.u32 %v2924, 16
        %v2933 = vshrl.u32 %v2925, 16
        %v2934 = vshrl.u32 %v2926, 16
        %v2935 = vxor.u32 %v2919, %v2927
        %v2936 = vxor.u32 %v2920, %v2928
        %v2937 = vxor.u32 %v2921, %v2929
        %v2938 = vxor.u32 %v2922, %v2930
        %v2939 = vxor.u32 %v2923, %v2931
        %v2940 = vxor.u32 %v2924, %v2932
        %v2941 = vxor.u32 %v2925, %v2933
        %v2942 = vxor.u32 %v2926, %v2934
        %v2943 = vmul.u32 %v2935, 2146121005
        %v2944 = vmul.u32 %v2936, 2146121005
        %v2945 = vmul.u32 %v2937, 2146121005
        %v2946 = vmul.u32 %v2938, 2146121005
        %v2947 = vmul.u32 %v2939, 2146121005
        %v2948 = vmul.u32 %v2940, 2146121005
        %v2949 = vmul.u32 %v2941, 2146121005
        %v2950 = vmul.u32 %v2942, 2146121005
        %v2951 = vshrl.u32 %v2943, 15
        %v2952 = vshrl.u32 %v2944, 15
        %v2953 = vshrl.u32 %v2945, 15
        %v2954 = vshrl.u32 %v2946, 15
        %v2955 = vshrl.u32 %v2947, 15
        %v2956 = vshrl.u32 %v2948, 15
        %v2957 = vshrl.u32 %v2949, 15
        %v2958 = vshrl.u32 %v2950, 15
        %v2959 = vxor.u32 %v2943, %v2951
        %v2960 = vxor.u32 %v2944, %v2952
        %v2961 = vxor.u32 %v2945, %v2953
        %v2962 = vxor.u32 %v2946, %v2954
        %v2963 = vxor.u32 %v2947, %v2955
        %v2964 = vxor.u32 %v2948, %v2956
        %v2965 = vxor.u32 %v2949, %v2957
        %v2966 = vxor.u32 %v2950, %v2958
        %v2967 = vmul.u32 %v2959, 2221713035
        %v2968 = vmul.u32 %v2960, 2221713035
        %v2969 = vmul.u32 %v2961, 2221713035
        %v2970 = vmul.u32 %v2962, 2221713035
        %v2971 = vmul.u32 %v2963, 2221713035
        %v2972 = vmul.u32 %v2964, 2221713035
        %v2973 = vmul.u32 %v2965, 2221713035
        %v2974 = vmul.u32 %v2966, 2221713035
        %v2975 = vshrl.u32 %v2967, 16
        %v2976 = vshrl.u32 %v2968, 16
        %v2977 = vshrl.u32 %v2969, 16
        %v2978 = vshrl.u32 %v2970, 16
        %v2979 = vshrl.u32 %v2971, 16
        %v2980 = vshrl.u32 %v2972, 16
        %v2981 = vshrl.u32 %v2973, 16
        %v2982 = vshrl.u32 %v2974, 16
        %v2983 = vxor.u32 %v2967, %v2975
        %v2984 = vxor.u32 %v2968, %v2976
        %v2985 = vxor.u32 %v2969, %v2977
        %v2986 = vxor.u32 %v2970, %v2978
        %v2987 = vxor.u32 %v2971, %v2979
        %v2988 = vxor.u32 %v2972, %v2980
        %v2989 = vxor.u32 %v2973, %v2981
        %v2990 = vxor.u32 %v2974, %v2982
        %v2991 = vshrl.u32 %v2983, 9
        %v2992 = vshrl.u32 %v2984, 9
        %v2993 = vshrl.u32 %v2985, 9
        %v2994 = vshrl.u32 %v2986, 9
        %v2995 = vshrl.u32 %v2987, 9
        %v2996 = vshrl.u32 %v2988, 9
        %v2997 = vshrl.u32 %v2989, 9
        %v2998 = vshrl.u32 %v2990, 9
        %v2999 = vor.u32 %v2991, 1065353216
        %v3000 = vor.u32 %v2992, 1065353216
        %v3001 = vor.u32 %v2993, 1065353216
        %v3002 = vor.u32 %v2994, 1065353216
        %v3003 = vor.u32 %v2995, 1065353216
        %v3004 = vor.u32 %v2996, 1065353216
        %v3005 = vor.u32 %v2997, 1065353216
        %v3006 = vor.u32 %v2998, 1065353216
        %v3015 = vsub.f32 %v2999, 1.0
        %v3016 = vsub.f32 %v3000, 1.0
        %v3017 = vsub.f32 %v3001, 1.0
        %v3018 = vsub.f32 %v3002, 1.0
        %v3019 = vsub.f32 %v3003, 1.0
        %v3020 = vsub.f32 %v3004, 1.0
        %v3021 = vsub.f32 %v3005, 1.0
        %v3022 = vsub.f32 %v3006, 1.0
        %v3023 = vmax.f32 %v3015, 1e-07
        %v3024 = vmax.f32 %v3016, 1e-07
        %v3025 = vmax.f32 %v3017, 1e-07
        %v3026 = vmax.f32 %v3018, 1e-07
        %v3027 = vmax.f32 %v3019, 1e-07
        %v3028 = vmax.f32 %v3020, 1e-07
        %v3029 = vmax.f32 %v3021, 1e-07
        %v3030 = vmax.f32 %v3022, 1e-07
        %v3031 = vlog2.pop %v3023
        %v3032 = vmul.f32 %v3031, 0.6931472
        %v3033 = vlog2.pop %v3024
        %v3034 = vmul.f32 %v3033, 0.6931472
        %v3035 = vlog2.pop %v3025
        %v3036 = vmul.f32 %v3035, 0.6931472
        %v3037 = vlog2.pop %v3026
        %v3038 = vmul.f32 %v3037, 0.6931472
        %v3039 = vlog2.pop %v3027
        %v3040 = vmul.f32 %v3039, 0.6931472
        %v3041 = vlog2.pop %v3028
        %v3042 = vmul.f32 %v3041, 0.6931472
        %v3043 = vlog2.pop %v3029
        %v3044 = vmul.f32 %v3043, 0.6931472
        %v3045 = vlog2.pop %v3030
        %v3046 = vmul.f32 %v3045, 0.6931472
        %v3047 = vsub.f32 0.0, %v3032
        %v3048 = vsub.f32 0.0, %v3034
        %v3049 = vsub.f32 0.0, %v3036
        %v3050 = vsub.f32 0.0, %v3038
        %v3051 = vsub.f32 0.0, %v3040
        %v3052 = vsub.f32 0.0, %v3042
        %v3053 = vsub.f32 0.0, %v3044
        %v3054 = vsub.f32 0.0, %v3046
        %v3055 = vlog2.pop %v3047
        %v3056 = vmul.f32 %v3055, 0.6931472
        %v3057 = vlog2.pop %v3048
        %v3058 = vmul.f32 %v3057, 0.6931472
        %v3059 = vlog2.pop %v3049
        %v3060 = vmul.f32 %v3059, 0.6931472
        %v3061 = vlog2.pop %v3050
        %v3062 = vmul.f32 %v3061, 0.6931472
        %v3063 = vlog2.pop %v3051
        %v3064 = vmul.f32 %v3063, 0.6931472
        %v3065 = vlog2.pop %v3052
        %v3066 = vmul.f32 %v3065, 0.6931472
        %v3067 = vlog2.pop %v3053
        %v3068 = vmul.f32 %v3067, 0.6931472
        %v3069 = vlog2.pop %v3054
        %v3070 = vmul.f32 %v3069, 0.6931472
        %v3071 = vsub.f32 0.0, %v3056
        %v3072 = vsub.f32 0.0, %v3058
        %v3073 = vsub.f32 0.0, %v3060
        %v3074 = vsub.f32 0.0, %v3062
        %v3075 = vsub.f32 0.0, %v3064
        %v3076 = vsub.f32 0.0, %v3066
        %v3077 = vsub.f32 0.0, %v3068
        %v3078 = vsub.f32 0.0, %v3070
        %v3079 = vsub.f32 %v3071, %v2821
        %v3080 = vsub.f32 %v3072, %v2828
        %v3081 = vsub.f32 %v3073, %v2835
        %v3082 = vsub.f32 %v3074, %v2842
        %v3083 = vsub.f32 %v3075, %v2849
        %v3084 = vsub.f32 %v3076, %v2856
        %v3085 = vsub.f32 %v3077, %v2863
        %v3086 = vsub.f32 %v3078, %v2870
        %vm3095 = vcmp.lt.s32.totalorder %v3079, 0
        %vm3096 = vcmp.lt.s32.totalorder %v3080, 0
        %vm3097 = vcmp.lt.s32.totalorder %v3081, 0
        %vm3098 = vcmp.lt.s32.totalorder %v3082, 0
        %vm3099 = vcmp.lt.s32.totalorder %v3083, 0
        %vm3100 = vcmp.lt.s32.totalorder %v3084, 0
        %vm3101 = vcmp.lt.s32.totalorder %v3085, 0
        %vm3102 = vcmp.lt.s32.totalorder %v3086, 0
        %v3103 = vxor.u32 %v3079, 2147483647
        %v3104 = vxor.u32 %v3080, 2147483647
        %v3105 = vxor.u32 %v3081, 2147483647
        %v3106 = vxor.u32 %v3082, 2147483647
        %v3107 = vxor.u32 %v3083, 2147483647
        %v3108 = vxor.u32 %v3084, 2147483647
        %v3109 = vxor.u32 %v3085, 2147483647
        %v3110 = vxor.u32 %v3086, 2147483647
        %v3111 = vsel %vm3095, %v3103, %v3079
        %v3112 = vsel %vm3096, %v3104, %v3080
        %v3113 = vsel %vm3097, %v3105, %v3081
        %v3114 = vsel %vm3098, %v3106, %v3082
        %v3115 = vsel %vm3099, %v3107, %v3083
        %v3116 = vsel %vm3100, %v3108, %v3084
        %v3117 = vsel %vm3101, %v3109, %v3085
        %v3118 = vsel %vm3102, %v3110, %v3086
        %v3119 = vand.u32 %v3111, 4294967168
        %v3120 = vand.u32 %v3112, 4294967168
        %v3121 = vand.u32 %v3113, 4294967168
        %v3122 = vand.u32 %v3114, 4294967168
        %v3123 = vand.u32 %v3115, 4294967168
        %v3124 = vand.u32 %v3116, 4294967168
        %v3125 = vand.u32 %v3117, 4294967168
        %v3126 = vand.u32 %v3118, 4294967168
        %v3127 = vsub.s32 127, %v2892
        %v3128 = vor.u32 %v3119, %v3127
        %v3129 = vor.u32 %v3120, %v3127
        %v3130 = vor.u32 %v3121, %v3127
        %v3131 = vor.u32 %v3122, %v3127
        %v3132 = vor.u32 %v3123, %v3127
        %v3133 = vor.u32 %v3124, %v3127
        %v3134 = vor.u32 %v3125, %v3127
        %v3135 = vor.u32 %v3126, %v3127
        %v3136 = vand.u32 %v3128, 65535
        %v3137 = vshra.s32 %v3128, 16
        %v3138 = vcvt.s32.f32 %v3136
        %v3139 = vcvt.s32.f32 %v3137
        %3140 = vmax.xlane.f32.xlu0 %v3139
        %v3141 = vpop.xlane.xlu0 %3140
        %vm3142 = vcmp.eq.f32.partialorder %v3139, %v3141
        %v3143 = vsel %vm3142, %v3138, -inf
        %3144 = vmax.xlane.f32.xlu0 %v3143
        %v3145 = vpop.xlane.xlu0 %3144
        %v3146 = vcvt.f32.s32 %v3145
        %v3147 = vcvt.f32.s32 %v3141
        %v3148 = vshll.u32 %v3147, 16
        %v3149 = vadd.s32 %v3148, %v3146
        %v3150 = vand.u32 %v3129, 65535
        %v3151 = vshra.s32 %v3129, 16
        %v3152 = vcvt.s32.f32 %v3150
        %v3153 = vcvt.s32.f32 %v3151
        %3154 = vmax.xlane.f32.xlu0 %v3153
        %v3155 = vpop.xlane.xlu0 %3154
        %vm3156 = vcmp.eq.f32.partialorder %v3153, %v3155
        %v3157 = vsel %vm3156, %v3152, -inf
        %3158 = vmax.xlane.f32.xlu0 %v3157
        %v3159 = vpop.xlane.xlu0 %3158
        %v3160 = vcvt.f32.s32 %v3159
        %v3161 = vcvt.f32.s32 %v3155
        %v3162 = vshll.u32 %v3161, 16
        %v3163 = vadd.s32 %v3162, %v3160
        %v3164 = vand.u32 %v3130, 65535
        %v3165 = vshra.s32 %v3130, 16
        %v3166 = vcvt.s32.f32 %v3164
        %v3167 = vcvt.s32.f32 %v3165
        %3168 = vmax.xlane.f32.xlu0 %v3167
        %v3169 = vpop.xlane.xlu0 %3168
        %vm3170 = vcmp.eq.f32.partialorder %v3167, %v3169
        %v3171 = vsel %vm3170, %v3166, -inf
        %3172 = vmax.xlane.f32.xlu0 %v3171
        %v3173 = vpop.xlane.xlu0 %3172
        %v3174 = vcvt.f32.s32 %v3173
        %v3175 = vcvt.f32.s32 %v3169
        %v3176 = vshll.u32 %v3175, 16
        %v3177 = vadd.s32 %v3176, %v3174
        %v3178 = vand.u32 %v3131, 65535
        %v3179 = vshra.s32 %v3131, 16
        %v3180 = vcvt.s32.f32 %v3178
        %v3181 = vcvt.s32.f32 %v3179
        %3182 = vmax.xlane.f32.xlu0 %v3181
        %v3183 = vpop.xlane.xlu0 %3182
        %vm3184 = vcmp.eq.f32.partialorder %v3181, %v3183
        %v3185 = vsel %vm3184, %v3180, -inf
        %3186 = vmax.xlane.f32.xlu0 %v3185
        %v3187 = vpop.xlane.xlu0 %3186
        %v3188 = vcvt.f32.s32 %v3187
        %v3189 = vcvt.f32.s32 %v3183
        %v3190 = vshll.u32 %v3189, 16
        %v3191 = vadd.s32 %v3190, %v3188
        %v3192 = vand.u32 %v3132, 65535
        %v3193 = vshra.s32 %v3132, 16
        %v3194 = vcvt.s32.f32 %v3192
        %v3195 = vcvt.s32.f32 %v3193
        %3196 = vmax.xlane.f32.xlu0 %v3195
        %v3197 = vpop.xlane.xlu0 %3196
        %vm3198 = vcmp.eq.f32.partialorder %v3195, %v3197
        %v3199 = vsel %vm3198, %v3194, -inf
        %3200 = vmax.xlane.f32.xlu0 %v3199
        %v3201 = vpop.xlane.xlu0 %3200
        %v3202 = vcvt.f32.s32 %v3201
        %v3203 = vcvt.f32.s32 %v3197
        %v3204 = vshll.u32 %v3203, 16
        %v3205 = vadd.s32 %v3204, %v3202
        %v3206 = vand.u32 %v3133, 65535
        %v3207 = vshra.s32 %v3133, 16
        %v3208 = vcvt.s32.f32 %v3206
        %v3209 = vcvt.s32.f32 %v3207
        %3210 = vmax.xlane.f32.xlu0 %v3209
        %v3211 = vpop.xlane.xlu0 %3210
        %vm3212 = vcmp.eq.f32.partialorder %v3209, %v3211
        %v3213 = vsel %vm3212, %v3208, -inf
        %3214 = vmax.xlane.f32.xlu0 %v3213
        %v3215 = vpop.xlane.xlu0 %3214
        %v3216 = vcvt.f32.s32 %v3215
        %v3217 = vcvt.f32.s32 %v3211
        %v3218 = vshll.u32 %v3217, 16
        %v3219 = vadd.s32 %v3218, %v3216
        %v3220 = vand.u32 %v3134, 65535
        %v3221 = vshra.s32 %v3134, 16
        %v3222 = vcvt.s32.f32 %v3220
        %v3223 = vcvt.s32.f32 %v3221
        %3224 = vmax.xlane.f32.xlu0 %v3223
        %v3225 = vpop.xlane.xlu0 %3224
        %vm3226 = vcmp.eq.f32.partialorder %v3223, %v3225
        %v3227 = vsel %vm3226, %v3222, -inf
        %3228 = vmax.xlane.f32.xlu0 %v3227
        %v3229 = vpop.xlane.xlu0 %3228
        %v3230 = vcvt.f32.s32 %v3229
        %v3231 = vcvt.f32.s32 %v3225
        %v3232 = vshll.u32 %v3231, 16
        %v3233 = vadd.s32 %v3232, %v3230
        %v3234 = vand.u32 %v3135, 65535
        %v3235 = vshra.s32 %v3135, 16
        %v3236 = vcvt.s32.f32 %v3234
        %v3237 = vcvt.s32.f32 %v3235
        %3238 = vmax.xlane.f32.xlu0 %v3237
        %v3239 = vpop.xlane.xlu0 %3238
        %vm3240 = vcmp.eq.f32.partialorder %v3237, %v3239
        %v3241 = vsel %vm3240, %v3236, -inf
        %3242 = vmax.xlane.f32.xlu0 %v3241
        %v3243 = vpop.xlane.xlu0 %3242
        %v3244 = vcvt.f32.s32 %v3243
        %v3245 = vcvt.f32.s32 %v3239
        %v3246 = vshll.u32 %v3245, 16
        %v3247 = vadd.s32 %v3246, %v3244
        %v3248 = vand.u32 %v3149, 127
        %v3249 = vand.u32 %v3163, 127
        %v3250 = vand.u32 %v3177, 127
        %v3251 = vand.u32 %v3191, 127
        %v3252 = vand.u32 %v3205, 127
        %v3253 = vand.u32 %v3219, 127
        %v3254 = vand.u32 %v3233, 127
        %v3255 = vand.u32 %v3247, 127
        %v3256 = vsub.s32 127, %v3248
        %v3257 = vsub.s32 127, %v3249
        %v3258 = vsub.s32 127, %v3250
        %v3259 = vsub.s32 127, %v3251
        %v3260 = vsub.s32 127, %v3252
        %v3261 = vsub.s32 127, %v3253
        %v3262 = vsub.s32 127, %v3254
        %v3263 = vsub.s32 127, %v3255
        %vm3264 = vcmp.eq.s32.totalorder %v2892, %v3256
        %vm3265 = vcmp.eq.s32.totalorder %v2892, %v3257
        %vm3266 = vcmp.eq.s32.totalorder %v2892, %v3258
        %vm3267 = vcmp.eq.s32.totalorder %v2892, %v3259
        %vm3268 = vcmp.eq.s32.totalorder %v2892, %v3260
        %vm3269 = vcmp.eq.s32.totalorder %v2892, %v3261
        %vm3270 = vcmp.eq.s32.totalorder %v2892, %v3262
        %vm3271 = vcmp.eq.s32.totalorder %v2892, %v3263
        %v3272 = vsel %vm3264, 1, 0
        %v3273 = vsel %vm3265, 1, 0
        %v3274 = vsel %vm3266, 1, 0
        %v3275 = vsel %vm3267, 1, 0
        %v3276 = vsel %vm3268, 1, 0
        %v3277 = vsel %vm3269, 1, 0
        %v3278 = vsel %vm3270, 1, 0
        %v3279 = vsel %vm3271, 1, 0
        %v3280 = vcvt.s32.f32 %v3272
        %v3281 = vcvt.s32.f32 %v3273
        %v3282 = vcvt.s32.f32 %v3274
        %v3283 = vcvt.s32.f32 %v3275
        %v3284 = vcvt.s32.f32 %v3276
        %v3285 = vcvt.s32.f32 %v3277
        %v3286 = vcvt.s32.f32 %v3278
        %v3287 = vcvt.s32.f32 %v3279
        %v3288 = vpack.c.bf16 %v3281, %v3280
        %v3289 = vpack.c.bf16 %v3283, %v3282
        %v3290 = vpack.c.bf16 %v3285, %v3284
        %v3291 = vpack.c.bf16 %v3287, %v3286
        %v3296 = vunpack.c.l.b16 %v3288
        %v3297 = vunpack.c.h.b16 %v3288
        %v3298 = vunpack.c.l.b16 %v3289
        %v3299 = vunpack.c.h.b16 %v3289
        %v3300 = vunpack.c.l.b16 %v3290
        %v3301 = vunpack.c.h.b16 %v3290
        %v3302 = vunpack.c.l.b16 %v3291
        %v3303 = vunpack.c.h.b16 %v3291
        %v3304 = vpack.c.b16 %v3296, %v3296
        %v3305 = vpack.c.b16 %v3297, %v3297
        %v3306 = vpack.c.b16 %v3298, %v3298
        %v3307 = vpack.c.b16 %v3299, %v3299
        %v3308 = vpack.c.b16 %v3300, %v3300
        %v3309 = vpack.c.b16 %v3301, %v3301
        %v3310 = vpack.c.b16 %v3302, %v3302
        %v3311 = vpack.c.b16 %v3303, %v3303
        %3320 = vst [vmem:[%s213] sm:$0xf] %v3304
        %3321 = vst [vmem:[%s213 + $0x4] sm:$0xf] %v3305
        %3322 = vst [vmem:[%s213 + $0x8] sm:$0xf] %v3306
        %3323 = vst [vmem:[%s213 + $0xc] sm:$0xf] %v3307
        %3324 = vst [vmem:[%s213 + $0x10] sm:$0xf] %v3308
        %3325 = vst [vmem:[%s213 + $0x14] sm:$0xf] %v3309
        %3326 = vst [vmem:[%s213 + $0x18] sm:$0xf] %v3310
        %3327 = vst [vmem:[%s213 + $0x1c] sm:$0xf] %v3311
        %v3328 = vld [vmem:[#allocation4] sm:$0x1]
        %v3329 = vmul.f32 %v3280, %v2807
        %v3330 = vmul.f32 %v3281, %v2808
        %v3331 = vmul.f32 %v3282, %v2809
        %v3332 = vmul.f32 %v3283, %v2810
        %v3333 = vmul.f32 %v3284, %v2811
        %v3334 = vmul.f32 %v3285, %v2812
        %v3335 = vmul.f32 %v3286, %v2813
        %v3336 = vmul.f32 %v3287, %v2814
        %v3337 = vadd.f32 %v3329, %v3330
        %v3338 = vadd.f32 %v3337, %v3331
        %v3339 = vadd.f32 %v3338, %v3332
        %v3340 = vadd.f32 %v3339, %v3333
        %v3341 = vadd.f32 %v3340, %v3334
        %v3342 = vadd.f32 %v3341, %v3335
        %v3343 = vadd.f32 %v3342, %v3336
        %v3344 = vrot.slane %v3343, 4
        %v3345 = vadd.f32 %v3343, %v3344
        %v3346 = vrot.slane %v3345, 2
        %v3347 = vadd.f32 %v3345, %v3346
        %v3348 = vrot.slane %v3347, 1
        %v3349 = vadd.f32 %v3347, %v3348
        %v3350 = vadd.f32 %v3328, %v3349
        %3351 = vst [vmem:[#allocation4] sm:$0x1] %v3350
        %v3352 = vld [vmem:[#allocation3] sm:$0xff]
        %v3353 = vld [vmem:[#allocation3 + $0x8] sm:$0xff]
        %v3354 = vld [vmem:[#allocation3 + $0x10] sm:$0xff]
        %v3355 = vld [vmem:[#allocation3 + $0x18] sm:$0xff]
        %v3356 = vld [vmem:[#allocation3 + $0x20] sm:$0xff]
        %v3357 = vld [vmem:[#allocation3 + $0x28] sm:$0xff]
        %v3358 = vld [vmem:[#allocation3 + $0x30] sm:$0xff]
        %v3359 = vld [vmem:[#allocation3 + $0x38] sm:$0xff]
        %v3360 = vld [vmem:[#allocation3 + $0x40] sm:$0xff]
        %v3361 = vld [vmem:[#allocation3 + $0x48] sm:$0xff]
        %v3362 = vld [vmem:[#allocation3 + $0x50] sm:$0xff]
        %v3363 = vld [vmem:[#allocation3 + $0x58] sm:$0xff]
        %v3364 = vld [vmem:[#allocation3 + $0x60] sm:$0xff]
        %v3365 = vld [vmem:[#allocation3 + $0x68] sm:$0xff]
        %v3366 = vld [vmem:[#allocation3 + $0x70] sm:$0xff]
        %v3367 = vld [vmem:[#allocation3 + $0x78] sm:$0xff]
        %3368 = vxpose.xlu0.b32.start [1/16] %v3280, 128
        %3369 = vxpose.xlu0.b32.cont [2/16] %v3281, 128
        %3370 = vxpose.xlu0.b32.cont [3/16] %v3282, 128
        %3371 = vxpose.xlu0.b32.cont [4/16] %v3283, 128
        %3372 = vxpose.xlu0.b32.cont [5/16] %v3284, 128
        %3373 = vxpose.xlu0.b32.cont [6/16] %v3285, 128
        %3374 = vxpose.xlu0.b32.cont [7/16] %v3286, 128
        %3375 = vxpose.xlu0.b32.cont [8/16] %v3287, 128
        %3376 = vxpose.xlu0.b32.cont [9/16] 0.0, 128
        %3377 = vxpose.xlu0.b32.cont [10/16] 0.0, 128
        %3378 = vxpose.xlu0.b32.cont [11/16] 0.0, 128
        %3379 = vxpose.xlu0.b32.cont [12/16] 0.0, 128
        %3380 = vxpose.xlu0.b32.cont [13/16] 0.0, 128
        %3381 = vxpose.xlu0.b32.cont [14/16] 0.0, 128
        %3382 = vxpose.xlu0.b32.cont [15/16] 0.0, 128
        %3383 = vxpose.xlu0.b32.end [16/16] 0.0, 128
        %v3384 = vpop.trf.xlu0
        %v3385 = vpop.trf.xlu0
        %v3386 = vpop.trf.xlu0
        %v3387 = vpop.trf.xlu0
        %v3388 = vpop.trf.xlu0
        %v3389 = vpop.trf.xlu0
        %v3390 = vpop.trf.xlu0
        %v3391 = vpop.trf.xlu0
        %v3392 = vpop.trf.xlu0
        %v3393 = vpop.trf.xlu0
        %v3394 = vpop.trf.xlu0
        %v3395 = vpop.trf.xlu0
        %v3396 = vpop.trf.xlu0
        %v3397 = vpop.trf.xlu0
        %v3398 = vpop.trf.xlu0
        %v3399 = vpop.trf.xlu0
        %vm3400 = vcmask 523264
        %v3402 = vsel %vm3400, %v3384, 0
        %v3405 = vsel %vm3400, %v3385, 0
        %v3408 = vsel %vm3400, %v3386, 0
        %v3411 = vsel %vm3400, %v3387, 0
        %v3414 = vsel %vm3400, %v3388, 0
        %v3417 = vsel %vm3400, %v3389, 0
        %v3420 = vsel %vm3400, %v3390, 0
        %v3423 = vsel %vm3400, %v3391, 0
        %v3426 = vsel %vm3400, %v3392, 0
        %v3429 = vsel %vm3400, %v3393, 0
        %v3432 = vsel %vm3400, %v3394, 0
        %v3435 = vsel %vm3400, %v3395, 0
        %v3438 = vsel %vm3400, %v3396, 0
        %v3441 = vsel %vm3400, %v3397, 0
        %v3444 = vsel %vm3400, %v3398, 0
        %v3447 = vsel %vm3400, %v3399, 0
        %3449 = vmatprep.subr.mxu0 0.0
        %v3450 = vand.u32 %v995, 4294901760
        %3451 = vmatpush1.msra.mxu0 %v3450
        %3452 = vmatprep.subr.mxu0 0.0
        %v3453 = vand.u32 %v996, 4294901760
        %3454 = vmatpush1.msra.mxu0 %v3453
        %3455 = vmatprep.subr.mxu0 0.0
        %v3456 = vand.u32 %v997, 4294901760
        %3457 = vmatpush1.msra.mxu0 %v3456
        %3458 = vmatprep.subr.mxu0 0.0
        %v3459 = vand.u32 %v998, 4294901760
        %3460 = vmatpush1.msra.mxu0 %v3459
        %3461 = vmatprep.subr.mxu0 0.0
        %v3462 = vand.u32 %v999, 4294901760
        %3463 = vmatpush1.msra.mxu0 %v3462
        %3464 = vmatprep.subr.mxu0 0.0
        %v3465 = vand.u32 %v1000, 4294901760
        %3466 = vmatpush1.msra.mxu0 %v3465
        %3467 = vmatprep.subr.mxu0 0.0
        %v3468 = vand.u32 %v1001, 4294901760
        %3469 = vmatpush1.msra.mxu0 %v3468
        %3470 = vmatprep.subr.mxu0 0.0
        %v3471 = vand.u32 %v1002, 4294901760
        %3472 = vmatpush1.msra.mxu0 %v3471
        %3473 = vmatprep.subr.mxu0 0.0
        %3474 = vmatpush1.msra.mxu0 0.0
        %3475 = vmatprep.subr.mxu0 0.0
        %3476 = vmatpush1.msra.mxu0 0.0
        %3477 = vmatprep.subr.mxu0 0.0
        %3478 = vmatpush1.msra.mxu0 0.0
        %3479 = vmatprep.subr.mxu0 0.0
        %3480 = vmatpush1.msra.mxu0 0.0
        %3481 = vmatprep.subr.mxu0 0.0
        %3482 = vmatpush1.msra.mxu0 0.0
        %3483 = vmatprep.subr.mxu0 0.0
        %3484 = vmatpush1.msra.mxu0 0.0
        %3485 = vmatprep.subr.mxu0 0.0
        %3486 = vmatpush1.msra.mxu0 0.0
        %3487 = vmatprep.subr.mxu0 0.0
        %3488 = vmatpush1.msra.mxu0 0.0
        %3489 = vmatprep.subr.mxu0 0.0
        %3490 = vmatpush1.msra.mxu0 0.0
        %3491 = vmatprep.subr.mxu0 0.0
        %3492 = vmatpush1.msra.mxu0 0.0
        %3493 = vmatprep.subr.mxu0 0.0
        %3494 = vmatpush1.msra.mxu0 0.0
        %3495 = vmatprep.subr.mxu0 0.0
        %3496 = vmatpush1.msra.mxu0 0.0
        %3497 = vmatprep.subr.mxu0 0.0
        %3498 = vmatpush1.msra.mxu0 0.0
        %3499 = vmatprep.subr.mxu0 0.0
        %3500 = vmatpush1.msra.mxu0 0.0
        %3501 = vmatprep.subr.mxu0 0.0
        %3502 = vmatpush1.msra.mxu0 0.0
        %3503 = vmatprep.subr.mxu0 0.0
        %3504 = vmatpush1.msra.mxu0 0.0
        %3505 = vmatprep.subr.mxu0 0.0
        %3506 = vmatpush1.msra.mxu0 0.0
        %3507 = vmatprep.subr.mxu0 0.0
        %3508 = vmatpush1.msra.mxu0 0.0
        %3509 = vmatprep.subr.mxu0 0.0
        %3510 = vmatpush1.msra.mxu0 0.0
        %3511 = vmatprep.subr.mxu0 0.0
        %3512 = vmatpush1.msra.mxu0 0.0
        %3513 = vmatprep.subr.mxu0 0.0
        %3514 = vmatpush1.msra.mxu0 0.0
        %3515 = vmatprep.subr.mxu0 0.0
        %3516 = vmatpush1.msra.mxu0 0.0
        %3517 = vmatprep.subr.mxu0 0.0
        %3518 = vmatpush1.msra.mxu0 0.0
        %3519 = vmatprep.subr.mxu0 0.0
        %3520 = vmatpush1.msra.mxu0 0.0
        %3521 = vmatprep.mubr.f32.mxu0 0.0
        %v3522 = vand.u32 %v3402, 4294901760
        %v3523 = vsub.f32 %v3402, %v3522
        %v3524 = vand.u32 %v3523, 4294901760
        %v3525 = vsub.f32 %v3523, %v3524
        %v3526 = vand.u32 %v3525, 4294901760
        %3527 = vmatmul.mubr.f32.gmra.mrb[0].mxu0 %v3526
        %v3528 = vpop.f32.mrb[0].mxu0
        %v3529 = vadd.f32 0.0, %v3528
        %v3530 = vpop.f32.mrb[0].mxu0
        %3531 = vmatprep.mubr.f32.mxu0 0.0
        %v3532 = vand.u32 %v3405, 4294901760
        %v3533 = vsub.f32 %v3405, %v3532
        %v3534 = vand.u32 %v3533, 4294901760
        %v3535 = vsub.f32 %v3533, %v3534
        %v3536 = vand.u32 %v3535, 4294901760
        %3537 = vmatmul.mubr.f32.gmra.mrb[0].mxu0 %v3536
        %v3538 = vpop.f32.mrb[0].mxu0
        %v3539 = vadd.f32 0.0, %v3538
        %v3540 = vpop.f32.mrb[0].mxu0
        %3541 = vmatprep.mubr.f32.mxu0 0.0
        %v3542 = vand.u32 %v3408, 4294901760
        %v3543 = vsub.f32 %v3408, %v3542
        %v3544 = vand.u32 %v3543, 4294901760
        %v3545 = vsub.f32 %v3543, %v3544
        %v3546 = vand.u32 %v3545, 4294901760
        %3547 = vmatmul.mubr.f32.gmra.mrb[0].mxu0 %v3546
        %v3548 = vpop.f32.mrb[0].mxu0
        %v3549 = vadd.f32 0.0, %v3548
        %v3550 = vpop.f32.mrb[0].mxu0
        %3551 = vmatprep.mubr.f32.mxu0 0.0
        %v3552 = vand.u32 %v3411, 4294901760
        %v3553 = vsub.f32 %v3411, %v3552
        %v3554 = vand.u32 %v3553, 4294901760
        %v3555 = vsub.f32 %v3553, %v3554
        %v3556 = vand.u32 %v3555, 4294901760
        %3557 = vmatmul.mubr.f32.gmra.mrb[0].mxu0 %v3556
        %v3558 = vpop.f32.mrb[0].mxu0
        %v3559 = vadd.f32 0.0, %v3558
        %v3560 = vpop.f32.mrb[0].mxu0
        %3561 = vmatprep.mubr.f32.mxu0 0.0
        %v3562 = vand.u32 %v3414, 4294901760
        %v3563 = vsub.f32 %v3414, %v3562
        %v3564 = vand.u32 %v3563, 4294901760
        %v3565 = vsub.f32 %v3563, %v3564
        %v3566 = vand.u32 %v3565, 4294901760
        %3567 = vmatmul.mubr.f32.gmra.mrb[0].mxu0 %v3566
        %v3568 = vpop.f32.mrb[0].mxu0
        %v3569 = vadd.f32 0.0, %v3568
        %v3570 = vpop.f32.mrb[0].mxu0
        %3571 = vmatprep.mubr.f32.mxu0 0.0
        %v3572 = vand.u32 %v3417, 4294901760
        %v3573 = vsub.f32 %v3417, %v3572
        %v3574 = vand.u32 %v3573, 4294901760
        %v3575 = vsub.f32 %v3573, %v3574
        %v3576 = vand.u32 %v3575, 4294901760
        %3577 = vmatmul.mubr.f32.gmra.mrb[0].mxu0 %v3576
        %v3578 = vpop.f32.mrb[0].mxu0
        %v3579 = vadd.f32 0.0, %v3578
        %v3580 = vpop.f32.mrb[0].mxu0
        %3581 = vmatprep.mubr.f32.mxu0 0.0
        %v3582 = vand.u32 %v3420, 4294901760
        %v3583 = vsub.f32 %v3420, %v3582
        %v3584 = vand.u32 %v3583, 4294901760
        %v3585 = vsub.f32 %v3583, %v3584
        %v3586 = vand.u32 %v3585, 4294901760
        %3587 = vmatmul.mubr.f32.gmra.mrb[0].mxu0 %v3586
        %v3588 = vpop.f32.mrb[0].mxu0
        %v3589 = vadd.f32 0.0, %v3588
        %v3590 = vpop.f32.mrb[0].mxu0
        %3591 = vmatprep.mubr.f32.mxu0 0.0
        %v3592 = vand.u32 %v3423, 4294901760
        %v3593 = vsub.f32 %v3423, %v3592
        %v3594 = vand.u32 %v3593, 4294901760
        %v3595 = vsub.f32 %v3593, %v3594
        %v3596 = vand.u32 %v3595, 4294901760
        %3597 = vmatmul.mubr.f32.gmra.mrb[0].mxu0 %v3596
        %v3598 = vpop.f32.mrb[0].mxu0
        %v3599 = vadd.f32 0.0, %v3598
        %v3600 = vpop.f32.mrb[0].mxu0
        %3601 = vmatprep.mubr.f32.mxu0 0.0
        %v3602 = vand.u32 %v3426, 4294901760
        %v3603 = vsub.f32 %v3426, %v3602
        %v3604 = vand.u32 %v3603, 4294901760
        %v3605 = vsub.f32 %v3603, %v3604
        %v3606 = vand.u32 %v3605, 4294901760
        %3607 = vmatmul.mubr.f32.gmra.mrb[0].mxu0 %v3606
        %v3608 = vpop.f32.mrb[0].mxu0
        %v3609 = vadd.f32 0.0, %v3608
        %v3610 = vpop.f32.mrb[0].mxu0
        %3611 = vmatprep.mubr.f32.mxu0 0.0
        %v3612 = vand.u32 %v3429, 4294901760
        %v3613 = vsub.f32 %v3429, %v3612
        %v3614 = vand.u32 %v3613, 4294901760
        %v3615 = vsub.f32 %v3613, %v3614
        %v3616 = vand.u32 %v3615, 4294901760
        %3617 = vmatmul.mubr.f32.gmra.mrb[0].mxu0 %v3616
        %v3618 = vpop.f32.mrb[0].mxu0
        %v3619 = vadd.f32 0.0, %v3618
        %v3620 = vpop.f32.mrb[0].mxu0
        %3621 = vmatprep.mubr.f32.mxu0 0.0
        %v3622 = vand.u32 %v3432, 4294901760
        %v3623 = vsub.f32 %v3432, %v3622
        %v3624 = vand.u32 %v3623, 4294901760
        %v3625 = vsub.f32 %v3623, %v3624
        %v3626 = vand.u32 %v3625, 4294901760
        %3627 = vmatmul.mubr.f32.gmra.mrb[0].mxu0 %v3626
        %v3628 = vpop.f32.mrb[0].mxu0
        %v3629 = vadd.f32 0.0, %v3628
        %v3630 = vpop.f32.mrb[0].mxu0
        %3631 = vmatprep.mubr.f32.mxu0 0.0
        %v3632 = vand.u32 %v3435, 4294901760
        %v3633 = vsub.f32 %v3435, %v3632
        %v3634 = vand.u32 %v3633, 4294901760
        %v3635 = vsub.f32 %v3633, %v3634
        %v3636 = vand.u32 %v3635, 4294901760
        %3637 = vmatmul.mubr.f32.gmra.mrb[0].mxu0 %v3636
        %v3638 = vpop.f32.mrb[0].mxu0
        %v3639 = vadd.f32 0.0, %v3638
        %v3640 = vpop.f32.mrb[0].mxu0
        %3641 = vmatprep.mubr.f32.mxu0 0.0
        %v3642 = vand.u32 %v3438, 4294901760
        %v3643 = vsub.f32 %v3438, %v3642
        %v3644 = vand.u32 %v3643, 4294901760
        %v3645 = vsub.f32 %v3643, %v3644
        %v3646 = vand.u32 %v3645, 4294901760
        %3647 = vmatmul.mubr.f32.gmra.mrb[0].mxu0 %v3646
        %v3648 = vpop.f32.mrb[0].mxu0
        %v3649 = vadd.f32 0.0, %v3648
        %v3650 = vpop.f32.mrb[0].mxu0
        %3651 = vmatprep.mubr.f32.mxu0 0.0
        %v3652 = vand.u32 %v3441, 4294901760
        %v3653 = vsub.f32 %v3441, %v3652
        %v3654 = vand.u32 %v3653, 4294901760
        %v3655 = vsub.f32 %v3653, %v3654
        %v3656 = vand.u32 %v3655, 4294901760
        %3657 = vmatmul.mubr.f32.gmra.mrb[0].mxu0 %v3656
        %v3658 = vpop.f32.mrb[0].mxu0
        %v3659 = vadd.f32 0.0, %v3658
        %v3660 = vpop.f32.mrb[0].mxu0
        %3661 = vmatprep.mubr.f32.mxu0 0.0
        %v3662 = vand.u32 %v3444, 4294901760
        %v3663 = vsub.f32 %v3444, %v3662
        %v3664 = vand.u32 %v3663, 4294901760
        %v3665 = vsub.f32 %v3663, %v3664
        %v3666 = vand.u32 %v3665, 4294901760
        %3667 = vmatmul.mubr.f32.gmra.mrb[0].mxu0 %v3666
        %v3668 = vpop.f32.mrb[0].mxu0
        %v3669 = vadd.f32 0.0, %v3668
        %v3670 = vpop.f32.mrb[0].mxu0
        %3671 = vmatprep.mubr.f32.mxu0 0.0
        %v3672 = vand.u32 %v3447, 4294901760
        %v3673 = vsub.f32 %v3447, %v3672
        %v3674 = vand.u32 %v3673, 4294901760
        %v3675 = vsub.f32 %v3673, %v3674
        %v3676 = vand.u32 %v3675, 4294901760
        %3677 = vmatmul.mubr.f32.gmra.mrb[0].mxu0 %v3676
        %v3678 = vpop.f32.mrb[0].mxu0
        %v3679 = vadd.f32 0.0, %v3678
        %v3680 = vpop.f32.mrb[0].mxu0
        %3681 = vdwg.mxu0
        %3682 = vmatprep.subr.mxu0 0.0
        %v3683 = vand.u32 %v995, 4294901760
        %v3684 = vsub.f32 %v995, %v3683
        %v3685 = vand.u32 %v3684, 4294901760
        %v3686 = vsub.f32 %v3684, %v3685
        %v3687 = vand.u32 %v3686, 4294901760
        %3688 = vmatpush1.msra.mxu0 %v3687
        %3689 = vmatprep.subr.mxu0 0.0
        %v3690 = vand.u32 %v996, 4294901760
        %v3691 = vsub.f32 %v996, %v3690
        %v3692 = vand.u32 %v3691, 4294901760
        %v3693 = vsub.f32 %v3691, %v3692
        %v3694 = vand.u32 %v3693, 4294901760
        %3695 = vmatpush1.msra.mxu0 %v3694
        %3696 = vmatprep.subr.mxu0 0.0
        %v3697 = vand.u32 %v997, 4294901760
        %v3698 = vsub.f32 %v997, %v3697
        %v3699 = vand.u32 %v3698, 4294901760
        %v3700 = vsub.f32 %v3698, %v3699
        %v3701 = vand.u32 %v3700, 4294901760
        %3702 = vmatpush1.msra.mxu0 %v3701
        %3703 = vmatprep.subr.mxu0 0.0
        %v3704 = vand.u32 %v998, 4294901760
        %v3705 = vsub.f32 %v998, %v3704
        %v3706 = vand.u32 %v3705, 4294901760
        %v3707 = vsub.f32 %v3705, %v3706
        %v3708 = vand.u32 %v3707, 4294901760
        %3709 = vmatpush1.msra.mxu0 %v3708
        %3710 = vmatprep.subr.mxu0 0.0
        %v3711 = vand.u32 %v999, 4294901760
        %v3712 = vsub.f32 %v999, %v3711
        %v3713 = vand.u32 %v3712, 4294901760
        %v3714 = vsub.f32 %v3712, %v3713
        %v3715 = vand.u32 %v3714, 4294901760
        %3716 = vmatpush1.msra.mxu0 %v3715
        %3717 = vmatprep.subr.mxu0 0.0
        %v3718 = vand.u32 %v1000, 4294901760
        %v3719 = vsub.f32 %v1000, %v3718
        %v3720 = vand.u32 %v3719, 4294901760
        %v3721 = vsub.f32 %v3719, %v3720
        %v3722 = vand.u32 %v3721, 4294901760
        %3723 = vmatpush1.msra.mxu0 %v3722
        %3724 = vmatprep.subr.mxu0 0.0
        %v3725 = vand.u32 %v1001, 4294901760
        %v3726 = vsub.f32 %v1001, %v3725
        %v3727 = vand.u32 %v3726, 4294901760
        %v3728 = vsub.f32 %v3726, %v3727
        %v3729 = vand.u32 %v3728, 4294901760
        %3730 = vmatpush1.msra.mxu0 %v3729
        %3731 = vmatprep.subr.mxu0 0.0
        %v3732 = vand.u32 %v1002, 4294901760
        %v3733 = vsub.f32 %v1002, %v3732
        %v3734 = vand.u32 %v3733, 4294901760
        %v3735 = vsub.f32 %v3733, %v3734
        %v3736 = vand.u32 %v3735, 4294901760
        %3737 = vmatpush1.msra.mxu0 %v3736
        %3738 = vmatprep.subr.mxu0 0.0
        %3739 = vmatpush1.msra.mxu0 0.0
        %3740 = vmatprep.subr.mxu0 0.0
        %3741 = vmatpush1.msra.mxu0 0.0
        %3742 = vmatprep.subr.mxu0 0.0
        %3743 = vmatpush1.msra.mxu0 0.0
        %3744 = vmatprep.subr.mxu0 0.0
        %3745 = vmatpush1.msra.mxu0 0.0
        %3746 = vmatprep.subr.mxu0 0.0
        %3747 = vmatpush1.msra.mxu0 0.0
        %3748 = vmatprep.subr.mxu0 0.0
        %3749 = vmatpush1.msra.mxu0 0.0
        %3750 = vmatprep.subr.mxu0 0.0
        %3751 = vmatpush1.msra.mxu0 0.0
        %3752 = vmatprep.subr.mxu0 0.0
        %3753 = vmatpush1.msra.mxu0 0.0
        %3754 = vmatprep.subr.mxu0 0.0
        %3755 = vmatpush1.msra.mxu0 0.0
        %3756 = vmatprep.subr.mxu0 0.0
        %3757 = vmatpush1.msra.mxu0 0.0
        %3758 = vmatprep.subr.mxu0 0.0
        %3759 = vmatpush1.msra.mxu0 0.0
        %3760 = vmatprep.subr.mxu0 0.0
        %3761 = vmatpush1.msra.mxu0 0.0
        %3762 = vmatprep.subr.mxu0 0.0
        %3763 = vmatpush1.msra.mxu0 0.0
        %3764 = vmatprep.subr.mxu0 0.0
        %3765 = vmatpush1.msra.mxu0 0.0
        %3766 = vmatprep.subr.mxu0 0.0
        %3767 = vmatpush1.msra.mxu0 0.0
        %3768 = vmatprep.subr.mxu0 0.0
        %3769 = vmatpush1.msra.mxu0 0.0
        %3770 = vmatprep.subr.mxu0 0.0
        %3771 = vmatpush1.msra.mxu0 0.0
        %3772 = vmatprep.subr.mxu0 0.0
        %3773 = vmatpush1.msra.mxu0 0.0
        %3774 = vmatprep.subr.mxu0 0.0
        %3775 = vmatpush1.msra.mxu0 0.0
        %3776 = vmatprep.subr.mxu0 0.0
        %3777 = vmatpush1.msra.mxu0 0.0
        %3778 = vmatprep.subr.mxu0 0.0
        %3779 = vmatpush1.msra.mxu0 0.0
        %3780 = vmatprep.subr.mxu0 0.0
        %3781 = vmatpush1.msra.mxu0 0.0
        %3782 = vmatprep.subr.mxu0 0.0
        %3783 = vmatpush1.msra.mxu0 0.0
        %3784 = vmatprep.subr.mxu0 0.0
        %3785 = vmatpush1.msra.mxu0 0.0
        %3786 = vmatprep.mubr.f32.mxu0 0.0
        %v3787 = vand.u32 %v3402, 4294901760
        %3788 = vmatmul.mubr.f32.gmra.mrb[0].mxu0 %v3787
        %v3789 = vpop.f32.mrb[0].mxu0
        %v3790 = vadd.f32 %v3529, %v3789
        %v3791 = vpop.f32.mrb[0].mxu0
        %3792 = vmatprep.mubr.f32.mxu0 0.0
        %v3793 = vand.u32 %v3405, 4294901760
        %3794 = vmatmul.mubr.f32.gmra.mrb[0].mxu0 %v3793
        %v3795 = vpop.f32.mrb[0].mxu0
        %v3796 = vadd.f32 %v3539, %v3795
        %v3797 = vpop.f32.mrb[0].mxu0
        %3798 = vmatprep.mubr.f32.mxu0 0.0
        %v3799 = vand.u32 %v3408, 4294901760
        %3800 = vmatmul.mubr.f32.gmra.mrb[0].mxu0 %v3799
        %v3801 = vpop.f32.mrb[0].mxu0
        %v3802 = vadd.f32 %v3549, %v3801
        %v3803 = vpop.f32.mrb[0].mxu0
        %3804 = vmatprep.mubr.f32.mxu0 0.0
        %v3805 = vand.u32 %v3411, 4294901760
        %3806 = vmatmul.mubr.f32.gmra.mrb[0].mxu0 %v3805
        %v3807 = vpop.f32.mrb[0].mxu0
        %v3808 = vadd.f32 %v3559, %v3807
        %v3809 = vpop.f32.mrb[0].mxu0
        %3810 = vmatprep.mubr.f32.mxu0 0.0
        %v3811 = vand.u32 %v3414, 4294901760
        %3812 = vmatmul.mubr.f32.gmra.mrb[0].mxu0 %v3811
        %v3813 = vpop.f32.mrb[0].mxu0
        %v3814 = vadd.f32 %v3569, %v3813
        %v3815 = vpop.f32.mrb[0].mxu0
        %3816 = vmatprep.mubr.f32.mxu0 0.0
        %v3817 = vand.u32 %v3417, 4294901760
        %3818 = vmatmul.mubr.f32.gmra.mrb[0].mxu0 %v3817
        %v3819 = vpop.f32.mrb[0].mxu0
        %v3820 = vadd.f32 %v3579, %v3819
        %v3821 = vpop.f32.mrb[0].mxu0
        %3822 = vmatprep.mubr.f32.mxu0 0.0
        %v3823 = vand.u32 %v3420, 4294901760
        %3824 = vmatmul.mubr.f32.gmra.mrb[0].mxu0 %v3823
        %v3825 = vpop.f32.mrb[0].mxu0
        %v3826 = vadd.f32 %v3589, %v3825
        %v3827 = vpop.f32.mrb[0].mxu0
        %3828 = vmatprep.mubr.f32.mxu0 0.0
        %v3829 = vand.u32 %v3423, 4294901760
        %3830 = vmatmul.mubr.f32.gmra.mrb[0].mxu0 %v3829
        %v3831 = vpop.f32.mrb[0].mxu0
        %v3832 = vadd.f32 %v3599, %v3831
        %v3833 = vpop.f32.mrb[0].mxu0
        %3834 = vmatprep.mubr.f32.mxu0 0.0
        %v3835 = vand.u32 %v3426, 4294901760
        %3836 = vmatmul.mubr.f32.gmra.mrb[0].mxu0 %v3835
        %v3837 = vpop.f32.mrb[0].mxu0
        %v3838 = vadd.f32 %v3609, %v3837
        %v3839 = vpop.f32.mrb[0].mxu0
        %3840 = vmatprep.mubr.f32.mxu0 0.0
        %v3841 = vand.u32 %v3429, 4294901760
        %3842 = vmatmul.mubr.f32.gmra.mrb[0].mxu0 %v3841
        %v3843 = vpop.f32.mrb[0].mxu0
        %v3844 = vadd.f32 %v3619, %v3843
        %v3845 = vpop.f32.mrb[0].mxu0
        %3846 = vmatprep.mubr.f32.mxu0 0.0
        %v3847 = vand.u32 %v3432, 4294901760
        %3848 = vmatmul.mubr.f32.gmra.mrb[0].mxu0 %v3847
        %v3849 = vpop.f32.mrb[0].mxu0
        %v3850 = vadd.f32 %v3629, %v3849
        %v3851 = vpop.f32.mrb[0].mxu0
        %3852 = vmatprep.mubr.f32.mxu0 0.0
        %v3853 = vand.u32 %v3435, 4294901760
        %3854 = vmatmul.mubr.f32.gmra.mrb[0].mxu0 %v3853
        %v3855 = vpop.f32.mrb[0].mxu0
        %v3856 = vadd.f32 %v3639, %v3855
        %v3857 = vpop.f32.mrb[0].mxu0
        %3858 = vmatprep.mubr.f32.mxu0 0.0
        %v3859 = vand.u32 %v3438, 4294901760
        %3860 = vmatmul.mubr.f32.gmra.mrb[0].mxu0 %v3859
        %v3861 = vpop.f32.mrb[0].mxu0
        %v3862 = vadd.f32 %v3649, %v3861
        %v3863 = vpop.f32.mrb[0].mxu0
        %3864 = vmatprep.mubr.f32.mxu0 0.0
        %v3865 = vand.u32 %v3441, 4294901760
        %3866 = vmatmul.mubr.f32.gmra.mrb[0].mxu0 %v3865
        %v3867 = vpop.f32.mrb[0].mxu0
        %v3868 = vadd.f32 %v3659, %v3867
        %v3869 = vpop.f32.mrb[0].mxu0
        %3870 = vmatprep.mubr.f32.mxu0 0.0
        %v3871 = vand.u32 %v3444, 4294901760
        %3872 = vmatmul.mubr.f32.gmra.mrb[0].mxu0 %v3871
        %v3873 = vpop.f32.mrb[0].mxu0
        %v3874 = vadd.f32 %v3669, %v3873
        %v3875 = vpop.f32.mrb[0].mxu0
        %3876 = vmatprep.mubr.f32.mxu0 0.0
        %v3877 = vand.u32 %v3447, 4294901760
        %3878 = vmatmul.mubr.f32.gmra.mrb[0].mxu0 %v3877
        %v3879 = vpop.f32.mrb[0].mxu0
        %v3880 = vadd.f32 %v3679, %v3879
        %v3881 = vpop.f32.mrb[0].mxu0
        %3882 = vdwg.mxu0
        %3883 = vmatprep.subr.mxu0 0.0
        %v3884 = vand.u32 %v995, 4294901760
        %v3885 = vsub.f32 %v995, %v3884
        %3886 = vmatpush1.msra.mxu0 %v3885
        %3887 = vmatprep.subr.mxu0 0.0
        %v3888 = vand.u32 %v996, 4294901760
        %v3889 = vsub.f32 %v996, %v3888
        %3890 = vmatpush1.msra.mxu0 %v3889
        %3891 = vmatprep.subr.mxu0 0.0
        %v3892 = vand.u32 %v997, 4294901760
        %v3893 = vsub.f32 %v997, %v3892
        %3894 = vmatpush1.msra.mxu0 %v3893
        %3895 = vmatprep.subr.mxu0 0.0
        %v3896 = vand.u32 %v998, 4294901760
        %v3897 = vsub.f32 %v998, %v3896
        %3898 = vmatpush1.msra.mxu0 %v3897
        %3899 = vmatprep.subr.mxu0 0.0
        %v3900 = vand.u32 %v999, 4294901760
        %v3901 = vsub.f32 %v999, %v3900
        %3902 = vmatpush1.msra.mxu0 %v3901
        %3903 = vmatprep.subr.mxu0 0.0
        %v3904 = vand.u32 %v1000, 4294901760
        %v3905 = vsub.f32 %v1000, %v3904
        %3906 = vmatpush1.msra.mxu0 %v3905
        %3907 = vmatprep.subr.mxu0 0.0
        %v3908 = vand.u32 %v1001, 4294901760
        %v3909 = vsub.f32 %v1001, %v3908
        %3910 = vmatpush1.msra.mxu0 %v3909
        %3911 = vmatprep.subr.mxu0 0.0
        %v3912 = vand.u32 %v1002, 4294901760
        %v3913 = vsub.f32 %v1002, %v3912
        %3914 = vmatpush1.msra.mxu0 %v3913
        %3915 = vmatprep.subr.mxu0 0.0
        %3916 = vmatpush1.msra.mxu0 0.0
        %3917 = vmatprep.subr.mxu0 0.0
        %3918 = vmatpush1.msra.mxu0 0.0
        %3919 = vmatprep.subr.mxu0 0.0
        %3920 = vmatpush1.msra.mxu0 0.0
        %3921 = vmatprep.subr.mxu0 0.0
        %3922 = vmatpush1.msra.mxu0 0.0
        %3923 = vmatprep.subr.mxu0 0.0
        %3924 = vmatpush1.msra.mxu0 0.0
        %3925 = vmatprep.subr.mxu0 0.0
        %3926 = vmatpush1.msra.mxu0 0.0
        %3927 = vmatprep.subr.mxu0 0.0
        %3928 = vmatpush1.msra.mxu0 0.0
        %3929 = vmatprep.subr.mxu0 0.0
        %3930 = vmatpush1.msra.mxu0 0.0
        %3931 = vmatprep.subr.mxu0 0.0
        %3932 = vmatpush1.msra.mxu0 0.0
        %3933 = vmatprep.subr.mxu0 0.0
        %3934 = vmatpush1.msra.mxu0 0.0
        %3935 = vmatprep.subr.mxu0 0.0
        %3936 = vmatpush1.msra.mxu0 0.0
        %3937 = vmatprep.subr.mxu0 0.0
        %3938 = vmatpush1.msra.mxu0 0.0
        %3939 = vmatprep.subr.mxu0 0.0
        %3940 = vmatpush1.msra.mxu0 0.0
        %3941 = vmatprep.subr.mxu0 0.0
        %3942 = vmatpush1.msra.mxu0 0.0
        %3943 = vmatprep.subr.mxu0 0.0
        %3944 = vmatpush1.msra.mxu0 0.0
        %3945 = vmatprep.subr.mxu0 0.0
        %3946 = vmatpush1.msra.mxu0 0.0
        %3947 = vmatprep.subr.mxu0 0.0
        %3948 = vmatpush1.msra.mxu0 0.0
        %3949 = vmatprep.subr.mxu0 0.0
        %3950 = vmatpush1.msra.mxu0 0.0
        %3951 = vmatprep.subr.mxu0 0.0
        %3952 = vmatpush1.msra.mxu0 0.0
        %3953 = vmatprep.subr.mxu0 0.0
        %3954 = vmatpush1.msra.mxu0 0.0
        %3955 = vmatprep.subr.mxu0 0.0
        %3956 = vmatpush1.msra.mxu0 0.0
        %3957 = vmatprep.subr.mxu0 0.0
        %3958 = vmatpush1.msra.mxu0 0.0
        %3959 = vmatprep.subr.mxu0 0.0
        %3960 = vmatpush1.msra.mxu0 0.0
        %3961 = vmatprep.subr.mxu0 0.0
        %3962 = vmatpush1.msra.mxu0 0.0
        %3963 = vmatprep.mubr.f32.mxu0 0.0
        %v3964 = vand.u32 %v3402, 4294901760
        %v3965 = vsub.f32 %v3402, %v3964
        %3966 = vmatmul.mubr.f32.gmra.mrb[0].mxu0 %v3965
        %v3967 = vpop.f32.mrb[0].mxu0
        %v3968 = vadd.f32 %v3790, %v3967
        %v3969 = vpop.f32.mrb[0].mxu0
        %3970 = vmatprep.mubr.f32.mxu0 0.0
        %v3971 = vand.u32 %v3405, 4294901760
        %v3972 = vsub.f32 %v3405, %v3971
        %3973 = vmatmul.mubr.f32.gmra.mrb[0].mxu0 %v3972
        %v3974 = vpop.f32.mrb[0].mxu0
        %v3975 = vadd.f32 %v3796, %v3974
        %v3976 = vpop.f32.mrb[0].mxu0
        %3977 = vmatprep.mubr.f32.mxu0 0.0
        %v3978 = vand.u32 %v3408, 4294901760
        %v3979 = vsub.f32 %v3408, %v3978
        %3980 = vmatmul.mubr.f32.gmra.mrb[0].mxu0 %v3979
        %v3981 = vpop.f32.mrb[0].mxu0
        %v3982 = vadd.f32 %v3802, %v3981
        %v3983 = vpop.f32.mrb[0].mxu0
        %3984 = vmatprep.mubr.f32.mxu0 0.0
        %v3985 = vand.u32 %v3411, 4294901760
        %v3986 = vsub.f32 %v3411, %v3985
        %3987 = vmatmul.mubr.f32.gmra.mrb[0].mxu0 %v3986
        %v3988 = vpop.f32.mrb[0].mxu0
        %v3989 = vadd.f32 %v3808, %v3988
        %v3990 = vpop.f32.mrb[0].mxu0
        %3991 = vmatprep.mubr.f32.mxu0 0.0
        %v3992 = vand.u32 %v3414, 4294901760
        %v3993 = vsub.f32 %v3414, %v3992
        %3994 = vmatmul.mubr.f32.gmra.mrb[0].mxu0 %v3993
        %v3995 = vpop.f32.mrb[0].mxu0
        %v3996 = vadd.f32 %v3814, %v3995
        %v3997 = vpop.f32.mrb[0].mxu0
        %3998 = vmatprep.mubr.f32.mxu0 0.0
        %v3999 = vand.u32 %v3417, 4294901760
        %v4000 = vsub.f32 %v3417, %v3999
        %4001 = vmatmul.mubr.f32.gmra.mrb[0].mxu0 %v4000
        %v4002 = vpop.f32.mrb[0].mxu0
        %v4003 = vadd.f32 %v3820, %v4002
        %v4004 = vpop.f32.mrb[0].mxu0
        %4005 = vmatprep.mubr.f32.mxu0 0.0
        %v4006 = vand.u32 %v3420, 4294901760
        %v4007 = vsub.f32 %v3420, %v4006
        %4008 = vmatmul.mubr.f32.gmra.mrb[0].mxu0 %v4007
        %v4009 = vpop.f32.mrb[0].mxu0
        %v4010 = vadd.f32 %v3826, %v4009
        %v4011 = vpop.f32.mrb[0].mxu0
        %4012 = vmatprep.mubr.f32.mxu0 0.0
        %v4013 = vand.u32 %v3423, 4294901760
        %v4014 = vsub.f32 %v3423, %v4013
        %4015 = vmatmul.mubr.f32.gmra.mrb[0].mxu0 %v4014
        %v4016 = vpop.f32.mrb[0].mxu0
        %v4017 = vadd.f32 %v3832, %v4016
        %v4018 = vpop.f32.mrb[0].mxu0
        %4019 = vmatprep.mubr.f32.mxu0 0.0
        %v4020 = vand.u32 %v3426, 4294901760
        %v4021 = vsub.f32 %v3426, %v4020
        %4022 = vmatmul.mubr.f32.gmra.mrb[0].mxu0 %v4021
        %v4023 = vpop.f32.mrb[0].mxu0
        %v4024 = vadd.f32 %v3838, %v4023
        %v4025 = vpop.f32.mrb[0].mxu0
        %4026 = vmatprep.mubr.f32.mxu0 0.0
        %v4027 = vand.u32 %v3429, 4294901760
        %v4028 = vsub.f32 %v3429, %v4027
        %4029 = vmatmul.mubr.f32.gmra.mrb[0].mxu0 %v4028
        %v4030 = vpop.f32.mrb[0].mxu0
        %v4031 = vadd.f32 %v3844, %v4030
        %v4032 = vpop.f32.mrb[0].mxu0
        %4033 = vmatprep.mubr.f32.mxu0 0.0
        %v4034 = vand.u32 %v3432, 4294901760
        %v4035 = vsub.f32 %v3432, %v4034
        %4036 = vmatmul.mubr.f32.gmra.mrb[0].mxu0 %v4035
        %v4037 = vpop.f32.mrb[0].mxu0
        %v4038 = vadd.f32 %v3850, %v4037
        %v4039 = vpop.f32.mrb[0].mxu0
        %4040 = vmatprep.mubr.f32.mxu0 0.0
        %v4041 = vand.u32 %v3435, 4294901760
        %v4042 = vsub.f32 %v3435, %v4041
        %4043 = vmatmul.mubr.f32.gmra.mrb[0].mxu0 %v4042
        %v4044 = vpop.f32.mrb[0].mxu0
        %v4045 = vadd.f32 %v3856, %v4044
        %v4046 = vpop.f32.mrb[0].mxu0
        %4047 = vmatprep.mubr.f32.mxu0 0.0
        %v4048 = vand.u32 %v3438, 4294901760
        %v4049 = vsub.f32 %v3438, %v4048
        %4050 = vmatmul.mubr.f32.gmra.mrb[0].mxu0 %v4049
        %v4051 = vpop.f32.mrb[0].mxu0
        %v4052 = vadd.f32 %v3862, %v4051
        %v4053 = vpop.f32.mrb[0].mxu0
        %4054 = vmatprep.mubr.f32.mxu0 0.0
        %v4055 = vand.u32 %v3441, 4294901760
        %v4056 = vsub.f32 %v3441, %v4055
        %4057 = vmatmul.mubr.f32.gmra.mrb[0].mxu0 %v4056
        %v4058 = vpop.f32.mrb[0].mxu0
        %v4059 = vadd.f32 %v3868, %v4058
        %v4060 = vpop.f32.mrb[0].mxu0
        %4061 = vmatprep.mubr.f32.mxu0 0.0
        %v4062 = vand.u32 %v3444, 4294901760
        %v4063 = vsub.f32 %v3444, %v4062
        %4064 = vmatmul.mubr.f32.gmra.mrb[0].mxu0 %v4063
        %v4065 = vpop.f32.mrb[0].mxu0
        %v4066 = vadd.f32 %v3874, %v4065
        %v4067 = vpop.f32.mrb[0].mxu0
        %4068 = vmatprep.mubr.f32.mxu0 0.0
        %v4069 = vand.u32 %v3447, 4294901760
        %v4070 = vsub.f32 %v3447, %v4069
        %4071 = vmatmul.mubr.f32.gmra.mrb[0].mxu0 %v4070
        %v4072 = vpop.f32.mrb[0].mxu0
        %v4073 = vadd.f32 %v3880, %v4072
        %v4074 = vpop.f32.mrb[0].mxu0
        %4075 = vdwg.mxu0
        %4076 = vmatprep.subr.mxu0 0.0
        %v4077 = vand.u32 %v995, 4294901760
        %4078 = vmatpush1.msra.mxu0 %v4077
        %4079 = vmatprep.subr.mxu0 0.0
        %v4080 = vand.u32 %v996, 4294901760
        %4081 = vmatpush1.msra.mxu0 %v4080
        %4082 = vmatprep.subr.mxu0 0.0
        %v4083 = vand.u32 %v997, 4294901760
        %4084 = vmatpush1.msra.mxu0 %v4083
        %4085 = vmatprep.subr.mxu0 0.0
        %v4086 = vand.u32 %v998, 4294901760
        %4087 = vmatpush1.msra.mxu0 %v4086
        %4088 = vmatprep.subr.mxu0 0.0
        %v4089 = vand.u32 %v999, 4294901760
        %4090 = vmatpush1.msra.mxu0 %v4089
        %4091 = vmatprep.subr.mxu0 0.0
        %v4092 = vand.u32 %v1000, 4294901760
        %4093 = vmatpush1.msra.mxu0 %v4092
        %4094 = vmatprep.subr.mxu0 0.0
        %v4095 = vand.u32 %v1001, 4294901760
        %4096 = vmatpush1.msra.mxu0 %v4095
        %4097 = vmatprep.subr.mxu0 0.0
        %v4098 = vand.u32 %v1002, 4294901760
        %4099 = vmatpush1.msra.mxu0 %v4098
        %4100 = vmatprep.subr.mxu0 0.0
        %4101 = vmatpush1.msra.mxu0 0.0
        %4102 = vmatprep.subr.mxu0 0.0
        %4103 = vmatpush1.msra.mxu0 0.0
        %4104 = vmatprep.subr.mxu0 0.0
        %4105 = vmatpush1.msra.mxu0 0.0
        %4106 = vmatprep.subr.mxu0 0.0
        %4107 = vmatpush1.msra.mxu0 0.0
        %4108 = vmatprep.subr.mxu0 0.0
        %4109 = vmatpush1.msra.mxu0 0.0
        %4110 = vmatprep.subr.mxu0 0.0
        %4111 = vmatpush1.msra.mxu0 0.0
        %4112 = vmatprep.subr.mxu0 0.0
        %4113 = vmatpush1.msra.mxu0 0.0
        %4114 = vmatprep.subr.mxu0 0.0
        %4115 = vmatpush1.msra.mxu0 0.0
        %4116 = vmatprep.subr.mxu0 0.0
        %4117 = vmatpush1.msra.mxu0 0.0
        %4118 = vmatprep.subr.mxu0 0.0
        %4119 = vmatpush1.msra.mxu0 0.0
        %4120 = vmatprep.subr.mxu0 0.0
        %4121 = vmatpush1.msra.mxu0 0.0
        %4122 = vmatprep.subr.mxu0 0.0
        %4123 = vmatpush1.msra.mxu0 0.0
        %4124 = vmatprep.subr.mxu0 0.0
        %4125 = vmatpush1.msra.mxu0 0.0
        %4126 = vmatprep.subr.mxu0 0.0
        %4127 = vmatpush1.msra.mxu0 0.0
        %4128 = vmatprep.subr.mxu0 0.0
        %4129 = vmatpush1.msra.mxu0 0.0
        %4130 = vmatprep.subr.mxu0 0.0
        %4131 = vmatpush1.msra.mxu0 0.0
        %4132 = vmatprep.subr.mxu0 0.0
        %4133 = vmatpush1.msra.mxu0 0.0
        %4134 = vmatprep.subr.mxu0 0.0
        %4135 = vmatpush1.msra.mxu0 0.0
        %4136 = vmatprep.subr.mxu0 0.0
        %4137 = vmatpush1.msra.mxu0 0.0
        %4138 = vmatprep.subr.mxu0 0.0
        %4139 = vmatpush1.msra.mxu0 0.0
        %4140 = vmatprep.subr.mxu0 0.0
        %4141 = vmatpush1.msra.mxu0 0.0
        %4142 = vmatprep.subr.mxu0 0.0
        %4143 = vmatpush1.msra.mxu0 0.0
        %4144 = vmatprep.subr.mxu0 0.0
        %4145 = vmatpush1.msra.mxu0 0.0
        %4146 = vmatprep.subr.mxu0 0.0
        %4147 = vmatpush1.msra.mxu0 0.0
        %4148 = vmatprep.mubr.f32.mxu0 0.0
        %v4149 = vand.u32 %v3402, 4294901760
        %v4150 = vsub.f32 %v3402, %v4149
        %v4151 = vand.u32 %v4150, 4294901760
        %4152 = vmatmul.mubr.f32.gmra.mrb[0].mxu0 %v4151
        %v4153 = vpop.f32.mrb[0].mxu0
        %v4154 = vadd.f32 %v3968, %v4153
        %v4155 = vpop.f32.mrb[0].mxu0
        %4156 = vmatprep.mubr.f32.mxu0 0.0
        %v4157 = vand.u32 %v3405, 4294901760
        %v4158 = vsub.f32 %v3405, %v4157
        %v4159 = vand.u32 %v4158, 4294901760
        %4160 = vmatmul.mubr.f32.gmra.mrb[0].mxu0 %v4159
        %v4161 = vpop.f32.mrb[0].mxu0
        %v4162 = vadd.f32 %v3975, %v4161
        %v4163 = vpop.f32.mrb[0].mxu0
        %4164 = vmatprep.mubr.f32.mxu0 0.0
        %v4165 = vand.u32 %v3408, 4294901760
        %v4166 = vsub.f32 %v3408, %v4165
        %v4167 = vand.u32 %v4166, 4294901760
        %4168 = vmatmul.mubr.f32.gmra.mrb[0].mxu0 %v4167
        %v4169 = vpop.f32.mrb[0].mxu0
        %v4170 = vadd.f32 %v3982, %v4169
        %v4171 = vpop.f32.mrb[0].mxu0
        %4172 = vmatprep.mubr.f32.mxu0 0.0
        %v4173 = vand.u32 %v3411, 4294901760
        %v4174 = vsub.f32 %v3411, %v4173
        %v4175 = vand.u32 %v4174, 4294901760
        %4176 = vmatmul.mubr.f32.gmra.mrb[0].mxu0 %v4175
        %v4177 = vpop.f32.mrb[0].mxu0
        %v4178 = vadd.f32 %v3989, %v4177
        %v4179 = vpop.f32.mrb[0].mxu0
        %4180 = vmatprep.mubr.f32.mxu0 0.0
        %v4181 = vand.u32 %v3414, 4294901760
        %v4182 = vsub.f32 %v3414, %v4181
        %v4183 = vand.u32 %v4182, 4294901760
        %4184 = vmatmul.mubr.f32.gmra.mrb[0].mxu0 %v4183
        %v4185 = vpop.f32.mrb[0].mxu0
        %v4186 = vadd.f32 %v3996, %v4185
        %v4187 = vpop.f32.mrb[0].mxu0
        %4188 = vmatprep.mubr.f32.mxu0 0.0
        %v4189 = vand.u32 %v3417, 4294901760
        %v4190 = vsub.f32 %v3417, %v4189
        %v4191 = vand.u32 %v4190, 4294901760
        %4192 = vmatmul.mubr.f32.gmra.mrb[0].mxu0 %v4191
        %v4193 = vpop.f32.mrb[0].mxu0
        %v4194 = vadd.f32 %v4003, %v4193
        %v4195 = vpop.f32.mrb[0].mxu0
        %4196 = vmatprep.mubr.f32.mxu0 0.0
        %v4197 = vand.u32 %v3420, 4294901760
        %v4198 = vsub.f32 %v3420, %v4197
        %v4199 = vand.u32 %v4198, 4294901760
        %4200 = vmatmul.mubr.f32.gmra.mrb[0].mxu0 %v4199
        %v4201 = vpop.f32.mrb[0].mxu0
        %v4202 = vadd.f32 %v4010, %v4201
        %v4203 = vpop.f32.mrb[0].mxu0
        %4204 = vmatprep.mubr.f32.mxu0 0.0
        %v4205 = vand.u32 %v3423, 4294901760
        %v4206 = vsub.f32 %v3423, %v4205
        %v4207 = vand.u32 %v4206, 4294901760
        %4208 = vmatmul.mubr.f32.gmra.mrb[0].mxu0 %v4207
        %v4209 = vpop.f32.mrb[0].mxu0
        %v4210 = vadd.f32 %v4017, %v4209
        %v4211 = vpop.f32.mrb[0].mxu0
        %4212 = vmatprep.mubr.f32.mxu0 0.0
        %v4213 = vand.u32 %v3426, 4294901760
        %v4214 = vsub.f32 %v3426, %v4213
        %v4215 = vand.u32 %v4214, 4294901760
        %4216 = vmatmul.mubr.f32.gmra.mrb[0].mxu0 %v4215
        %v4217 = vpop.f32.mrb[0].mxu0
        %v4218 = vadd.f32 %v4024, %v4217
        %v4219 = vpop.f32.mrb[0].mxu0
        %4220 = vmatprep.mubr.f32.mxu0 0.0
        %v4221 = vand.u32 %v3429, 4294901760
        %v4222 = vsub.f32 %v3429, %v4221
        %v4223 = vand.u32 %v4222, 4294901760
        %4224 = vmatmul.mubr.f32.gmra.mrb[0].mxu0 %v4223
        %v4225 = vpop.f32.mrb[0].mxu0
        %v4226 = vadd.f32 %v4031, %v4225
        %v4227 = vpop.f32.mrb[0].mxu0
        %4228 = vmatprep.mubr.f32.mxu0 0.0
        %v4229 = vand.u32 %v3432, 4294901760
        %v4230 = vsub.f32 %v3432, %v4229
        %v4231 = vand.u32 %v4230, 4294901760
        %4232 = vmatmul.mubr.f32.gmra.mrb[0].mxu0 %v4231
        %v4233 = vpop.f32.mrb[0].mxu0
        %v4234 = vadd.f32 %v4038, %v4233
        %v4235 = vpop.f32.mrb[0].mxu0
        %4236 = vmatprep.mubr.f32.mxu0 0.0
        %v4237 = vand.u32 %v3435, 4294901760
        %v4238 = vsub.f32 %v3435, %v4237
        %v4239 = vand.u32 %v4238, 4294901760
        %4240 = vmatmul.mubr.f32.gmra.mrb[0].mxu0 %v4239
        %v4241 = vpop.f32.mrb[0].mxu0
        %v4242 = vadd.f32 %v4045, %v4241
        %v4243 = vpop.f32.mrb[0].mxu0
        %4244 = vmatprep.mubr.f32.mxu0 0.0
        %v4245 = vand.u32 %v3438, 4294901760
        %v4246 = vsub.f32 %v3438, %v4245
        %v4247 = vand.u32 %v4246, 4294901760
        %4248 = vmatmul.mubr.f32.gmra.mrb[0].mxu0 %v4247
        %v4249 = vpop.f32.mrb[0].mxu0
        %v4250 = vadd.f32 %v4052, %v4249
        %v4251 = vpop.f32.mrb[0].mxu0
        %4252 = vmatprep.mubr.f32.mxu0 0.0
        %v4253 = vand.u32 %v3441, 4294901760
        %v4254 = vsub.f32 %v3441, %v4253
        %v4255 = vand.u32 %v4254, 4294901760
        %4256 = vmatmul.mubr.f32.gmra.mrb[0].mxu0 %v4255
        %v4257 = vpop.f32.mrb[0].mxu0
        %v4258 = vadd.f32 %v4059, %v4257
        %v4259 = vpop.f32.mrb[0].mxu0
        %4260 = vmatprep.mubr.f32.mxu0 0.0
        %v4261 = vand.u32 %v3444, 4294901760
        %v4262 = vsub.f32 %v3444, %v4261
        %v4263 = vand.u32 %v4262, 4294901760
        %4264 = vmatmul.mubr.f32.gmra.mrb[0].mxu0 %v4263
        %v4265 = vpop.f32.mrb[0].mxu0
        %v4266 = vadd.f32 %v4066, %v4265
        %v4267 = vpop.f32.mrb[0].mxu0
        %4268 = vmatprep.mubr.f32.mxu0 0.0
        %v4269 = vand.u32 %v3447, 4294901760
        %v4270 = vsub.f32 %v3447, %v4269
        %v4271 = vand.u32 %v4270, 4294901760
        %4272 = vmatmul.mubr.f32.gmra.mrb[0].mxu0 %v4271
        %v4273 = vpop.f32.mrb[0].mxu0
        %v4274 = vadd.f32 %v4073, %v4273
        %v4275 = vpop.f32.mrb[0].mxu0
        %4276 = vdwg.mxu0
        %4277 = vmatprep.subr.mxu0 0.0
        %v4278 = vand.u32 %v995, 4294901760
        %v4279 = vsub.f32 %v995, %v4278
        %v4280 = vand.u32 %v4279, 4294901760
        %4281 = vmatpush1.msra.mxu0 %v4280
        %4282 = vmatprep.subr.mxu0 0.0
        %v4283 = vand.u32 %v996, 4294901760
        %v4284 = vsub.f32 %v996, %v4283
        %v4285 = vand.u32 %v4284, 4294901760
        %4286 = vmatpush1.msra.mxu0 %v4285
        %4287 = vmatprep.subr.mxu0 0.0
        %v4288 = vand.u32 %v997, 4294901760
        %v4289 = vsub.f32 %v997, %v4288
        %v4290 = vand.u32 %v4289, 4294901760
        %4291 = vmatpush1.msra.mxu0 %v4290
        %4292 = vmatprep.subr.mxu0 0.0
        %v4293 = vand.u32 %v998, 4294901760
        %v4294 = vsub.f32 %v998, %v4293
        %v4295 = vand.u32 %v4294, 4294901760
        %4296 = vmatpush1.msra.mxu0 %v4295
        %4297 = vmatprep.subr.mxu0 0.0
        %v4298 = vand.u32 %v999, 4294901760
        %v4299 = vsub.f32 %v999, %v4298
        %v4300 = vand.u32 %v4299, 4294901760
        %4301 = vmatpush1.msra.mxu0 %v4300
        %4302 = vmatprep.subr.mxu0 0.0
        %v4303 = vand.u32 %v1000, 4294901760
        %v4304 = vsub.f32 %v1000, %v4303
        %v4305 = vand.u32 %v4304, 4294901760
        %4306 = vmatpush1.msra.mxu0 %v4305
        %4307 = vmatprep.subr.mxu0 0.0
        %v4308 = vand.u32 %v1001, 4294901760
        %v4309 = vsub.f32 %v1001, %v4308
        %v4310 = vand.u32 %v4309, 4294901760
        %4311 = vmatpush1.msra.mxu0 %v4310
        %4312 = vmatprep.subr.mxu0 0.0
        %v4313 = vand.u32 %v1002, 4294901760
        %v4314 = vsub.f32 %v1002, %v4313
        %v4315 = vand.u32 %v4314, 4294901760
        %4316 = vmatpush1.msra.mxu0 %v4315
        %4317 = vmatprep.subr.mxu0 0.0
        %4318 = vmatpush1.msra.mxu0 0.0
        %4319 = vmatprep.subr.mxu0 0.0
        %4320 = vmatpush1.msra.mxu0 0.0
        %4321 = vmatprep.subr.mxu0 0.0
        %4322 = vmatpush1.msra.mxu0 0.0
        %4323 = vmatprep.subr.mxu0 0.0
        %4324 = vmatpush1.msra.mxu0 0.0
        %4325 = vmatprep.subr.mxu0 0.0
        %4326 = vmatpush1.msra.mxu0 0.0
        %4327 = vmatprep.subr.mxu0 0.0
        %4328 = vmatpush1.msra.mxu0 0.0
        %4329 = vmatprep.subr.mxu0 0.0
        %4330 = vmatpush1.msra.mxu0 0.0
        %4331 = vmatprep.subr.mxu0 0.0
        %4332 = vmatpush1.msra.mxu0 0.0
        %4333 = vmatprep.subr.mxu0 0.0
        %4334 = vmatpush1.msra.mxu0 0.0
        %4335 = vmatprep.subr.mxu0 0.0
        %4336 = vmatpush1.msra.mxu0 0.0
        %4337 = vmatprep.subr.mxu0 0.0
        %4338 = vmatpush1.msra.mxu0 0.0
        %4339 = vmatprep.subr.mxu0 0.0
        %4340 = vmatpush1.msra.mxu0 0.0
        %4341 = vmatprep.subr.mxu0 0.0
        %4342 = vmatpush1.msra.mxu0 0.0
        %4343 = vmatprep.subr.mxu0 0.0
        %4344 = vmatpush1.msra.mxu0 0.0
        %4345 = vmatprep.subr.mxu0 0.0
        %4346 = vmatpush1.msra.mxu0 0.0
        %4347 = vmatprep.subr.mxu0 0.0
        %4348 = vmatpush1.msra.mxu0 0.0
        %4349 = vmatprep.subr.mxu0 0.0
        %4350 = vmatpush1.msra.mxu0 0.0
        %4351 = vmatprep.subr.mxu0 0.0
        %4352 = vmatpush1.msra.mxu0 0.0
        %4353 = vmatprep.subr.mxu0 0.0
        %4354 = vmatpush1.msra.mxu0 0.0
        %4355 = vmatprep.subr.mxu0 0.0
        %4356 = vmatpush1.msra.mxu0 0.0
        %4357 = vmatprep.subr.mxu0 0.0
        %4358 = vmatpush1.msra.mxu0 0.0
        %4359 = vmatprep.subr.mxu0 0.0
        %4360 = vmatpush1.msra.mxu0 0.0
        %4361 = vmatprep.subr.mxu0 0.0
        %4362 = vmatpush1.msra.mxu0 0.0
        %4363 = vmatprep.subr.mxu0 0.0
        %4364 = vmatpush1.msra.mxu0 0.0
        %4365 = vmatprep.mubr.f32.mxu0 0.0
        %v4366 = vand.u32 %v3402, 4294901760
        %4367 = vmatmul.mubr.f32.gmra.mrb[0].mxu0 %v4366
        %v4368 = vpop.f32.mrb[0].mxu0
        %v4369 = vadd.f32 %v4154, %v4368
        %v4370 = vpop.f32.mrb[0].mxu0
        %4371 = vmatprep.mubr.f32.mxu0 0.0
        %v4372 = vand.u32 %v3405, 4294901760
        %4373 = vmatmul.mubr.f32.gmra.mrb[0].mxu0 %v4372
        %v4374 = vpop.f32.mrb[0].mxu0
        %v4375 = vadd.f32 %v4162, %v4374
        %v4376 = vpop.f32.mrb[0].mxu0
        %4377 = vmatprep.mubr.f32.mxu0 0.0
        %v4378 = vand.u32 %v3408, 4294901760
        %4379 = vmatmul.mubr.f32.gmra.mrb[0].mxu0 %v4378
        %v4380 = vpop.f32.mrb[0].mxu0
        %v4381 = vadd.f32 %v4170, %v4380
        %v4382 = vpop.f32.mrb[0].mxu0
        %4383 = vmatprep.mubr.f32.mxu0 0.0
        %v4384 = vand.u32 %v3411, 4294901760
        %4385 = vmatmul.mubr.f32.gmra.mrb[0].mxu0 %v4384
        %v4386 = vpop.f32.mrb[0].mxu0
        %v4387 = vadd.f32 %v4178, %v4386
        %v4388 = vpop.f32.mrb[0].mxu0
        %4389 = vmatprep.mubr.f32.mxu0 0.0
        %v4390 = vand.u32 %v3414, 4294901760
        %4391 = vmatmul.mubr.f32.gmra.mrb[0].mxu0 %v4390
        %v4392 = vpop.f32.mrb[0].mxu0
        %v4393 = vadd.f32 %v4186, %v4392
        %v4394 = vpop.f32.mrb[0].mxu0
        %4395 = vmatprep.mubr.f32.mxu0 0.0
        %v4396 = vand.u32 %v3417, 4294901760
        %4397 = vmatmul.mubr.f32.gmra.mrb[0].mxu0 %v4396
        %v4398 = vpop.f32.mrb[0].mxu0
        %v4399 = vadd.f32 %v4194, %v4398
        %v4400 = vpop.f32.mrb[0].mxu0
        %4401 = vmatprep.mubr.f32.mxu0 0.0
        %v4402 = vand.u32 %v3420, 4294901760
        %4403 = vmatmul.mubr.f32.gmra.mrb[0].mxu0 %v4402
        %v4404 = vpop.f32.mrb[0].mxu0
        %v4405 = vadd.f32 %v4202, %v4404
        %v4406 = vpop.f32.mrb[0].mxu0
        %4407 = vmatprep.mubr.f32.mxu0 0.0
        %v4408 = vand.u32 %v3423, 4294901760
        %4409 = vmatmul.mubr.f32.gmra.mrb[0].mxu0 %v4408
        %v4410 = vpop.f32.mrb[0].mxu0
        %v4411 = vadd.f32 %v4210, %v4410
        %v4412 = vpop.f32.mrb[0].mxu0
        %4413 = vmatprep.mubr.f32.mxu0 0.0
        %v4414 = vand.u32 %v3426, 4294901760
        %4415 = vmatmul.mubr.f32.gmra.mrb[0].mxu0 %v4414
        %v4416 = vpop.f32.mrb[0].mxu0
        %v4417 = vadd.f32 %v4218, %v4416
        %v4418 = vpop.f32.mrb[0].mxu0
        %4419 = vmatprep.mubr.f32.mxu0 0.0
        %v4420 = vand.u32 %v3429, 4294901760
        %4421 = vmatmul.mubr.f32.gmra.mrb[0].mxu0 %v4420
        %v4422 = vpop.f32.mrb[0].mxu0
        %v4423 = vadd.f32 %v4226, %v4422
        %v4424 = vpop.f32.mrb[0].mxu0
        %4425 = vmatprep.mubr.f32.mxu0 0.0
        %v4426 = vand.u32 %v3432, 4294901760
        %4427 = vmatmul.mubr.f32.gmra.mrb[0].mxu0 %v4426
        %v4428 = vpop.f32.mrb[0].mxu0
        %v4429 = vadd.f32 %v4234, %v4428
        %v4430 = vpop.f32.mrb[0].mxu0
        %4431 = vmatprep.mubr.f32.mxu0 0.0
        %v4432 = vand.u32 %v3435, 4294901760
        %4433 = vmatmul.mubr.f32.gmra.mrb[0].mxu0 %v4432
        %v4434 = vpop.f32.mrb[0].mxu0
        %v4435 = vadd.f32 %v4242, %v4434
        %v4436 = vpop.f32.mrb[0].mxu0
        %4437 = vmatprep.mubr.f32.mxu0 0.0
        %v4438 = vand.u32 %v3438, 4294901760
        %4439 = vmatmul.mubr.f32.gmra.mrb[0].mxu0 %v4438
        %v4440 = vpop.f32.mrb[0].mxu0
        %v4441 = vadd.f32 %v4250, %v4440
        %v4442 = vpop.f32.mrb[0].mxu0
        %4443 = vmatprep.mubr.f32.mxu0 0.0
        %v4444 = vand.u32 %v3441, 4294901760
        %4445 = vmatmul.mubr.f32.gmra.mrb[0].mxu0 %v4444
        %v4446 = vpop.f32.mrb[0].mxu0
        %v4447 = vadd.f32 %v4258, %v4446
        %v4448 = vpop.f32.mrb[0].mxu0
        %4449 = vmatprep.mubr.f32.mxu0 0.0
        %v4450 = vand.u32 %v3444, 4294901760
        %4451 = vmatmul.mubr.f32.gmra.mrb[0].mxu0 %v4450
        %v4452 = vpop.f32.mrb[0].mxu0
        %v4453 = vadd.f32 %v4266, %v4452
        %v4454 = vpop.f32.mrb[0].mxu0
        %4455 = vmatprep.mubr.f32.mxu0 0.0
        %v4456 = vand.u32 %v3447, 4294901760
        %4457 = vmatmul.mubr.f32.gmra.mrb[0].mxu0 %v4456
        %v4458 = vpop.f32.mrb[0].mxu0
        %v4459 = vadd.f32 %v4274, %v4458
        %v4460 = vpop.f32.mrb[0].mxu0
        %4461 = vdwg.mxu0
        %4462 = vmatprep.subr.mxu0 0.0
        %v4463 = vand.u32 %v995, 4294901760
        %4464 = vmatpush1.msra.mxu0 %v4463
        %4465 = vmatprep.subr.mxu0 0.0
        %v4466 = vand.u32 %v996, 4294901760
        %4467 = vmatpush1.msra.mxu0 %v4466
        %4468 = vmatprep.subr.mxu0 0.0
        %v4469 = vand.u32 %v997, 4294901760
        %4470 = vmatpush1.msra.mxu0 %v4469
        %4471 = vmatprep.subr.mxu0 0.0
        %v4472 = vand.u32 %v998, 4294901760
        %4473 = vmatpush1.msra.mxu0 %v4472
        %4474 = vmatprep.subr.mxu0 0.0
        %v4475 = vand.u32 %v999, 4294901760
        %4476 = vmatpush1.msra.mxu0 %v4475
        %4477 = vmatprep.subr.mxu0 0.0
        %v4478 = vand.u32 %v1000, 4294901760
        %4479 = vmatpush1.msra.mxu0 %v4478
        %4480 = vmatprep.subr.mxu0 0.0
        %v4481 = vand.u32 %v1001, 4294901760
        %4482 = vmatpush1.msra.mxu0 %v4481
        %4483 = vmatprep.subr.mxu0 0.0
        %v4484 = vand.u32 %v1002, 4294901760
        %4485 = vmatpush1.msra.mxu0 %v4484
        %4486 = vmatprep.subr.mxu0 0.0
        %4487 = vmatpush1.msra.mxu0 0.0
        %4488 = vmatprep.subr.mxu0 0.0
        %4489 = vmatpush1.msra.mxu0 0.0
        %4490 = vmatprep.subr.mxu0 0.0
        %4491 = vmatpush1.msra.mxu0 0.0
        %4492 = vmatprep.subr.mxu0 0.0
        %4493 = vmatpush1.msra.mxu0 0.0
        %4494 = vmatprep.subr.mxu0 0.0
        %4495 = vmatpush1.msra.mxu0 0.0
        %4496 = vmatprep.subr.mxu0 0.0
        %4497 = vmatpush1.msra.mxu0 0.0
        %4498 = vmatprep.subr.mxu0 0.0
        %4499 = vmatpush1.msra.mxu0 0.0
        %4500 = vmatprep.subr.mxu0 0.0
        %4501 = vmatpush1.msra.mxu0 0.0
        %4502 = vmatprep.subr.mxu0 0.0
        %4503 = vmatpush1.msra.mxu0 0.0
        %4504 = vmatprep.subr.mxu0 0.0
        %4505 = vmatpush1.msra.mxu0 0.0
        %4506 = vmatprep.subr.mxu0 0.0
        %4507 = vmatpush1.msra.mxu0 0.0
        %4508 = vmatprep.subr.mxu0 0.0
        %4509 = vmatpush1.msra.mxu0 0.0
        %4510 = vmatprep.subr.mxu0 0.0
        %4511 = vmatpush1.msra.mxu0 0.0
        %4512 = vmatprep.subr.mxu0 0.0
        %4513 = vmatpush1.msra.mxu0 0.0
        %4514 = vmatprep.subr.mxu0 0.0
        %4515 = vmatpush1.msra.mxu0 0.0
        %4516 = vmatprep.subr.mxu0 0.0
        %4517 = vmatpush1.msra.mxu0 0.0
        %4518 = vmatprep.subr.mxu0 0.0
        %4519 = vmatpush1.msra.mxu0 0.0
        %4520 = vmatprep.subr.mxu0 0.0
        %4521 = vmatpush1.msra.mxu0 0.0
        %4522 = vmatprep.subr.mxu0 0.0
        %4523 = vmatpush1.msra.mxu0 0.0
        %4524 = vmatprep.subr.mxu0 0.0
        %4525 = vmatpush1.msra.mxu0 0.0
        %4526 = vmatprep.subr.mxu0 0.0
        %4527 = vmatpush1.msra.mxu0 0.0
        %4528 = vmatprep.subr.mxu0 0.0
        %4529 = vmatpush1.msra.mxu0 0.0
        %4530 = vmatprep.subr.mxu0 0.0
        %4531 = vmatpush1.msra.mxu0 0.0
        %4532 = vmatprep.subr.mxu0 0.0
        %4533 = vmatpush1.msra.mxu0 0.0
        %4534 = vmatprep.mubr.f32.mxu0 0.0
        %v4535 = vand.u32 %v3402, 4294901760
        %4536 = vmatmul.mubr.f32.gmra.mrb[0].mxu0 %v4535
        %v4537 = vpop.f32.mrb[0].mxu0
        %v4538 = vadd.f32 %v4369, %v4537
        %v4539 = vpop.f32.mrb[0].mxu0
        %4540 = vmatprep.mubr.f32.mxu0 0.0
        %v4541 = vand.u32 %v3405, 4294901760
        %4542 = vmatmul.mubr.f32.gmra.mrb[0].mxu0 %v4541
        %v4543 = vpop.f32.mrb[0].mxu0
        %v4544 = vadd.f32 %v4375, %v4543
        %v4545 = vpop.f32.mrb[0].mxu0
        %4546 = vmatprep.mubr.f32.mxu0 0.0
        %v4547 = vand.u32 %v3408, 4294901760
        %4548 = vmatmul.mubr.f32.gmra.mrb[0].mxu0 %v4547
        %v4549 = vpop.f32.mrb[0].mxu0
        %v4550 = vadd.f32 %v4381, %v4549
        %v4551 = vpop.f32.mrb[0].mxu0
        %4552 = vmatprep.mubr.f32.mxu0 0.0
        %v4553 = vand.u32 %v3411, 4294901760
        %4554 = vmatmul.mubr.f32.gmra.mrb[0].mxu0 %v4553
        %v4555 = vpop.f32.mrb[0].mxu0
        %v4556 = vadd.f32 %v4387, %v4555
        %v4557 = vpop.f32.mrb[0].mxu0
        %4558 = vmatprep.mubr.f32.mxu0 0.0
        %v4559 = vand.u32 %v3414, 4294901760
        %4560 = vmatmul.mubr.f32.gmra.mrb[0].mxu0 %v4559
        %v4561 = vpop.f32.mrb[0].mxu0
        %v4562 = vadd.f32 %v4393, %v4561
        %v4563 = vpop.f32.mrb[0].mxu0
        %4564 = vmatprep.mubr.f32.mxu0 0.0
        %v4565 = vand.u32 %v3417, 4294901760
        %4566 = vmatmul.mubr.f32.gmra.mrb[0].mxu0 %v4565
        %v4567 = vpop.f32.mrb[0].mxu0
        %v4568 = vadd.f32 %v4399, %v4567
        %v4569 = vpop.f32.mrb[0].mxu0
        %4570 = vmatprep.mubr.f32.mxu0 0.0
        %v4571 = vand.u32 %v3420, 4294901760
        %4572 = vmatmul.mubr.f32.gmra.mrb[0].mxu0 %v4571
        %v4573 = vpop.f32.mrb[0].mxu0
        %v4574 = vadd.f32 %v4405, %v4573
        %v4575 = vpop.f32.mrb[0].mxu0
        %4576 = vmatprep.mubr.f32.mxu0 0.0
        %v4577 = vand.u32 %v3423, 4294901760
        %4578 = vmatmul.mubr.f32.gmra.mrb[0].mxu0 %v4577
        %v4579 = vpop.f32.mrb[0].mxu0
        %v4580 = vadd.f32 %v4411, %v4579
        %v4581 = vpop.f32.mrb[0].mxu0
        %4582 = vmatprep.mubr.f32.mxu0 0.0
        %v4583 = vand.u32 %v3426, 4294901760
        %4584 = vmatmul.mubr.f32.gmra.mrb[0].mxu0 %v4583
        %v4585 = vpop.f32.mrb[0].mxu0
        %v4586 = vadd.f32 %v4417, %v4585
        %v4587 = vpop.f32.mrb[0].mxu0
        %4588 = vmatprep.mubr.f32.mxu0 0.0
        %v4589 = vand.u32 %v3429, 4294901760
        %4590 = vmatmul.mubr.f32.gmra.mrb[0].mxu0 %v4589
        %v4591 = vpop.f32.mrb[0].mxu0
        %v4592 = vadd.f32 %v4423, %v4591
        %v4593 = vpop.f32.mrb[0].mxu0
        %4594 = vmatprep.mubr.f32.mxu0 0.0
        %v4595 = vand.u32 %v3432, 4294901760
        %4596 = vmatmul.mubr.f32.gmra.mrb[0].mxu0 %v4595
        %v4597 = vpop.f32.mrb[0].mxu0
        %v4598 = vadd.f32 %v4429, %v4597
        %v4599 = vpop.f32.mrb[0].mxu0
        %4600 = vmatprep.mubr.f32.mxu0 0.0
        %v4601 = vand.u32 %v3435, 4294901760
        %4602 = vmatmul.mubr.f32.gmra.mrb[0].mxu0 %v4601
        %v4603 = vpop.f32.mrb[0].mxu0
        %v4604 = vadd.f32 %v4435, %v4603
        %v4605 = vpop.f32.mrb[0].mxu0
        %4606 = vmatprep.mubr.f32.mxu0 0.0
        %v4607 = vand.u32 %v3438, 4294901760
        %4608 = vmatmul.mubr.f32.gmra.mrb[0].mxu0 %v4607
        %v4609 = vpop.f32.mrb[0].mxu0
        %v4610 = vadd.f32 %v4441, %v4609
        %v4611 = vpop.f32.mrb[0].mxu0
        %4612 = vmatprep.mubr.f32.mxu0 0.0
        %v4613 = vand.u32 %v3441, 4294901760
        %4614 = vmatmul.mubr.f32.gmra.mrb[0].mxu0 %v4613
        %v4615 = vpop.f32.mrb[0].mxu0
        %v4616 = vadd.f32 %v4447, %v4615
        %v4617 = vpop.f32.mrb[0].mxu0
        %4618 = vmatprep.mubr.f32.mxu0 0.0
        %v4619 = vand.u32 %v3444, 4294901760
        %4620 = vmatmul.mubr.f32.gmra.mrb[0].mxu0 %v4619
        %v4621 = vpop.f32.mrb[0].mxu0
        %v4622 = vadd.f32 %v4453, %v4621
        %v4623 = vpop.f32.mrb[0].mxu0
        %4624 = vmatprep.mubr.f32.mxu0 0.0
        %v4625 = vand.u32 %v3447, 4294901760
        %4626 = vmatmul.mubr.f32.gmra.mrb[0].mxu0 %v4625
        %v4627 = vpop.f32.mrb[0].mxu0
        %v4628 = vadd.f32 %v4459, %v4627
        %v4629 = vpop.f32.mrb[0].mxu0
        %4630 = vdwg.mxu0
        %v4631 = vadd.f32 %v3352, %v4538
        %v4632 = vadd.f32 %v3353, %v4544
        %v4633 = vadd.f32 %v3354, %v4550
        %v4634 = vadd.f32 %v3355, %v4556
        %v4635 = vadd.f32 %v3356, %v4562
        %v4636 = vadd.f32 %v3357, %v4568
        %v4637 = vadd.f32 %v3358, %v4574
        %v4638 = vadd.f32 %v3359, %v4580
        %v4639 = vadd.f32 %v3360, %v4586
        %v4640 = vadd.f32 %v3361, %v4592
        %v4641 = vadd.f32 %v3362, %v4598
        %v4642 = vadd.f32 %v3363, %v4604
        %v4643 = vadd.f32 %v3364, %v4610
        %v4644 = vadd.f32 %v3365, %v4616
        %v4645 = vadd.f32 %v3366, %v4622
        %v4646 = vadd.f32 %v3367, %v4628
        %4647 = vst.msk [vmem:[#allocation3] sm:$0xff] %vm1011, %v4631
        %4648 = vst.msk [vmem:[#allocation3 + $0x8] sm:$0xff] %vm1011, %v4632
        %4649 = vst.msk [vmem:[#allocation3 + $0x10] sm:$0xff] %vm1011, %v4633
        %4650 = vst.msk [vmem:[#allocation3 + $0x18] sm:$0xff] %vm1011, %v4634
        %4651 = vst.msk [vmem:[#allocation3 + $0x20] sm:$0xff] %vm1011, %v4635
        %4652 = vst.msk [vmem:[#allocation3 + $0x28] sm:$0xff] %vm1011, %v4636
        %4653 = vst.msk [vmem:[#allocation3 + $0x30] sm:$0xff] %vm1011, %v4637
        %4654 = vst.msk [vmem:[#allocation3 + $0x38] sm:$0xff] %vm1011, %v4638
        %4655 = vst.msk [vmem:[#allocation3 + $0x40] sm:$0xff] %vm1011, %v4639
        %4656 = vst.msk [vmem:[#allocation3 + $0x48] sm:$0xff] %vm1011, %v4640
        %4657 = vst.msk [vmem:[#allocation3 + $0x50] sm:$0xff] %vm1011, %v4641
        %4658 = vst.msk [vmem:[#allocation3 + $0x58] sm:$0xff] %vm1011, %v4642
        %4659 = vst.msk [vmem:[#allocation3 + $0x60] sm:$0xff] %vm1011, %v4643
        %4660 = vst.msk [vmem:[#allocation3 + $0x68] sm:$0xff] %vm1011, %v4644
        %4661 = vst.msk [vmem:[#allocation3 + $0x70] sm:$0xff] %vm1011, %v4645
        %4662 = vst.msk [vmem:[#allocation3 + $0x78] sm:$0xff] %vm1011, %v4646
        // Predicated region
        $region33: #{distance_gumbel_softmax_vq.1} parent=27 // pred_check
          %p4663 = pneg %p260
        $region34: #{distance_gumbel_softmax_vq.1} parent=27 // pred_check_branch
          %4665 = sbr.rel (%p4663) target = $region36
        $region35: #{distance_gumbel_softmax_vq.1} parent=27 // pred_region
          %v4666 = vld [vmem:[#allocation4] sm:$0x1]
          %4667 = vst [vmem:[%s238] sm:$0x1] %v4666
          %v4668 = vld [vmem:[#allocation3] sm:$0xff]
          %v4669 = vld [vmem:[#allocation3 + $0x8] sm:$0xff]
          %v4670 = vld [vmem:[#allocation3 + $0x10] sm:$0xff]
          %v4671 = vld [vmem:[#allocation3 + $0x18] sm:$0xff]
          %v4672 = vld [vmem:[#allocation3 + $0x20] sm:$0xff]
          %v4673 = vld [vmem:[#allocation3 + $0x28] sm:$0xff]
          %v4674 = vld [vmem:[#allocation3 + $0x30] sm:$0xff]
          %v4675 = vld [vmem:[#allocation3 + $0x38] sm:$0xff]
          %v4676 = vld [vmem:[#allocation3 + $0x40] sm:$0xff]
          %v4677 = vld [vmem:[#allocation3 + $0x48] sm:$0xff]
          %v4678 = vld [vmem:[#allocation3 + $0x50] sm:$0xff]
          %v4679 = vld [vmem:[#allocation3 + $0x58] sm:$0xff]
          %v4680 = vld [vmem:[#allocation3 + $0x60] sm:$0xff]
          %v4681 = vld [vmem:[#allocation3 + $0x68] sm:$0xff]
          %v4682 = vld [vmem:[#allocation3 + $0x70] sm:$0xff]
          %v4683 = vld [vmem:[#allocation3 + $0x78] sm:$0xff]
          %4684 = vst.msk [vmem:[%s243] sm:$0xff] %vm1011, %v4668
          %4685 = vst.msk [vmem:[%s243 + $0x8] sm:$0xff] %vm1011, %v4669
          %4686 = vst.msk [vmem:[%s243 + $0x10] sm:$0xff] %vm1011, %v4670
          %4687 = vst.msk [vmem:[%s243 + $0x18] sm:$0xff] %vm1011, %v4671
          %4688 = vst.msk [vmem:[%s243 + $0x20] sm:$0xff] %vm1011, %v4672
          %4689 = vst.msk [vmem:[%s243 + $0x28] sm:$0xff] %vm1011, %v4673
          %4690 = vst.msk [vmem:[%s243 + $0x30] sm:$0xff] %vm1011, %v4674
          %4691 = vst.msk [vmem:[%s243 + $0x38] sm:$0xff] %vm1011, %v4675
          %4692 = vst.msk [vmem:[%s243 + $0x40] sm:$0xff] %vm1011, %v4676
          %4693 = vst.msk [vmem:[%s243 + $0x48] sm:$0xff] %vm1011, %v4677
          %4694 = vst.msk [vmem:[%s243 + $0x50] sm:$0xff] %vm1011, %v4678
          %4695 = vst.msk [vmem:[%s243 + $0x58] sm:$0xff] %vm1011, %v4679
          %4696 = vst.msk [vmem:[%s243 + $0x60] sm:$0xff] %vm1011, %v4680
          %4697 = vst.msk [vmem:[%s243 + $0x68] sm:$0xff] %vm1011, %v4681
          %4698 = vst.msk [vmem:[%s243 + $0x70] sm:$0xff] %vm1011, %v4682
          %4699 = vst.msk [vmem:[%s243 + $0x78] sm:$0xff] %vm1011, %v4683
        $region36: #{distance_gumbel_softmax_vq.1} parent=27 // pred_fallthru
          _
        %s4700 = sand.u32 %s92, 1
        %s4701 = scalar_lea.sflag [#allocation8], %s4700
        %s4702 = sand.u32 %s92, 1
        %s4703 = smul.addr %s4702, 32
        %s4704 = scalar_lea.vmem [#allocation7], %s4703
        %p4705 = scmp.lt.s32.totalorder %s25, 1
        %s4706 = scalar_select %p4705, %s25, 1
        %s4707 = scalar_lea.vmem %s4, %s4706
        %p4708 = scmp.lt.s32.totalorder %s25, 1
        %s4709 = scalar_select %p4708, %s25, 1
        %s4710 = smul.addr %s4709, 16
        %s4711 = smul.addr %s4710, 8
        %s4712 = scalar_lea.vmem %s5, %s4711
        // Predicated region
        $region37: #{distance_gumbel_softmax_vq.1} parent=27 // pred_check
          %p4713 = pneg %p102
        $region38: #{distance_gumbel_softmax_vq.1} parent=27 // pred_check_branch
          %4715 = sbr.rel (%p4713) target = $region40
        $region39: #{distance_gumbel_softmax_vq.1} parent=27 // pred_region
          %s4716 = sadd.s32 %s25, %s26
          %s4717 = smul.u32 8, %s4716
          %s4719 = ssub.s32 512, 512
          %4720 = vsyncadd %s4701, %s4719
          %s4721 = smul.addr %s4717, 64
          %s4722 = scalar_lea.hbm %s3, %s4721
          %s4723 = sshll.u32 %s4704, 4
          %s4724 = int_to_ptr.vmem [resolvable:$true] %s4723
          %4729 = dma.vmem_to_hbm [thread:$0]  %s4724, 512, %s4722, %s4701, 64, 64, 4
        $region40: #{distance_gumbel_softmax_vq.1} parent=27 // pred_fallthru
          _
        // Predicated region
        $region41: #{distance_gumbel_softmax_vq.1} parent=27 // pred_check
          %p4730 = pneg %p128
        $region42: #{distance_gumbel_softmax_vq.1} parent=27 // pred_check_branch
          %4732 = sbr.rel (%p4730) target = $region44
        $region43: #{distance_gumbel_softmax_vq.1} parent=27 // pred_region
          _
        $region44: #{distance_gumbel_softmax_vq.1} parent=27 // pred_fallthru
          _
        // Predicated region
        $region45: #{distance_gumbel_softmax_vq.1} parent=27 // pred_check
          %p4733 = pneg %p154
        $region46: #{distance_gumbel_softmax_vq.1} parent=27 // pred_check_branch
          %4735 = sbr.rel (%p4733) target = $region48
        $region47: #{distance_gumbel_softmax_vq.1} parent=27 // pred_region
          _
        $region48: #{distance_gumbel_softmax_vq.1} parent=27 // pred_fallthru
          _
      $region28: #{distance_gumbel_softmax_vq.1} parent=5 // pred_fallthru
        _
      %p4736 = scmp.le.s32.totalorder 2, %s16
      // Predicated region
      $region49: #{distance_gumbel_softmax_vq.1} parent=5 // pred_check
        %p4737 = pneg %p4736
      $region50: #{distance_gumbel_softmax_vq.1} parent=5 // pred_check_branch
        %4739 = sbr.rel (%p4737) target = $region52
      $region51: #{distance_gumbel_softmax_vq.1} parent=5 // pred_region
        %s4740 = ssub.s32 %s16, 2
        // Predicated region
        $region53: #{distance_gumbel_softmax_vq.1} parent=51 // pred_check
          %p4741 = pneg %p108
        $region54: #{distance_gumbel_softmax_vq.1} parent=51 // pred_check_branch
          %4743 = sbr.rel (%p4741) target = $region56
        $region55: #{distance_gumbel_softmax_vq.1} parent=51 // pred_region
          %s4744 = sand.u32 %s93, 1
          %s4745 = scalar_lea.sflag [#allocation8], %s4744
          %s4746 = sand.u32 %s93, 1
          %s4747 = smul.addr %s4746, 32
          %s4748 = scalar_lea.vmem [#allocation7], %s4747
          %4749 = dma.done %s4745, 512
        $region56: #{distance_gumbel_softmax_vq.1} parent=51 // pred_fallthru
          _
        // Predicated region
        $region57: #{distance_gumbel_softmax_vq.1} parent=51 // pred_check
          %p4750 = pneg %p134
        $region58: #{distance_gumbel_softmax_vq.1} parent=51 // pred_check_branch
          %4752 = sbr.rel (%p4750) target = $region60
        $region59: #{distance_gumbel_softmax_vq.1} parent=51 // pred_region
          %p4753 = scmp.lt.s32.totalorder %s27, 1
          %s4754 = scalar_select %p4753, %s27, 1
          %s4755 = scalar_lea.vmem %s4, %s4754
        $region60: #{distance_gumbel_softmax_vq.1} parent=51 // pred_fallthru
          _
        // Predicated region
        $region61: #{distance_gumbel_softmax_vq.1} parent=51 // pred_check
          %p4756 = pneg %p160
        $region62: #{distance_gumbel_softmax_vq.1} parent=51 // pred_check_branch
          %4758 = sbr.rel (%p4756) target = $region64
        $region63: #{distance_gumbel_softmax_vq.1} parent=51 // pred_region
          %p4759 = scmp.lt.s32.totalorder %s27, 1
          %s4760 = scalar_select %p4759, %s27, 1
          %s4761 = smul.addr %s4760, 16
          %s4762 = smul.addr %s4761, 8
          %s4763 = scalar_lea.vmem %s5, %s4762
        $region64: #{distance_gumbel_softmax_vq.1} parent=51 // pred_fallthru
          _
      $region52: #{distance_gumbel_softmax_vq.1} parent=5 // pred_fallthru
        _
    $region6: #{distance_gumbel_softmax_vq.1} parent=1 // loop_footer
      %s20 = sadd.s32 1, %s16
    $region7: #{distance_gumbel_softmax_vq.1} parent=1 // loop_footer_branch
      %15 = sbr.rel target = $region3
    $region8: #{distance_gumbel_softmax_vq.1} parent=1 // loop_exit
      _
    %4764 = vsyncpa [#allocation8], 1
    %s4765 = scalar_lea.sflag [#allocation8], 1
    %4766 = vsyncpa %s4765, 1

</llo_original>
